<compile_context>
chip_gen: v7x
topology: tpu7x:2x2x1
jax: 0.10.0
libtpu: 0.0.40
codegen_flags: <defaults>
</compile_context>

<pallas_src>
import functools

import numpy as np
import jax
import jax.numpy as jnp
from jax.experimental import pallas as pl
from jax.experimental.pallas import tpu as pltpu


def _banded_weights(w_hwio, W):
    """Convert (3,3,Cin,Cout) HWIO conv weights into 3 banded matmul matrices.

    band[dy] has shape ((W+2)*Cin, W*Cout) with
        band[dy][(w+dx)*Cin + ci, w*Cout + co] = w_hwio[dy, dx, ci, co]
    so that sum_dy (padded_rows[dy:dy+H] @ band[dy]) is the 3x3 'same' conv
    (cross-correlation, as in nn.Conv2d) in the lane-dense layout.
    """
    _, _, cin, cout = w_hwio.shape
    sel = np.zeros((3, W + 2, W), np.float32)
    for dx in range(3):
        sel[dx, np.arange(W) + dx, np.arange(W)] = 1.0
    sel = jnp.asarray(sel)
    w = w_hwio.astype(jnp.float32)
    bands = [
        jnp.einsum("dpw,dio->piwo", sel, w[dy]).reshape((W + 2) * cin, W * cout)
        for dy in range(3)
    ]
    return jnp.stack(bands)  # (3, (W+2)*Cin, W*Cout)


def _fused_convnet_kernel(x_ref, w1_ref, b1_ref, w2_ref, b2_ref, w3_ref,
                          b3_ref, w4_ref, b4_ref, o_ref,
                          p1, p2, p3, p4, *, N, H, W):
    """Whole 4-layer conv net in one kernel; activations never leave VMEM."""
    HP = H + 2

    def pad_store(pad_ref, act, c):
        # act: (N*H, W*c) -> zero-padded lane-dense scratch (N*HP, (W+2)*c)
        pad_ref[...] = jnp.zeros_like(pad_ref)
        for n in range(N):
            pad_ref[n * HP + 1:n * HP + 1 + H, c:(W + 1) * c] = (
                act[n * H:(n + 1) * H, :])

    def conv3x3(pad_ref, w_ref, b_ref, relu):
        # pad_ref: (N*HP, (W+2)*Cin); w_ref: (3, (W+2)*Cin, W*Cout); b_ref: (1, W*Cout)
        acc = None
        for dy in range(3):
            rows = [pad_ref[n * HP + dy:n * HP + dy + H, :] for n in range(N)]
            lhs = rows[0] if N == 1 else jnp.concatenate(rows, axis=0)
            part = jnp.dot(lhs, w_ref[dy], preferred_element_type=jnp.float32)
            acc = part if acc is None else acc + part
        acc = acc + b_ref[...]
        return jnp.maximum(acc, 0.0) if relu else acc

    pad_store(p1, x_ref[...], 1)                          # pad the Cin=1 input
    a = conv3x3(p1, w1_ref, b1_ref, relu=True)            # (N*H, W*16)
    pad_store(p2, a, 16)
    a = conv3x3(p2, w2_ref, b2_ref, relu=True)            # (N*H, W*8)
    pad_store(p3, a, 8)
    a = conv3x3(p3, w3_ref, b3_ref, relu=True)            # (N*H, W*32)
    pad_store(p4, a, 32)
    o_ref[...] = conv3x3(p4, w4_ref, b4_ref, relu=False)  # (N*H, W)


def init_params(key):
    """Deterministic parameter init (PyTorch-like uniform 1/sqrt(fan_in))."""
    layer_defs = [(1, 16), (16, 8), (8, 32), (32, 1)]   # (Cin, Cout)
    params = []
    for i, (cin, cout) in enumerate(layer_defs):
        kw, kb, key = jax.random.split(jax.random.fold_in(key, i), 3)
        fan_in = cin * 3 * 3
        bound = 1.0 / jnp.sqrt(fan_in)
        w = jax.random.uniform(kw, (3, 3, cin, cout), jnp.float32,
                               minval=-bound, maxval=bound)
        b = jax.random.uniform(kb, (cout,), jnp.float32,
                               minval=-bound, maxval=bound)
        params.append((w, b))
    return params


def prepare_params(params, W):
    """HWIO conv weights -> (banded weight, lane-tiled bias) per layer."""
    # TODO(synk): if loading real PyTorch OIHW weights, permute (2,3,1,0) -> HWIO first.
    prepped = []
    for w_hwio, b in params:
        cout = w_hwio.shape[-1]
        wb = _banded_weights(w_hwio, W)                              # (3,(W+2)Cin,W*Cout)
        bt = jnp.tile(b.astype(jnp.float32), W).reshape(1, W * cout)  # (1, W*Cout)
        prepped.append((wb, bt))
    return prepped


@jax.jit
def matrix_transformer_forward(x_nchw, banded_params):
    """x_nchw: (N, 1, H, W) -> (N, 1, H, W), matching the PyTorch module."""
    N, C, H, W = x_nchw.shape          # C == 1
    x2d = x_nchw.astype(jnp.float32).reshape(N * H, W)
    (w1, b1), (w2, b2), (w3, b3), (w4, b4) = banded_params

    kernel = functools.partial(_fused_convnet_kernel, N=N, H=H, W=W)
    out2d = pl.pallas_call(
        kernel,
        out_shape=jax.ShapeDtypeStruct((N * H, W), jnp.float32),
        scratch_shapes=[
            pltpu.VMEM((N * (H + 2), (W + 2) * 1), jnp.float32),
            pltpu.VMEM((N * (H + 2), (W + 2) * 16), jnp.float32),
            pltpu.VMEM((N * (H + 2), (W + 2) * 8), jnp.float32),
            pltpu.VMEM((N * (H + 2), (W + 2) * 32), jnp.float32),
        ],
    )(x2d, w1, b1, w2, b2, w3, b3, w4, b4)

    return out2d.reshape(N, H, W)[:, None, :, :]


def _reference_forward(x_nchw, params):
    """Pure-JAX reference (XLA conv) for correctness checking."""
    x = jnp.transpose(x_nchw, (0, 2, 3, 1)).astype(jnp.float32)
    for i, (w, b) in enumerate(params):
        x = jax.lax.conv_general_dilated(
            x, w.astype(jnp.float32), window_strides=(1, 1), padding="SAME",
            dimension_numbers=("NHWC", "HWIO", "NHWC"),
            precision=jax.lax.Precision.HIGHEST) + b
        if i < len(params) - 1:
            x = jnp.maximum(x, 0.0)
    return jnp.transpose(x, (0, 3, 1, 2))


if __name__ == "__main__":
    key = jax.random.PRNGKey(0)
    k_x, k_p = jax.random.split(key)

    # Small NCHW input consistent with conv1(in_channels=1): (batch=2, 1, 16, 16)
    x = jax.random.normal(k_x, (2, 1, 16, 16), dtype=jnp.float32)
    params = init_params(k_p)
    banded = prepare_params(params, W=x.shape[-1])

    out = matrix_transformer_forward(x, banded)
    jax.block_until_ready(out)

    assert out.shape == (2, 1, 16, 16), out.shape
    assert out.dtype == jnp.float32, out.dtype

    ref = _reference_forward(x, params)
    max_err = float(jnp.max(jnp.abs(out - ref)))
    assert jnp.allclose(out, ref, atol=2e-3, rtol=2e-3), max_err

    print("KERNEL_OK")
</pallas_src>

<mosaic_0001>
module attributes {stable_mosaic.version = 11 : i64} {
  func.func @_fused_convnet_kernel(%arg0: memref<32x16xf32, #tpu.memory_space<vmem>>, %arg1: memref<3x18x256xf32, #tpu.memory_space<vmem>>, %arg2: memref<1x256xf32, #tpu.memory_space<vmem>>, %arg3: memref<3x288x128xf32, #tpu.memory_space<vmem>>, %arg4: memref<1x128xf32, #tpu.memory_space<vmem>>, %arg5: memref<3x144x512xf32, #tpu.memory_space<vmem>>, %arg6: memref<1x512xf32, #tpu.memory_space<vmem>>, %arg7: memref<3x576x16xf32, #tpu.memory_space<vmem>>, %arg8: memref<1x16xf32, #tpu.memory_space<vmem>>, %arg9: memref<32x16xf32, #tpu.memory_space<vmem>>, %arg10: memref<36x18xf32, #tpu.memory_space<vmem>>, %arg11: memref<36x288xf32, #tpu.memory_space<vmem>>, %arg12: memref<36x144xf32, #tpu.memory_space<vmem>>, %arg13: memref<36x576xf32, #tpu.memory_space<vmem>>) attributes {dimension_semantics = [], scalar_prefetch = 0 : i64, scratch_operands = 4 : i64, tpu.core_type = #tpu.core_type<tc>} {
    %c0 = arith.constant 0 : index
    %c0_0 = arith.constant 0 : index
    %0 = vector.load %arg0[%c0, %c0_0] : memref<32x16xf32, #tpu.memory_space<vmem>>, vector<32x16xf32>
    %cst = arith.constant 0.000000e+00 : f32
    %1 = vector.broadcast %cst : f32 to vector<36x18xf32>
    %c0_1 = arith.constant 0 : index
    %c0_2 = arith.constant 0 : index
    %2 = vector.load %arg10[%c0_1, %c0_2] : memref<36x18xf32, #tpu.memory_space<vmem>>, vector<36x18xf32>
    tpu.vector_store %arg10[%c0_1, %c0_2], %1 {strides = array<i32>} : memref<36x18xf32, #tpu.memory_space<vmem>>, vector<36x18xf32>,
    %3 = vector.extract_strided_slice %0 {offsets = [0, 0], sizes = [16, 16], strides = [1, 1]} : vector<32x16xf32> to vector<16x16xf32>
    %c1 = arith.constant 1 : index
    %c1_3 = arith.constant 1 : index
    %4 = vector.load %arg10[%c1, %c1_3] : memref<36x18xf32, #tpu.memory_space<vmem>>, vector<16x16xf32>
    tpu.vector_store %arg10[%c1, %c1_3], %3 {strides = array<i32>} : memref<36x18xf32, #tpu.memory_space<vmem>>, vector<16x16xf32>,
    %5 = vector.extract_strided_slice %0 {offsets = [16, 0], sizes = [16, 16], strides = [1, 1]} : vector<32x16xf32> to vector<16x16xf32>
    %c19 = arith.constant 19 : index
    %c1_4 = arith.constant 1 : index
    %6 = vector.load %arg10[%c19, %c1_4] : memref<36x18xf32, #tpu.memory_space<vmem>>, vector<16x16xf32>
    tpu.vector_store %arg10[%c19, %c1_4], %5 {strides = array<i32>} : memref<36x18xf32, #tpu.memory_space<vmem>>, vector<16x16xf32>,
    %c0_5 = arith.constant 0 : index
    %c0_6 = arith.constant 0 : index
    %7 = vector.load %arg10[%c0_5, %c0_6] : memref<36x18xf32, #tpu.memory_space<vmem>>, vector<16x18xf32>
    %c18 = arith.constant 18 : index
    %c0_7 = arith.constant 0 : index
    %8 = vector.load %arg10[%c18, %c0_7] : memref<36x18xf32, #tpu.memory_space<vmem>>, vector<16x18xf32>
    %9 = tpu.concatenate %7, %8 in 0 : vector<16x18xf32>, vector<16x18xf32> -> vector<32x18xf32>
    %c0_8 = arith.constant 0 : index
    %c0_9 = arith.constant 0 : index
    %c0_10 = arith.constant 0 : index
    %10 = vector.load %arg1[%c0_8, %c0_9, %c0_10] : memref<3x18x256xf32, #tpu.memory_space<vmem>>, vector<1x18x256xf32>
    %11 = vector.shape_cast %10 : vector<1x18x256xf32> to vector<18x256xf32>
    %cst_11 = arith.constant dense<0.000000e+00> : vector<32x256xf32>
    %12 = tpu.matmul %9, %11, %cst_11 {dimension_numbers = #tpu.dot_dimension_numbers<[1], [0], [0], [1], [0, 0, 1, 1], [], []>} : vector<32x18xf32>, vector<18x256xf32>, vector<32x256xf32> -> vector<32x256xf32>
    %c1_12 = arith.constant 1 : index
    %c0_13 = arith.constant 0 : index
    %13 = vector.load %arg10[%c1_12, %c0_13] : memref<36x18xf32, #tpu.memory_space<vmem>>, vector<16x18xf32>
    %c19_14 = arith.constant 19 : index
    %c0_15 = arith.constant 0 : index
    %14 = vector.load %arg10[%c19_14, %c0_15] : memref<36x18xf32, #tpu.memory_space<vmem>>, vector<16x18xf32>
    %15 = tpu.concatenate %13, %14 in 0 : vector<16x18xf32>, vector<16x18xf32> -> vector<32x18xf32>
    %c1_16 = arith.constant 1 : index
    %c0_17 = arith.constant 0 : index
    %c0_18 = arith.constant 0 : index
    %16 = vector.load %arg1[%c1_16, %c0_17, %c0_18] : memref<3x18x256xf32, #tpu.memory_space<vmem>>, vector<1x18x256xf32>
    %17 = vector.shape_cast %16 : vector<1x18x256xf32> to vector<18x256xf32>
    %cst_19 = arith.constant dense<0.000000e+00> : vector<32x256xf32>
    %18 = tpu.matmul %15, %17, %cst_19 {dimension_numbers = #tpu.dot_dimension_numbers<[1], [0], [0], [1], [0, 0, 1, 1], [], []>} : vector<32x18xf32>, vector<18x256xf32>, vector<32x256xf32> -> vector<32x256xf32>
    %19 = arith.addf %12, %18 : vector<32x256xf32>
    %c2 = arith.constant 2 : index
    %c0_20 = arith.constant 0 : index
    %20 = vector.load %arg10[%c2, %c0_20] : memref<36x18xf32, #tpu.memory_space<vmem>>, vector<16x18xf32>
    %c20 = arith.constant 20 : index
    %c0_21 = arith.constant 0 : index
    %21 = vector.load %arg10[%c20, %c0_21] : memref<36x18xf32, #tpu.memory_space<vmem>>, vector<16x18xf32>
    %22 = tpu.concatenate %20, %21 in 0 : vector<16x18xf32>, vector<16x18xf32> -> vector<32x18xf32>
    %c2_22 = arith.constant 2 : index
    %c0_23 = arith.constant 0 : index
    %c0_24 = arith.constant 0 : index
    %23 = vector.load %arg1[%c2_22, %c0_23, %c0_24] : memref<3x18x256xf32, #tpu.memory_space<vmem>>, vector<1x18x256xf32>
    %24 = vector.shape_cast %23 : vector<1x18x256xf32> to vector<18x256xf32>
    %cst_25 = arith.constant dense<0.000000e+00> : vector<32x256xf32>
    %25 = tpu.matmul %22, %24, %cst_25 {dimension_numbers = #tpu.dot_dimension_numbers<[1], [0], [0], [1], [0, 0, 1, 1], [], []>} : vector<32x18xf32>, vector<18x256xf32>, vector<32x256xf32> -> vector<32x256xf32>
    %26 = arith.addf %19, %25 : vector<32x256xf32>
    %c0_26 = arith.constant 0 : index
    %c0_27 = arith.constant 0 : index
    %27 = vector.load %arg2[%c0_26, %c0_27] : memref<1x256xf32, #tpu.memory_space<vmem>>, vector<1x256xf32>
    %28 = vector.broadcast %27 : vector<1x256xf32> to vector<32x256xf32>
    %29 = arith.addf %26, %28 : vector<32x256xf32>
    %cst_28 = arith.constant 0.000000e+00 : f32
    %30 = vector.broadcast %cst_28 : f32 to vector<32x256xf32>
    %31 = arith.maximumf %29, %30 : vector<32x256xf32>
    %cst_29 = arith.constant 0.000000e+00 : f32
    %32 = vector.broadcast %cst_29 : f32 to vector<36x288xf32>
    %c0_30 = arith.constant 0 : index
    %c0_31 = arith.constant 0 : index
    %33 = vector.load %arg11[%c0_30, %c0_31] : memref<36x288xf32, #tpu.memory_space<vmem>>, vector<36x288xf32>
    tpu.vector_store %arg11[%c0_30, %c0_31], %32 {strides = array<i32>} : memref<36x288xf32, #tpu.memory_space<vmem>>, vector<36x288xf32>,
    %34 = vector.extract_strided_slice %31 {offsets = [0, 0], sizes = [16, 256], strides = [1, 1]} : vector<32x256xf32> to vector<16x256xf32>
    %c1_32 = arith.constant 1 : index
    %c16 = arith.constant 16 : index
    %35 = vector.load %arg11[%c1_32, %c16] : memref<36x288xf32, #tpu.memory_space<vmem>>, vector<16x256xf32>
    tpu.vector_store %arg11[%c1_32, %c16], %34 {strides = array<i32>} : memref<36x288xf32, #tpu.memory_space<vmem>>, vector<16x256xf32>,
    %36 = vector.extract_strided_slice %31 {offsets = [16, 0], sizes = [16, 256], strides = [1, 1]} : vector<32x256xf32> to vector<16x256xf32>
    %c19_33 = arith.constant 19 : index
    %c16_34 = arith.constant 16 : index
    %37 = vector.load %arg11[%c19_33, %c16_34] : memref<36x288xf32, #tpu.memory_space<vmem>>, vector<16x256xf32>
    tpu.vector_store %arg11[%c19_33, %c16_34], %36 {strides = array<i32>} : memref<36x288xf32, #tpu.memory_space<vmem>>, vector<16x256xf32>,
    %c0_35 = arith.constant 0 : index
    %c0_36 = arith.constant 0 : index
    %38 = vector.load %arg11[%c0_35, %c0_36] : memref<36x288xf32, #tpu.memory_space<vmem>>, vector<16x288xf32>
    %c18_37 = arith.constant 18 : index
    %c0_38 = arith.constant 0 : index
    %39 = vector.load %arg11[%c18_37, %c0_38] : memref<36x288xf32, #tpu.memory_space<vmem>>, vector<16x288xf32>
    %40 = tpu.concatenate %38, %39 in 0 : vector<16x288xf32>, vector<16x288xf32> -> vector<32x288xf32>
    %c0_39 = arith.constant 0 : index
    %c0_40 = arith.constant 0 : index
    %c0_41 = arith.constant 0 : index
    %41 = vector.load %arg3[%c0_39, %c0_40, %c0_41] : memref<3x288x128xf32, #tpu.memory_space<vmem>>, vector<1x288x128xf32>
    %42 = vector.shape_cast %41 : vector<1x288x128xf32> to vector<288x128xf32>
    %cst_42 = arith.constant dense<0.000000e+00> : vector<32x128xf32>
    %43 = tpu.matmul %40, %42, %cst_42 {dimension_numbers = #tpu.dot_dimension_numbers<[1], [0], [0], [1], [0, 0, 1, 1], [], []>} : vector<32x288xf32>, vector<288x128xf32>, vector<32x128xf32> -> vector<32x128xf32>
    %c1_43 = arith.constant 1 : index
    %c0_44 = arith.constant 0 : index
    %44 = vector.load %arg11[%c1_43, %c0_44] : memref<36x288xf32, #tpu.memory_space<vmem>>, vector<16x288xf32>
    %c19_45 = arith.constant 19 : index
    %c0_46 = arith.constant 0 : index
    %45 = vector.load %arg11[%c19_45, %c0_46] : memref<36x288xf32, #tpu.memory_space<vmem>>, vector<16x288xf32>
    %46 = tpu.concatenate %44, %45 in 0 : vector<16x288xf32>, vector<16x288xf32> -> vector<32x288xf32>
    %c1_47 = arith.constant 1 : index
    %c0_48 = arith.constant 0 : index
    %c0_49 = arith.constant 0 : index
    %47 = vector.load %arg3[%c1_47, %c0_48, %c0_49] : memref<3x288x128xf32, #tpu.memory_space<vmem>>, vector<1x288x128xf32>
    %48 = vector.shape_cast %47 : vector<1x288x128xf32> to vector<288x128xf32>
    %cst_50 = arith.constant dense<0.000000e+00> : vector<32x128xf32>
    %49 = tpu.matmul %46, %48, %cst_50 {dimension_numbers = #tpu.dot_dimension_numbers<[1], [0], [0], [1], [0, 0, 1, 1], [], []>} : vector<32x288xf32>, vector<288x128xf32>, vector<32x128xf32> -> vector<32x128xf32>
    %50 = arith.addf %43, %49 : vector<32x128xf32>
    %c2_51 = arith.constant 2 : index
    %c0_52 = arith.constant 0 : index
    %51 = vector.load %arg11[%c2_51, %c0_52] : memref<36x288xf32, #tpu.memory_space<vmem>>, vector<16x288xf32>
    %c20_53 = arith.constant 20 : index
    %c0_54 = arith.constant 0 : index
    %52 = vector.load %arg11[%c20_53, %c0_54] : memref<36x288xf32, #tpu.memory_space<vmem>>, vector<16x288xf32>
    %53 = tpu.concatenate %51, %52 in 0 : vector<16x288xf32>, vector<16x288xf32> -> vector<32x288xf32>
    %c2_55 = arith.constant 2 : index
    %c0_56 = arith.constant 0 : index
    %c0_57 = arith.constant 0 : index
    %54 = vector.load %arg3[%c2_55, %c0_56, %c0_57] : memref<3x288x128xf32, #tpu.memory_space<vmem>>, vector<1x288x128xf32>
    %55 = vector.shape_cast %54 : vector<1x288x128xf32> to vector<288x128xf32>
    %cst_58 = arith.constant dense<0.000000e+00> : vector<32x128xf32>
    %56 = tpu.matmul %53, %55, %cst_58 {dimension_numbers = #tpu.dot_dimension_numbers<[1], [0], [0], [1], [0, 0, 1, 1], [], []>} : vector<32x288xf32>, vector<288x128xf32>, vector<32x128xf32> -> vector<32x128xf32>
    %57 = arith.addf %50, %56 : vector<32x128xf32>
    %c0_59 = arith.constant 0 : index
    %c0_60 = arith.constant 0 : index
    %58 = vector.load %arg4[%c0_59, %c0_60] : memref<1x128xf32, #tpu.memory_space<vmem>>, vector<1x128xf32>
    %59 = vector.broadcast %58 : vector<1x128xf32> to vector<32x128xf32>
    %60 = arith.addf %57, %59 : vector<32x128xf32>
    %cst_61 = arith.constant 0.000000e+00 : f32
    %61 = vector.broadcast %cst_61 : f32 to vector<32x128xf32>
    %62 = arith.maximumf %60, %61 : vector<32x128xf32>
    %cst_62 = arith.constant 0.000000e+00 : f32
    %63 = vector.broadcast %cst_62 : f32 to vector<36x144xf32>
    %c0_63 = arith.constant 0 : index
    %c0_64 = arith.constant 0 : index
    %64 = vector.load %arg12[%c0_63, %c0_64] : memref<36x144xf32, #tpu.memory_space<vmem>>, vector<36x144xf32>
    tpu.vector_store %arg12[%c0_63, %c0_64], %63 {strides = array<i32>} : memref<36x144xf32, #tpu.memory_space<vmem>>, vector<36x144xf32>,
    %65 = vector.extract_strided_slice %62 {offsets = [0, 0], sizes = [16, 128], strides = [1, 1]} : vector<32x128xf32> to vector<16x128xf32>
    %c1_65 = arith.constant 1 : index
    %c8 = arith.constant 8 : index
    %66 = vector.load %arg12[%c1_65, %c8] : memref<36x144xf32, #tpu.memory_space<vmem>>, vector<16x128xf32>
    tpu.vector_store %arg12[%c1_65, %c8], %65 {strides = array<i32>} : memref<36x144xf32, #tpu.memory_space<vmem>>, vector<16x128xf32>,
    %67 = vector.extract_strided_slice %62 {offsets = [16, 0], sizes = [16, 128], strides = [1, 1]} : vector<32x128xf32> to vector<16x128xf32>
    %c19_66 = arith.constant 19 : index
    %c8_67 = arith.constant 8 : index
    %68 = vector.load %arg12[%c19_66, %c8_67] : memref<36x144xf32, #tpu.memory_space<vmem>>, vector<16x128xf32>
    tpu.vector_store %arg12[%c19_66, %c8_67], %67 {strides = array<i32>} : memref<36x144xf32, #tpu.memory_space<vmem>>, vector<16x128xf32>,
    %c0_68 = arith.constant 0 : index
    %c0_69 = arith.constant 0 : index
    %69 = vector.load %arg12[%c0_68, %c0_69] : memref<36x144xf32, #tpu.memory_space<vmem>>, vector<16x144xf32>
    %c18_70 = arith.constant 18 : index
    %c0_71 = arith.constant 0 : index
    %70 = vector.load %arg12[%c18_70, %c0_71] : memref<36x144xf32, #tpu.memory_space<vmem>>, vector<16x144xf32>
    %71 = tpu.concatenate %69, %70 in 0 : vector<16x144xf32>, vector<16x144xf32> -> vector<32x144xf32>
    %c0_72 = arith.constant 0 : index
    %c0_73 = arith.constant 0 : index
    %c0_74 = arith.constant 0 : index
    %72 = vector.load %arg5[%c0_72, %c0_73, %c0_74] : memref<3x144x512xf32, #tpu.memory_space<vmem>>, vector<1x144x512xf32>
    %73 = vector.shape_cast %72 : vector<1x144x512xf32> to vector<144x512xf32>
    %cst_75 = arith.constant dense<0.000000e+00> : vector<32x512xf32>
    %74 = tpu.matmul %71, %73, %cst_75 {dimension_numbers = #tpu.dot_dimension_numbers<[1], [0], [0], [1], [0, 0, 1, 1], [], []>} : vector<32x144xf32>, vector<144x512xf32>, vector<32x512xf32> -> vector<32x512xf32>
    %c1_76 = arith.constant 1 : index
    %c0_77 = arith.constant 0 : index
    %75 = vector.load %arg12[%c1_76, %c0_77] : memref<36x144xf32, #tpu.memory_space<vmem>>, vector<16x144xf32>
    %c19_78 = arith.constant 19 : index
    %c0_79 = arith.constant 0 : index
    %76 = vector.load %arg12[%c19_78, %c0_79] : memref<36x144xf32, #tpu.memory_space<vmem>>, vector<16x144xf32>
    %77 = tpu.concatenate %75, %76 in 0 : vector<16x144xf32>, vector<16x144xf32> -> vector<32x144xf32>
    %c1_80 = arith.constant 1 : index
    %c0_81 = arith.constant 0 : index
    %c0_82 = arith.constant 0 : index
    %78 = vector.load %arg5[%c1_80, %c0_81, %c0_82] : memref<3x144x512xf32, #tpu.memory_space<vmem>>, vector<1x144x512xf32>
    %79 = vector.shape_cast %78 : vector<1x144x512xf32> to vector<144x512xf32>
    %cst_83 = arith.constant dense<0.000000e+00> : vector<32x512xf32>
    %80 = tpu.matmul %77, %79, %cst_83 {dimension_numbers = #tpu.dot_dimension_numbers<[1], [0], [0], [1], [0, 0, 1, 1], [], []>} : vector<32x144xf32>, vector<144x512xf32>, vector<32x512xf32> -> vector<32x512xf32>
    %81 = arith.addf %74, %80 : vector<32x512xf32>
    %c2_84 = arith.constant 2 : index
    %c0_85 = arith.constant 0 : index
    %82 = vector.load %arg12[%c2_84, %c0_85] : memref<36x144xf32, #tpu.memory_space<vmem>>, vector<16x144xf32>
    %c20_86 = arith.constant 20 : index
    %c0_87 = arith.constant 0 : index
    %83 = vector.load %arg12[%c20_86, %c0_87] : memref<36x144xf32, #tpu.memory_space<vmem>>, vector<16x144xf32>
    %84 = tpu.concatenate %82, %83 in 0 : vector<16x144xf32>, vector<16x144xf32> -> vector<32x144xf32>
    %c2_88 = arith.constant 2 : index
    %c0_89 = arith.constant 0 : index
    %c0_90 = arith.constant 0 : index
    %85 = vector.load %arg5[%c2_88, %c0_89, %c0_90] : memref<3x144x512xf32, #tpu.memory_space<vmem>>, vector<1x144x512xf32>
    %86 = vector.shape_cast %85 : vector<1x144x512xf32> to vector<144x512xf32>
    %cst_91 = arith.constant dense<0.000000e+00> : vector<32x512xf32>
    %87 = tpu.matmul %84, %86, %cst_91 {dimension_numbers = #tpu.dot_dimension_numbers<[1], [0], [0], [1], [0, 0, 1, 1], [], []>} : vector<32x144xf32>, vector<144x512xf32>, vector<32x512xf32> -> vector<32x512xf32>
    %88 = arith.addf %81, %87 : vector<32x512xf32>
    %c0_92 = arith.constant 0 : index
    %c0_93 = arith.constant 0 : index
    %89 = vector.load %arg6[%c0_92, %c0_93] : memref<1x512xf32, #tpu.memory_space<vmem>>, vector<1x512xf32>
    %90 = vector.broadcast %89 : vector<1x512xf32> to vector<32x512xf32>
    %91 = arith.addf %88, %90 : vector<32x512xf32>
    %cst_94 = arith.constant 0.000000e+00 : f32
    %92 = vector.broadcast %cst_94 : f32 to vector<32x512xf32>
    %93 = arith.maximumf %91, %92 : vector<32x512xf32>
    %cst_95 = arith.constant 0.000000e+00 : f32
    %94 = vector.broadcast %cst_95 : f32 to vector<36x576xf32>
    %c0_96 = arith.constant 0 : index
    %c0_97 = arith.constant 0 : index
    %95 = vector.load %arg13[%c0_96, %c0_97] : memref<36x576xf32, #tpu.memory_space<vmem>>, vector<36x576xf32>
    tpu.vector_store %arg13[%c0_96, %c0_97], %94 {strides = array<i32>} : memref<36x576xf32, #tpu.memory_space<vmem>>, vector<36x576xf32>,
    %96 = vector.extract_strided_slice %93 {offsets = [0, 0], sizes = [16, 512], strides = [1, 1]} : vector<32x512xf32> to vector<16x512xf32>
    %c1_98 = arith.constant 1 : index
    %c32 = arith.constant 32 : index
    %97 = vector.load %arg13[%c1_98, %c32] : memref<36x576xf32, #tpu.memory_space<vmem>>, vector<16x512xf32>
    tpu.vector_store %arg13[%c1_98, %c32], %96 {strides = array<i32>} : memref<36x576xf32, #tpu.memory_space<vmem>>, vector<16x512xf32>,
    %98 = vector.extract_strided_slice %93 {offsets = [16, 0], sizes = [16, 512], strides = [1, 1]} : vector<32x512xf32> to vector<16x512xf32>
    %c19_99 = arith.constant 19 : index
    %c32_100 = arith.constant 32 : index
    %99 = vector.load %arg13[%c19_99, %c32_100] : memref<36x576xf32, #tpu.memory_space<vmem>>, vector<16x512xf32>
    tpu.vector_store %arg13[%c19_99, %c32_100], %98 {strides = array<i32>} : memref<36x576xf32, #tpu.memory_space<vmem>>, vector<16x512xf32>,
    %c0_101 = arith.constant 0 : index
    %c0_102 = arith.constant 0 : index
    %100 = vector.load %arg13[%c0_101, %c0_102] : memref<36x576xf32, #tpu.memory_space<vmem>>, vector<16x576xf32>
    %c18_103 = arith.constant 18 : index
    %c0_104 = arith.constant 0 : index
    %101 = vector.load %arg13[%c18_103, %c0_104] : memref<36x576xf32, #tpu.memory_space<vmem>>, vector<16x576xf32>
    %102 = tpu.concatenate %100, %101 in 0 : vector<16x576xf32>, vector<16x576xf32> -> vector<32x576xf32>
    %c0_105 = arith.constant 0 : index
    %c0_106 = arith.constant 0 : index
    %c0_107 = arith.constant 0 : index
    %103 = vector.load %arg7[%c0_105, %c0_106, %c0_107] : memref<3x576x16xf32, #tpu.memory_space<vmem>>, vector<1x576x16xf32>
    %104 = vector.shape_cast %103 : vector<1x576x16xf32> to vector<576x16xf32>
    %cst_108 = arith.constant dense<0.000000e+00> : vector<32x16xf32>
    %105 = tpu.matmul %102, %104, %cst_108 {dimension_numbers = #tpu.dot_dimension_numbers<[1], [0], [0], [1], [0, 0, 1, 1], [], []>} : vector<32x576xf32>, vector<576x16xf32>, vector<32x16xf32> -> vector<32x16xf32>
    %c1_109 = arith.constant 1 : index
    %c0_110 = arith.constant 0 : index
    %106 = vector.load %arg13[%c1_109, %c0_110] : memref<36x576xf32, #tpu.memory_space<vmem>>, vector<16x576xf32>
    %c19_111 = arith.constant 19 : index
    %c0_112 = arith.constant 0 : index
    %107 = vector.load %arg13[%c19_111, %c0_112] : memref<36x576xf32, #tpu.memory_space<vmem>>, vector<16x576xf32>
    %108 = tpu.concatenate %106, %107 in 0 : vector<16x576xf32>, vector<16x576xf32> -> vector<32x576xf32>
    %c1_113 = arith.constant 1 : index
    %c0_114 = arith.constant 0 : index
    %c0_115 = arith.constant 0 : index
    %109 = vector.load %arg7[%c1_113, %c0_114, %c0_115] : memref<3x576x16xf32, #tpu.memory_space<vmem>>, vector<1x576x16xf32>
    %110 = vector.shape_cast %109 : vector<1x576x16xf32> to vector<576x16xf32>
    %cst_116 = arith.constant dense<0.000000e+00> : vector<32x16xf32>
    %111 = tpu.matmul %108, %110, %cst_116 {dimension_numbers = #tpu.dot_dimension_numbers<[1], [0], [0], [1], [0, 0, 1, 1], [], []>} : vector<32x576xf32>, vector<576x16xf32>, vector<32x16xf32> -> vector<32x16xf32>
    %112 = arith.addf %105, %111 : vector<32x16xf32>
    %c2_117 = arith.constant 2 : index
    %c0_118 = arith.constant 0 : index
    %113 = vector.load %arg13[%c2_117, %c0_118] : memref<36x576xf32, #tpu.memory_space<vmem>>, vector<16x576xf32>
    %c20_119 = arith.constant 20 : index
    %c0_120 = arith.constant 0 : index
    %114 = vector.load %arg13[%c20_119, %c0_120] : memref<36x576xf32, #tpu.memory_space<vmem>>, vector<16x576xf32>
    %115 = tpu.concatenate %113, %114 in 0 : vector<16x576xf32>, vector<16x576xf32> -> vector<32x576xf32>
    %c2_121 = arith.constant 2 : index
    %c0_122 = arith.constant 0 : index
    %c0_123 = arith.constant 0 : index
    %116 = vector.load %arg7[%c2_121, %c0_122, %c0_123] : memref<3x576x16xf32, #tpu.memory_space<vmem>>, vector<1x576x16xf32>
    %117 = vector.shape_cast %116 : vector<1x576x16xf32> to vector<576x16xf32>
    %cst_124 = arith.constant dense<0.000000e+00> : vector<32x16xf32>
    %118 = tpu.matmul %115, %117, %cst_124 {dimension_numbers = #tpu.dot_dimension_numbers<[1], [0], [0], [1], [0, 0, 1, 1], [], []>} : vector<32x576xf32>, vector<576x16xf32>, vector<32x16xf32> -> vector<32x16xf32>
    %119 = arith.addf %112, %118 : vector<32x16xf32>
    %c0_125 = arith.constant 0 : index
    %c0_126 = arith.constant 0 : index
    %120 = vector.load %arg8[%c0_125, %c0_126] : memref<1x16xf32, #tpu.memory_space<vmem>>, vector<1x16xf32>
    %121 = vector.broadcast %120 : vector<1x16xf32> to vector<32x16xf32>
    %122 = arith.addf %119, %121 : vector<32x16xf32>
    %c0_127 = arith.constant 0 : index
    %c0_128 = arith.constant 0 : index
    %123 = vector.load %arg9[%c0_127, %c0_128] : memref<32x16xf32, #tpu.memory_space<vmem>>, vector<32x16xf32>
    tpu.vector_store %arg9[%c0_127, %c0_128], %122 {strides = array<i32>} : memref<32x16xf32, #tpu.memory_space<vmem>>, vector<32x16xf32>,
    return
  }
}

</mosaic_0001>

<llo_original>
// kernel: matrix_transformer_forward.1
$region0: #{matrix_transformer_forward.1}
  #allocation0 [shape = 'u32[]', space=smem, size = 0x4, offset = 0x4, fixed_abs, tag = 'smem constant byte address 0x4 - core index']
  #allocation1 [shape = 'u32[144,128]{1,0:T(1,128)}', space=vmem, size = 0x12000, scoped, tag = 'internal scratch']
  #allocation2 [shape = 'f32[36,18]{1,0:T(8,128)}', space=vmem, size = 0x5000, scoped, tag = 'scratch operand']
  #allocation3 [shape = 'f32[36,288]{1,0:T(8,128)}', space=vmem, size = 0xf000, scoped, tag = 'scratch operand']
  #allocation4 [shape = 'f32[36,144]{1,0:T(8,128)}', space=vmem, size = 0xa000, scoped, tag = 'scratch operand']
  #allocation5 [shape = 'f32[36,576]{1,0:T(8,128)}', space=vmem, size = 0x19000, scoped, tag = 'scratch operand']
  %s0 = inlined_call_operand.vmem [shape: f32[32,16], index: 0, kind: input, shape index: {}]
  %s1 = inlined_call_operand.vmem [shape: f32[3,18,256], index: 1, kind: input, shape index: {}]
  %s2 = inlined_call_operand.vmem [shape: f32[1,256], index: 2, kind: input, shape index: {}]
  %s3 = inlined_call_operand.hbm [shape: f32[3,288,128], index: 3, kind: input, shape index: {}]
  %s4 = inlined_call_operand.vmem [shape: f32[1,128], index: 4, kind: input, shape index: {}]
  %s5 = inlined_call_operand.vmem [shape: f32[3,144,512], index: 5, kind: input, shape index: {}]
  %s6 = inlined_call_operand.vmem [shape: f32[1,512], index: 6, kind: input, shape index: {}]
  %s7 = inlined_call_operand.vmem [shape: f32[3,576,16], index: 7, kind: input, shape index: {}]
  %s8 = inlined_call_operand.vmem [shape: f32[1,16], index: 8, kind: input, shape index: {}]
  %s9 = inlined_call_operand.hbm [shape: f32[32,16], index: 9, kind: output, shape index: {}]
  %s10 = sld [smem:[#allocation0]]
  $region50: #{matrix_transformer_forward.1} parent=0
    _
  %s12 = ssub.s32 1, %s10
  %s13 = scalar_select 0, %s12, %s10
  $region1: #{matrix_transformer_forward.1} parent=0
    #allocation6 [shape = 'u8[442368]{0}', space=vmem, size = 0x6c000, scoped, tag = 'input window, operand 3, single buffered']
    #allocation7 [shape = 's32[1]{0}', space=sflag, size = 0x4, scoped, tag = 'scoped memory for matrix_transformer_forward.1']
    #allocation8 [shape = 's32[1]{0}', space=sflag, size = 0x4, scoped, tag = 'scoped memory for matrix_transformer_forward.1']
    #allocation9 [shape = 'u8[16384]{0}', space=vmem, size = 0x4000, scoped, tag = 'output window, operand 0, single buffered']
    %14 = vsyncpa [#allocation7], 0
    %15 = vsyncpa [#allocation8], 0
    // Predicated region
    $region2: #{matrix_transformer_forward.1} parent=1 // pred_check
      _
    $region3: #{matrix_transformer_forward.1} parent=1 // pred_check_branch
      %17 = sbr.rel (0) target = $region5
    $region4: #{matrix_transformer_forward.1} parent=1 // pred_region
      _
    $region5: #{matrix_transformer_forward.1} parent=1 // pred_fallthru
      _
    // Predicated region
    $region6: #{matrix_transformer_forward.1} parent=1 // pred_check
      _
    $region7: #{matrix_transformer_forward.1} parent=1 // pred_check_branch
      %19 = sbr.rel (0) target = $region9
    $region8: #{matrix_transformer_forward.1} parent=1 // pred_region
      _
    $region9: #{matrix_transformer_forward.1} parent=1 // pred_fallthru
      _
    // Predicated region
    $region10: #{matrix_transformer_forward.1} parent=1 // pred_check
      _
    $region11: #{matrix_transformer_forward.1} parent=1 // pred_check_branch
      %21 = sbr.rel (0) target = $region13
    $region12: #{matrix_transformer_forward.1} parent=1 // pred_region
      _
    $region13: #{matrix_transformer_forward.1} parent=1 // pred_fallthru
      _
    // Predicated region
    $region14: #{matrix_transformer_forward.1} parent=1 // pred_check
      _
    $region15: #{matrix_transformer_forward.1} parent=1 // pred_check_branch
      %23 = sbr.rel (0) target = $region17
    $region16: #{matrix_transformer_forward.1} parent=1 // pred_region
      %s25 = ssub.s32 13824, 13824
      %26 = vsyncadd [#allocation7], %s25
      %s27 = sshll.u32 [#allocation6], 4
      %s28 = int_to_ptr.vmem [resolvable:$true] %s27
      %33 = dma.hbm_to_vmem [thread:$0]  %s3, 13824, %s28, [#allocation7], 128, 128, 8
    $region17: #{matrix_transformer_forward.1} parent=1 // pred_fallthru
      _
    // Predicated region
    $region18: #{matrix_transformer_forward.1} parent=1 // pred_check
      _
    $region19: #{matrix_transformer_forward.1} parent=1 // pred_check_branch
      %35 = sbr.rel (0) target = $region21
    $region20: #{matrix_transformer_forward.1} parent=1 // pred_region
      _
    $region21: #{matrix_transformer_forward.1} parent=1 // pred_fallthru
      _
    // Predicated region
    $region22: #{matrix_transformer_forward.1} parent=1 // pred_check
      _
    $region23: #{matrix_transformer_forward.1} parent=1 // pred_check_branch
      %37 = sbr.rel (0) target = $region25
    $region24: #{matrix_transformer_forward.1} parent=1 // pred_region
      _
    $region25: #{matrix_transformer_forward.1} parent=1 // pred_fallthru
      _
    // Predicated region
    $region26: #{matrix_transformer_forward.1} parent=1 // pred_check
      _
    $region27: #{matrix_transformer_forward.1} parent=1 // pred_check_branch
      %39 = sbr.rel (0) target = $region29
    $region28: #{matrix_transformer_forward.1} parent=1 // pred_region
      _
    $region29: #{matrix_transformer_forward.1} parent=1 // pred_fallthru
      _
    // Predicated region
    $region30: #{matrix_transformer_forward.1} parent=1 // pred_check
      _
    $region31: #{matrix_transformer_forward.1} parent=1 // pred_check_branch
      %41 = sbr.rel (0) target = $region33
    $region32: #{matrix_transformer_forward.1} parent=1 // pred_region
      _
    $region33: #{matrix_transformer_forward.1} parent=1 // pred_fallthru
      _
    // Predicated region
    $region34: #{matrix_transformer_forward.1} parent=1 // pred_check
      _
    $region35: #{matrix_transformer_forward.1} parent=1 // pred_check_branch
      %43 = sbr.rel (0) target = $region37
    $region36: #{matrix_transformer_forward.1} parent=1 // pred_region
      _
    $region37: #{matrix_transformer_forward.1} parent=1 // pred_fallthru
      _
    // Predicated region
    $region38: #{matrix_transformer_forward.1} parent=1 // pred_check
      _
    $region39: #{matrix_transformer_forward.1} parent=1 // pred_check_branch
      %45 = sbr.rel (0) target = $region41
    $region40: #{matrix_transformer_forward.1} parent=1 // pred_region
      %46 = dma.done [#allocation7], 13824
    $region41: #{matrix_transformer_forward.1} parent=1 // pred_fallthru
      _
    %v47 = vld [vmem:[%s0] sm:$0xff]
    %v48 = vld [vmem:[%s0 + $0x8] sm:$0xff]
    %v49 = vld [vmem:[%s0 + $0x10] sm:$0xff]
    %v50 = vld [vmem:[%s0 + $0x18] sm:$0xff]
    %vm51 = vcmask 146432
    %52 = vst.msk [vmem:[#allocation2] sm:$0xff] %vm51, 0.0
    %53 = vst.msk [vmem:[#allocation2 + $0x8] sm:$0xff] %vm51, 0.0
    %54 = vst.msk [vmem:[#allocation2 + $0x10] sm:$0xff] %vm51, 0.0
    %55 = vst.msk [vmem:[#allocation2 + $0x18] sm:$0xff] %vm51, 0.0
    %vm56 = vcmask 142336
    %57 = vst.msk [vmem:[#allocation2 + $0x20] sm:$0xf] %vm56, 0.0
    %60 = vrot.lane.b32.xlu0 %v47, 1
    %v61 = vpop.permute.xlu0 %60
    %62 = vrot.lane.b32.xlu0 %v48, 1
    %v63 = vpop.permute.xlu0 %62
    %vm66 = vcmask 138248
    %67 = vst.msk [vmem:[#allocation2 + $0x1] sm:$0xff] %vm66, %v61
    %68 = vst.msk [vmem:[#allocation2 + $0x9] sm:$0xff] %vm66, %v63
    %71 = vrot.lane.b32.xlu0 %v49, 1
    %v72 = vpop.permute.xlu0 %71
    %73 = vrot.lane.b32.xlu0 %v50, 1
    %v74 = vpop.permute.xlu0 %73
    %77 = vst.msk [vmem:[#allocation2 + $0x13] sm:$0xff] %vm66, %v72
    %78 = vst.msk [vmem:[#allocation2 + $0x1b] sm:$0xff] %vm66, %v74
    %v79 = vld [vmem:[#allocation2] sm:$0xff]
    %v80 = vld [vmem:[#allocation2 + $0x8] sm:$0xff]
    %v81 = vld [vmem:[#allocation2 + $0x12] sm:$0xff]
    %v82 = vld [vmem:[#allocation2 + $0x1a] sm:$0xff]
    %v83 = vld [vmem:[%s1] sm:$0xff]
    %v84 = vld [vmem:[%s1 + $0x8] sm:$0xff]
    %v85 = vld [vmem:[%s1 + $0x10] sm:$0xff]
    %v86 = vld [vmem:[%s1 + $0x18] sm:$0xff]
    %v87 = vld [vmem:[%s1 + $0x20] sm:$0x3]
    %v88 = vld [vmem:[%s1 + $0x28] sm:$0x3]
    %v89 = vld [vmem:[#allocation2 + $0x1] sm:$0xff]
    %v90 = vld [vmem:[#allocation2 + $0x9] sm:$0xff]
    %v91 = vld [vmem:[#allocation2 + $0x13] sm:$0xff]
    %v92 = vld [vmem:[#allocation2 + $0x1b] sm:$0xff]
    %s93 = scalar_lea.vmem %s1, 48
    %v94 = vld [vmem:[%s93] sm:$0xff]
    %v95 = vld [vmem:[%s93 + $0x8] sm:$0xff]
    %v96 = vld [vmem:[%s93 + $0x10] sm:$0xff]
    %v97 = vld [vmem:[%s93 + $0x18] sm:$0xff]
    %v98 = vld [vmem:[%s93 + $0x20] sm:$0x3]
    %v99 = vld [vmem:[%s93 + $0x28] sm:$0x3]
    %v101 = vsel %vm51, %v89, 0
    %v104 = vsel %vm51, %v90, 0
    %v107 = vsel %vm51, %v91, 0
    %v110 = vsel %vm51, %v92, 0
    %vm112 = vcmask 1041408
    %v114 = vsel %vm112, %v98, 0
    %v117 = vsel %vm112, %v99, 0
    %119 = vmatprep.subr.mxu0 %v95
    %120 = vmatpush1.msra.mxu0 %v94
    %121 = vmatprep.subr.mxu0 %v97
    %122 = vmatpush1.msra.mxu0 %v96
    %123 = vmatprep.subr.mxu0 %v117
    %124 = vmatpush1.msra.mxu0 %v114
    %125 = vmatprep.subr.mxu0 0.0
    %126 = vmatpush1.msra.mxu0 0.0
    %127 = vmatprep.subr.mxu0 0.0
    %128 = vmatpush1.msra.mxu0 0.0
    %129 = vmatprep.subr.mxu0 0.0
    %130 = vmatpush1.msra.mxu0 0.0
    %131 = vmatprep.subr.mxu0 0.0
    %132 = vmatpush1.msra.mxu0 0.0
    %133 = vmatprep.subr.mxu0 0.0
    %134 = vmatpush1.msra.mxu0 0.0
    %135 = vmatprep.subr.mxu0 0.0
    %136 = vmatpush1.msra.mxu0 0.0
    %137 = vmatprep.subr.mxu0 0.0
    %138 = vmatpush1.msra.mxu0 0.0
    %139 = vmatprep.subr.mxu0 0.0
    %140 = vmatpush1.msra.mxu0 0.0
    %141 = vmatprep.subr.mxu0 0.0
    %142 = vmatpush1.msra.mxu0 0.0
    %143 = vmatprep.subr.mxu0 0.0
    %144 = vmatpush1.msra.mxu0 0.0
    %145 = vmatprep.subr.mxu0 0.0
    %146 = vmatpush1.msra.mxu0 0.0
    %147 = vmatprep.subr.mxu0 0.0
    %148 = vmatpush1.msra.mxu0 0.0
    %149 = vmatprep.subr.mxu0 0.0
    %150 = vmatpush1.msra.mxu0 0.0
    %151 = vmatprep.subr.mxu0 0.0
    %152 = vmatpush1.msra.mxu0 0.0
    %153 = vmatprep.subr.mxu0 0.0
    %154 = vmatpush1.msra.mxu0 0.0
    %155 = vmatprep.subr.mxu0 0.0
    %156 = vmatpush1.msra.mxu0 0.0
    %157 = vmatprep.subr.mxu0 0.0
    %158 = vmatpush1.msra.mxu0 0.0
    %159 = vmatprep.subr.mxu0 0.0
    %160 = vmatpush1.msra.mxu0 0.0
    %161 = vmatprep.subr.mxu0 0.0
    %162 = vmatpush1.msra.mxu0 0.0
    %163 = vmatprep.subr.mxu0 0.0
    %164 = vmatpush1.msra.mxu0 0.0
    %165 = vmatprep.subr.mxu0 0.0
    %166 = vmatpush1.msra.mxu0 0.0
    %167 = vmatprep.subr.mxu0 0.0
    %168 = vmatpush1.msra.mxu0 0.0
    %169 = vmatprep.subr.mxu0 0.0
    %170 = vmatpush1.msra.mxu0 0.0
    %171 = vmatprep.subr.mxu0 0.0
    %172 = vmatpush1.msra.mxu0 0.0
    %173 = vmatprep.subr.mxu0 0.0
    %174 = vmatpush1.msra.mxu0 0.0
    %175 = vmatprep.subr.mxu0 0.0
    %176 = vmatpush1.msra.mxu0 0.0
    %177 = vmatprep.subr.mxu0 0.0
    %178 = vmatpush1.msra.mxu0 0.0
    %179 = vmatprep.subr.mxu0 0.0
    %180 = vmatpush1.msra.mxu0 0.0
    %181 = vmatprep.subr.mxu0 0.0
    %182 = vmatpush1.msra.mxu0 0.0
    %183 = vmatprep.mubr.f32.mxu0 0.0
    %184 = vmatmul.mubr.f32.gmra.mrb[0].mxu0 %v101
    %v185 = vpop.f32.mrb[0].mxu0
    %v186 = vadd.f32 0.0, %v185
    %v187 = vpop.f32.mrb[0].mxu0
    %v188 = vadd.f32 0.0, %v187
    %189 = vmatprep.mubr.f32.mxu0 0.0
    %190 = vmatmul.mubr.f32.gmra.mrb[0].mxu0 %v104
    %v191 = vpop.f32.mrb[0].mxu0
    %v192 = vadd.f32 0.0, %v191
    %v193 = vpop.f32.mrb[0].mxu0
    %v194 = vadd.f32 0.0, %v193
    %195 = vmatprep.mubr.f32.mxu0 0.0
    %196 = vmatmul.mubr.f32.gmra.mrb[0].mxu0 %v107
    %v197 = vpop.f32.mrb[0].mxu0
    %v198 = vadd.f32 0.0, %v197
    %v199 = vpop.f32.mrb[0].mxu0
    %v200 = vadd.f32 0.0, %v199
    %201 = vmatprep.mubr.f32.mxu0 0.0
    %202 = vmatmul.mubr.f32.gmra.mrb[0].mxu0 %v110
    %v203 = vpop.f32.mrb[0].mxu0
    %v204 = vadd.f32 0.0, %v203
    %v205 = vpop.f32.mrb[0].mxu0
    %v206 = vadd.f32 0.0, %v205
    %207 = vdwg.mxu0
    %v209 = vsel %vm51, %v79, 0
    %v212 = vsel %vm51, %v80, 0
    %v215 = vsel %vm51, %v81, 0
    %v218 = vsel %vm51, %v82, 0
    %v221 = vsel %vm112, %v87, 0
    %v224 = vsel %vm112, %v88, 0
    %226 = vmatprep.subr.mxu0 %v84
    %227 = vmatpush1.msra.mxu0 %v83
    %228 = vmatprep.subr.mxu0 %v86
    %229 = vmatpush1.msra.mxu0 %v85
    %230 = vmatprep.subr.mxu0 %v224
    %231 = vmatpush1.msra.mxu0 %v221
    %232 = vmatprep.subr.mxu0 0.0
    %233 = vmatpush1.msra.mxu0 0.0
    %234 = vmatprep.subr.mxu0 0.0
    %235 = vmatpush1.msra.mxu0 0.0
    %236 = vmatprep.subr.mxu0 0.0
    %237 = vmatpush1.msra.mxu0 0.0
    %238 = vmatprep.subr.mxu0 0.0
    %239 = vmatpush1.msra.mxu0 0.0
    %240 = vmatprep.subr.mxu0 0.0
    %241 = vmatpush1.msra.mxu0 0.0
    %242 = vmatprep.subr.mxu0 0.0
    %243 = vmatpush1.msra.mxu0 0.0
    %244 = vmatprep.subr.mxu0 0.0
    %245 = vmatpush1.msra.mxu0 0.0
    %246 = vmatprep.subr.mxu0 0.0
    %247 = vmatpush1.msra.mxu0 0.0
    %248 = vmatprep.subr.mxu0 0.0
    %249 = vmatpush1.msra.mxu0 0.0
    %250 = vmatprep.subr.mxu0 0.0
    %251 = vmatpush1.msra.mxu0 0.0
    %252 = vmatprep.subr.mxu0 0.0
    %253 = vmatpush1.msra.mxu0 0.0
    %254 = vmatprep.subr.mxu0 0.0
    %255 = vmatpush1.msra.mxu0 0.0
    %256 = vmatprep.subr.mxu0 0.0
    %257 = vmatpush1.msra.mxu0 0.0
    %258 = vmatprep.subr.mxu0 0.0
    %259 = vmatpush1.msra.mxu0 0.0
    %260 = vmatprep.subr.mxu0 0.0
    %261 = vmatpush1.msra.mxu0 0.0
    %262 = vmatprep.subr.mxu0 0.0
    %263 = vmatpush1.msra.mxu0 0.0
    %264 = vmatprep.subr.mxu0 0.0
    %265 = vmatpush1.msra.mxu0 0.0
    %266 = vmatprep.subr.mxu0 0.0
    %267 = vmatpush1.msra.mxu0 0.0
    %268 = vmatprep.subr.mxu0 0.0
    %269 = vmatpush1.msra.mxu0 0.0
    %270 = vmatprep.subr.mxu0 0.0
    %271 = vmatpush1.msra.mxu0 0.0
    %272 = vmatprep.subr.mxu0 0.0
    %273 = vmatpush1.msra.mxu0 0.0
    %274 = vmatprep.subr.mxu0 0.0
    %275 = vmatpush1.msra.mxu0 0.0
    %276 = vmatprep.subr.mxu0 0.0
    %277 = vmatpush1.msra.mxu0 0.0
    %278 = vmatprep.subr.mxu0 0.0
    %279 = vmatpush1.msra.mxu0 0.0
    %280 = vmatprep.subr.mxu0 0.0
    %281 = vmatpush1.msra.mxu0 0.0
    %282 = vmatprep.subr.mxu0 0.0
    %283 = vmatpush1.msra.mxu0 0.0
    %284 = vmatprep.subr.mxu0 0.0
    %285 = vmatpush1.msra.mxu0 0.0
    %286 = vmatprep.subr.mxu0 0.0
    %287 = vmatpush1.msra.mxu0 0.0
    %288 = vmatprep.subr.mxu0 0.0
    %289 = vmatpush1.msra.mxu0 0.0
    %290 = vmatprep.mubr.f32.mxu0 0.0
    %291 = vmatmul.mubr.f32.gmra.mrb[0].mxu0 %v209
    %v292 = vpop.f32.mrb[0].mxu0
    %v293 = vadd.f32 %v186, %v292
    %v294 = vpop.f32.mrb[0].mxu0
    %v295 = vadd.f32 %v188, %v294
    %296 = vmatprep.mubr.f32.mxu0 0.0
    %297 = vmatmul.mubr.f32.gmra.mrb[0].mxu0 %v212
    %v298 = vpop.f32.mrb[0].mxu0
    %v299 = vadd.f32 %v192, %v298
    %v300 = vpop.f32.mrb[0].mxu0
    %v301 = vadd.f32 %v194, %v300
    %302 = vmatprep.mubr.f32.mxu0 0.0
    %303 = vmatmul.mubr.f32.gmra.mrb[0].mxu0 %v215
    %v304 = vpop.f32.mrb[0].mxu0
    %v305 = vadd.f32 %v198, %v304
    %v306 = vpop.f32.mrb[0].mxu0
    %v307 = vadd.f32 %v200, %v306
    %308 = vmatprep.mubr.f32.mxu0 0.0
    %309 = vmatmul.mubr.f32.gmra.mrb[0].mxu0 %v218
    %v310 = vpop.f32.mrb[0].mxu0
    %v311 = vadd.f32 %v204, %v310
    %v312 = vpop.f32.mrb[0].mxu0
    %v313 = vadd.f32 %v206, %v312
    %314 = vdwg.mxu0
    %v315 = vld [vmem:[#allocation2 + $0x2] sm:$0xff]
    %v316 = vld [vmem:[#allocation2 + $0xa] sm:$0xff]
    %v317 = vld [vmem:[#allocation2 + $0x14] sm:$0xff]
    %v318 = vld [vmem:[#allocation2 + $0x1c] sm:$0xff]
    %s319 = scalar_lea.vmem %s1, 96
    %v320 = vld [vmem:[%s319] sm:$0xff]
    %v321 = vld [vmem:[%s319 + $0x8] sm:$0xff]
    %v322 = vld [vmem:[%s319 + $0x10] sm:$0xff]
    %v323 = vld [vmem:[%s319 + $0x18] sm:$0xff]
    %v324 = vld [vmem:[%s319 + $0x20] sm:$0x3]
    %v325 = vld [vmem:[%s319 + $0x28] sm:$0x3]
    %v327 = vsel %vm51, %v315, 0
    %v330 = vsel %vm51, %v316, 0
    %v333 = vsel %vm51, %v317, 0
    %v336 = vsel %vm51, %v318, 0
    %v339 = vsel %vm112, %v324, 0
    %v342 = vsel %vm112, %v325, 0
    %344 = vmatprep.subr.mxu0 %v321
    %345 = vmatpush1.msra.mxu0 %v320
    %346 = vmatprep.subr.mxu0 %v323
    %347 = vmatpush1.msra.mxu0 %v322
    %348 = vmatprep.subr.mxu0 %v342
    %349 = vmatpush1.msra.mxu0 %v339
    %350 = vmatprep.subr.mxu0 0.0
    %351 = vmatpush1.msra.mxu0 0.0
    %352 = vmatprep.subr.mxu0 0.0
    %353 = vmatpush1.msra.mxu0 0.0
    %354 = vmatprep.subr.mxu0 0.0
    %355 = vmatpush1.msra.mxu0 0.0
    %356 = vmatprep.subr.mxu0 0.0
    %357 = vmatpush1.msra.mxu0 0.0
    %358 = vmatprep.subr.mxu0 0.0
    %359 = vmatpush1.msra.mxu0 0.0
    %360 = vmatprep.subr.mxu0 0.0
    %361 = vmatpush1.msra.mxu0 0.0
    %362 = vmatprep.subr.mxu0 0.0
    %363 = vmatpush1.msra.mxu0 0.0
    %364 = vmatprep.subr.mxu0 0.0
    %365 = vmatpush1.msra.mxu0 0.0
    %366 = vmatprep.subr.mxu0 0.0
    %367 = vmatpush1.msra.mxu0 0.0
    %368 = vmatprep.subr.mxu0 0.0
    %369 = vmatpush1.msra.mxu0 0.0
    %370 = vmatprep.subr.mxu0 0.0
    %371 = vmatpush1.msra.mxu0 0.0
    %372 = vmatprep.subr.mxu0 0.0
    %373 = vmatpush1.msra.mxu0 0.0
    %374 = vmatprep.subr.mxu0 0.0
    %375 = vmatpush1.msra.mxu0 0.0
    %376 = vmatprep.subr.mxu0 0.0
    %377 = vmatpush1.msra.mxu0 0.0
    %378 = vmatprep.subr.mxu0 0.0
    %379 = vmatpush1.msra.mxu0 0.0
    %380 = vmatprep.subr.mxu0 0.0
    %381 = vmatpush1.msra.mxu0 0.0
    %382 = vmatprep.subr.mxu0 0.0
    %383 = vmatpush1.msra.mxu0 0.0
    %384 = vmatprep.subr.mxu0 0.0
    %385 = vmatpush1.msra.mxu0 0.0
    %386 = vmatprep.subr.mxu0 0.0
    %387 = vmatpush1.msra.mxu0 0.0
    %388 = vmatprep.subr.mxu0 0.0
    %389 = vmatpush1.msra.mxu0 0.0
    %390 = vmatprep.subr.mxu0 0.0
    %391 = vmatpush1.msra.mxu0 0.0
    %392 = vmatprep.subr.mxu0 0.0
    %393 = vmatpush1.msra.mxu0 0.0
    %394 = vmatprep.subr.mxu0 0.0
    %395 = vmatpush1.msra.mxu0 0.0
    %396 = vmatprep.subr.mxu0 0.0
    %397 = vmatpush1.msra.mxu0 0.0
    %398 = vmatprep.subr.mxu0 0.0
    %399 = vmatpush1.msra.mxu0 0.0
    %400 = vmatprep.subr.mxu0 0.0
    %401 = vmatpush1.msra.mxu0 0.0
    %402 = vmatprep.subr.mxu0 0.0
    %403 = vmatpush1.msra.mxu0 0.0
    %404 = vmatprep.subr.mxu0 0.0
    %405 = vmatpush1.msra.mxu0 0.0
    %406 = vmatprep.subr.mxu0 0.0
    %407 = vmatpush1.msra.mxu0 0.0
    %408 = vmatprep.mubr.f32.mxu0 0.0
    %409 = vmatmul.mubr.f32.gmra.mrb[0].mxu0 %v327
    %v410 = vpop.f32.mrb[0].mxu0
    %v411 = vadd.f32 0.0, %v410
    %v412 = vpop.f32.mrb[0].mxu0
    %v413 = vadd.f32 0.0, %v412
    %414 = vmatprep.mubr.f32.mxu0 0.0
    %415 = vmatmul.mubr.f32.gmra.mrb[0].mxu0 %v330
    %v416 = vpop.f32.mrb[0].mxu0
    %v417 = vadd.f32 0.0, %v416
    %v418 = vpop.f32.mrb[0].mxu0
    %v419 = vadd.f32 0.0, %v418
    %420 = vmatprep.mubr.f32.mxu0 0.0
    %421 = vmatmul.mubr.f32.gmra.mrb[0].mxu0 %v333
    %v422 = vpop.f32.mrb[0].mxu0
    %v423 = vadd.f32 0.0, %v422
    %v424 = vpop.f32.mrb[0].mxu0
    %v425 = vadd.f32 0.0, %v424
    %426 = vmatprep.mubr.f32.mxu0 0.0
    %427 = vmatmul.mubr.f32.gmra.mrb[0].mxu0 %v336
    %v428 = vpop.f32.mrb[0].mxu0
    %v429 = vadd.f32 0.0, %v428
    %v430 = vpop.f32.mrb[0].mxu0
    %v431 = vadd.f32 0.0, %v430
    %432 = vdwg.mxu0
    %v433 = vadd.f32 %v293, %v411
    %v434 = vadd.f32 %v295, %v413
    %v435 = vadd.f32 %v299, %v417
    %v436 = vadd.f32 %v301, %v419
    %v437 = vadd.f32 %v305, %v423
    %v438 = vadd.f32 %v307, %v425
    %v439 = vadd.f32 %v311, %v429
    %v440 = vadd.f32 %v313, %v431
    %v441 = vld [vmem:[%s2] sm:$0x3]
    %v443 = vlaneseq
    %v444 = vshrl.u32 %v443, 7
    %v445 = vsub.s32 0, %v444
    %v446 = vrot.slane %v441, %v445
    %v447 = vlaneseq
    %v448 = vshrl.u32 %v447, 7
    %v449 = vsub.s32 1, %v448
    %v450 = vrot.slane %v441, %v449
    %v453 = vadd.f32 %v433, %v446
    %v454 = vadd.f32 %v434, %v450
    %v455 = vadd.f32 %v435, %v446
    %v456 = vadd.f32 %v436, %v450
    %v457 = vadd.f32 %v437, %v446
    %v458 = vadd.f32 %v438, %v450
    %v459 = vadd.f32 %v439, %v446
    %v460 = vadd.f32 %v440, %v450
    %v461 = vmax.f32 %v453, 0.0
    %v462 = vmax.f32 %v454, 0.0
    %v463 = vmax.f32 %v455, 0.0
    %v464 = vmax.f32 %v456, 0.0
    %v465 = vmax.f32 %v457, 0.0
    %v466 = vmax.f32 %v458, 0.0
    %v467 = vmax.f32 %v459, 0.0
    %v468 = vmax.f32 %v460, 0.0
    %469 = vst [vmem:[#allocation3] sm:$0xff] 0.0
    %470 = vst [vmem:[#allocation3 + $0x8] sm:$0xff] 0.0
    %vm471 = vcmask 261120
    %472 = vst.msk [vmem:[#allocation3 + $0x10] sm:$0xff] %vm471, 0.0
    %473 = vst [vmem:[#allocation3 + $0x18] sm:$0xff] 0.0
    %474 = vst [vmem:[#allocation3 + $0x20] sm:$0xff] 0.0
    %475 = vst.msk [vmem:[#allocation3 + $0x28] sm:$0xff] %vm471, 0.0
    %476 = vst [vmem:[#allocation3 + $0x30] sm:$0xff] 0.0
    %477 = vst [vmem:[#allocation3 + $0x38] sm:$0xff] 0.0
    %478 = vst.msk [vmem:[#allocation3 + $0x40] sm:$0xff] %vm471, 0.0
    %479 = vst [vmem:[#allocation3 + $0x48] sm:$0xff] 0.0
    %480 = vst [vmem:[#allocation3 + $0x50] sm:$0xff] 0.0
    %481 = vst.msk [vmem:[#allocation3 + $0x58] sm:$0xff] %vm471, 0.0
    %482 = vst [vmem:[#allocation3 + $0x60] sm:$0xf] 0.0
    %483 = vst [vmem:[#allocation3 + $0x68] sm:$0xf] 0.0
    %vm484 = vcmask 257024
    %485 = vst.msk [vmem:[#allocation3 + $0x70] sm:$0xf] %vm484, 0.0
    %vm490 = vcmask 1040384
    %v491 = vrot.slane %v461, 7
    %v492 = vrot.slane %v462, 7
    %v493 = vrot.slane %v463, 7
    %v494 = vsel %vm490, %v491, %v493
    %v495 = vrot.slane %v464, 7
    %v496 = vsel %vm490, %v492, %v495
    %497 = vrot.lane.b32.xlu0 %v491, 16
    %v498 = vpop.permute.xlu0 %497
    %499 = vrot.lane.b32.xlu0 %v492, 16
    %v500 = vpop.permute.xlu0 %499
    %501 = vrot.lane.b32.xlu0 %v494, 16
    %v502 = vpop.permute.xlu0 %501
    %503 = vrot.lane.b32.xlu0 %v496, 16
    %v504 = vpop.permute.xlu0 %503
    %505 = vrot.lane.b32.xlu0 %v493, 16
    %v506 = vpop.permute.xlu0 %505
    %507 = vrot.lane.b32.xlu0 %v495, 16
    %v508 = vpop.permute.xlu0 %507
    %vm509 = vcmask 130048
    %v510 = vsel %vm509, %v498, %v500
    %v511 = vsel %vm509, %v502, %v504
    %v512 = vsel %vm509, %v506, %v508
    %vm522 = vcmask 1047681
    %523 = vst.msk [vmem:[#allocation3] sm:$0xfe] %vm522, %v498
    %524 = vst [vmem:[#allocation3 + $0x8] sm:$0xfe] %v510
    %vm525 = vcmask 130049
    %526 = vst.msk [vmem:[#allocation3 + $0x10] sm:$0xfe] %vm525, %v500
    %vm527 = vcmask 1047680
    %528 = vst.msk [vmem:[#allocation3 + $0x18] sm:$0xff] %vm527, %v502
    %529 = vst [vmem:[#allocation3 + $0x20] sm:$0xff] %v511
    %530 = vst.msk [vmem:[#allocation3 + $0x28] sm:$0xff] %vm509, %v504
    %vm531 = vcmask 1040512
    %532 = vst.msk [vmem:[#allocation3 + $0x30] sm:$0x1] %vm531, %v506
    %533 = vst [vmem:[#allocation3 + $0x38] sm:$0x1] %v512
    %vm534 = vcmask 122880
    %535 = vst.msk [vmem:[#allocation3 + $0x40] sm:$0x1] %vm534, %v508
    %vm540 = vcmask 1042432
    %v541 = vrot.slane %v465, 5
    %v542 = vrot.slane %v466, 5
    %v543 = vrot.slane %v467, 5
    %v544 = vsel %vm540, %v541, %v543
    %v545 = vrot.slane %v468, 5
    %v546 = vsel %vm540, %v542, %v545
    %547 = vrot.lane.b32.xlu0 %v541, 16
    %v548 = vpop.permute.xlu0 %547
    %549 = vrot.lane.b32.xlu0 %v542, 16
    %v550 = vpop.permute.xlu0 %549
    %551 = vrot.lane.b32.xlu0 %v544, 16
    %v552 = vpop.permute.xlu0 %551
    %553 = vrot.lane.b32.xlu0 %v546, 16
    %v554 = vpop.permute.xlu0 %553
    %555 = vrot.lane.b32.xlu0 %v543, 16
    %v556 = vpop.permute.xlu0 %555
    %557 = vrot.lane.b32.xlu0 %v545, 16
    %v558 = vpop.permute.xlu0 %557
    %v559 = vsel %vm509, %v548, %v550
    %v560 = vsel %vm509, %v552, %v554
    %v561 = vsel %vm509, %v556, %v558
    %vm571 = vcmask 1047683
    %572 = vst.msk [vmem:[#allocation3 + $0x30] sm:$0xf8] %vm571, %v548
    %573 = vst [vmem:[#allocation3 + $0x38] sm:$0xf8] %v559
    %vm574 = vcmask 130051
    %575 = vst.msk [vmem:[#allocation3 + $0x40] sm:$0xf8] %vm574, %v550
    %576 = vst.msk [vmem:[#allocation3 + $0x48] sm:$0xff] %vm527, %v552
    %577 = vst [vmem:[#allocation3 + $0x50] sm:$0xff] %v560
    %578 = vst.msk [vmem:[#allocation3 + $0x58] sm:$0xff] %vm509, %v554
    %vm579 = vcmask 1042560
    %580 = vst.msk [vmem:[#allocation3 + $0x60] sm:$0x7] %vm579, %v556
    %581 = vst [vmem:[#allocation3 + $0x68] sm:$0x7] %v561
    %vm582 = vcmask 124928
    %583 = vst.msk [vmem:[#allocation3 + $0x70] sm:$0x7] %vm582, %v558
    %v584 = vld [vmem:[#allocation3] sm:$0xff]
    %v585 = vld [vmem:[#allocation3 + $0x8] sm:$0xff]
    %v586 = vld [vmem:[#allocation3 + $0x10] sm:$0xff]
    %v587 = vld [vmem:[#allocation3 + $0x18] sm:$0xff]
    %v588 = vld [vmem:[#allocation3 + $0x20] sm:$0xff]
    %v589 = vld [vmem:[#allocation3 + $0x28] sm:$0xff]
    %v590 = vld [vmem:[#allocation3 + $0x30] sm:$0xfc]
    %v591 = vld [vmem:[#allocation3 + $0x38] sm:$0xfc]
    %v592 = vld [vmem:[#allocation3 + $0x40] sm:$0xfc]
    %v593 = vld [vmem:[#allocation3 + $0x48] sm:$0xff]
    %v594 = vld [vmem:[#allocation3 + $0x50] sm:$0xff]
    %v595 = vld [vmem:[#allocation3 + $0x58] sm:$0xff]
    %v596 = vld [vmem:[#allocation3 + $0x60] sm:$0x3]
    %v597 = vld [vmem:[#allocation3 + $0x68] sm:$0x3]
    %v598 = vld [vmem:[#allocation3 + $0x70] sm:$0x3]
    %vm608 = vcmask 1045504
    %v609 = vrot.slane %v590, 2
    %v610 = vrot.slane %v593, 2
    %v611 = vsel %vm608, %v609, %v610
    %v612 = vrot.slane %v591, 2
    %v613 = vrot.slane %v594, 2
    %v614 = vsel %vm608, %v612, %v613
    %v615 = vrot.slane %v592, 2
    %v616 = vrot.slane %v595, 2
    %v617 = vsel %vm608, %v615, %v616
    %v618 = vrot.slane %v596, 2
    %v619 = vsel %vm608, %v610, %v618
    %v620 = vrot.slane %v597, 2
    %v621 = vsel %vm608, %v613, %v620
    %v622 = vrot.slane %v598, 2
    %v623 = vsel %vm608, %v616, %v622
    %v628 = vld [vmem:[#allocation6] sm:$0xff]
    %v629 = vld [vmem:[#allocation6 + $0x8] sm:$0xff]
    %v630 = vld [vmem:[#allocation6 + $0x10] sm:$0xff]
    %v631 = vld [vmem:[#allocation6 + $0x18] sm:$0xff]
    %v632 = vld [vmem:[#allocation6 + $0x20] sm:$0xff]
    %v633 = vld [vmem:[#allocation6 + $0x28] sm:$0xff]
    %v634 = vld [vmem:[#allocation6 + $0x30] sm:$0xff]
    %v635 = vld [vmem:[#allocation6 + $0x38] sm:$0xff]
    %v636 = vld [vmem:[#allocation6 + $0x40] sm:$0xff]
    %v637 = vld [vmem:[#allocation6 + $0x48] sm:$0xff]
    %v638 = vld [vmem:[#allocation6 + $0x50] sm:$0xff]
    %v639 = vld [vmem:[#allocation6 + $0x58] sm:$0xff]
    %v640 = vld [vmem:[#allocation6 + $0x60] sm:$0xff]
    %v641 = vld [vmem:[#allocation6 + $0x68] sm:$0xff]
    %v642 = vld [vmem:[#allocation6 + $0x70] sm:$0xff]
    %v643 = vld [vmem:[#allocation6 + $0x78] sm:$0xff]
    %v644 = vld [vmem:[#allocation6 + $0x80] sm:$0xff]
    %v645 = vld [vmem:[#allocation6 + $0x88] sm:$0xff]
    %v646 = vld [vmem:[#allocation6 + $0x90] sm:$0xff]
    %v647 = vld [vmem:[#allocation6 + $0x98] sm:$0xff]
    %v648 = vld [vmem:[#allocation6 + $0xa0] sm:$0xff]
    %v649 = vld [vmem:[#allocation6 + $0xa8] sm:$0xff]
    %v650 = vld [vmem:[#allocation6 + $0xb0] sm:$0xff]
    %v651 = vld [vmem:[#allocation6 + $0xb8] sm:$0xff]
    %v652 = vld [vmem:[#allocation6 + $0xc0] sm:$0xff]
    %v653 = vld [vmem:[#allocation6 + $0xc8] sm:$0xff]
    %v654 = vld [vmem:[#allocation6 + $0xd0] sm:$0xff]
    %v655 = vld [vmem:[#allocation6 + $0xd8] sm:$0xff]
    %v656 = vld [vmem:[#allocation6 + $0xe0] sm:$0xff]
    %v657 = vld [vmem:[#allocation6 + $0xe8] sm:$0xff]
    %v658 = vld [vmem:[#allocation6 + $0xf0] sm:$0xff]
    %v659 = vld [vmem:[#allocation6 + $0xf8] sm:$0xff]
    %v660 = vld [vmem:[#allocation6 + $0x100] sm:$0xff]
    %v661 = vld [vmem:[#allocation6 + $0x108] sm:$0xff]
    %v662 = vld [vmem:[#allocation6 + $0x110] sm:$0xff]
    %v663 = vld [vmem:[#allocation6 + $0x118] sm:$0xff]
    %v664 = vld [vmem:[#allocation3] sm:$0xfe]
    %v665 = vld [vmem:[#allocation3 + $0x8] sm:$0xfe]
    %v666 = vld [vmem:[#allocation3 + $0x10] sm:$0xfe]
    %v667 = vld [vmem:[#allocation3 + $0x30] sm:$0x1]
    %v668 = vld [vmem:[#allocation3 + $0x38] sm:$0x1]
    %v669 = vld [vmem:[#allocation3 + $0x40] sm:$0x1]
    %v670 = vld [vmem:[#allocation3 + $0x30] sm:$0xf8]
    %v671 = vld [vmem:[#allocation3 + $0x38] sm:$0xf8]
    %v672 = vld [vmem:[#allocation3 + $0x40] sm:$0xf8]
    %v673 = vld [vmem:[#allocation3 + $0x60] sm:$0x7]
    %v674 = vld [vmem:[#allocation3 + $0x68] sm:$0x7]
    %v675 = vld [vmem:[#allocation3 + $0x70] sm:$0x7]
    %vm685 = vcmask 1046528
    %v686 = vrot.slane %v664, 1
    %v687 = vrot.slane %v587, 1
    %v688 = vsel %vm685, %v686, %v687
    %v689 = vrot.slane %v665, 1
    %v690 = vrot.slane %v588, 1
    %v691 = vsel %vm685, %v689, %v690
    %v692 = vrot.slane %v666, 1
    %v693 = vrot.slane %v589, 1
    %v694 = vsel %vm685, %v692, %v693
    %v695 = vrot.slane %v667, 1
    %v696 = vsel %vm685, %v687, %v695
    %v697 = vrot.slane %v668, 1
    %v698 = vsel %vm685, %v690, %v697
    %v699 = vrot.slane %v669, 1
    %v700 = vsel %vm685, %v693, %v699
    %vm711 = vcmask 1044480
    %v712 = vrot.slane %v670, 3
    %v713 = vrot.slane %v593, 3
    %v714 = vsel %vm711, %v712, %v713
    %v715 = vrot.slane %v671, 3
    %v716 = vrot.slane %v594, 3
    %v717 = vsel %vm711, %v715, %v716
    %v718 = vrot.slane %v672, 3
    %v719 = vrot.slane %v595, 3
    %v720 = vsel %vm711, %v718, %v719
    %v721 = vrot.slane %v673, 3
    %v722 = vsel %vm711, %v713, %v721
    %v723 = vrot.slane %v674, 3
    %v724 = vsel %vm711, %v716, %v723
    %v725 = vrot.slane %v675, 3
    %v726 = vsel %vm711, %v719, %v725
    %s731 = scalar_lea.vmem [#allocation6], 288
    %v732 = vld [vmem:[%s731] sm:$0xff]
    %v733 = vld [vmem:[%s731 + $0x8] sm:$0xff]
    %v734 = vld [vmem:[%s731 + $0x10] sm:$0xff]
    %v735 = vld [vmem:[%s731 + $0x18] sm:$0xff]
    %v736 = vld [vmem:[%s731 + $0x20] sm:$0xff]
    %v737 = vld [vmem:[%s731 + $0x28] sm:$0xff]
    %v738 = vld [vmem:[%s731 + $0x30] sm:$0xff]
    %v739 = vld [vmem:[%s731 + $0x38] sm:$0xff]
    %v740 = vld [vmem:[%s731 + $0x40] sm:$0xff]
    %v741 = vld [vmem:[%s731 + $0x48] sm:$0xff]
    %v742 = vld [vmem:[%s731 + $0x50] sm:$0xff]
    %v743 = vld [vmem:[%s731 + $0x58] sm:$0xff]
    %v744 = vld [vmem:[%s731 + $0x60] sm:$0xff]
    %v745 = vld [vmem:[%s731 + $0x68] sm:$0xff]
    %v746 = vld [vmem:[%s731 + $0x70] sm:$0xff]
    %v747 = vld [vmem:[%s731 + $0x78] sm:$0xff]
    %v748 = vld [vmem:[%s731 + $0x80] sm:$0xff]
    %v749 = vld [vmem:[%s731 + $0x88] sm:$0xff]
    %v750 = vld [vmem:[%s731 + $0x90] sm:$0xff]
    %v751 = vld [vmem:[%s731 + $0x98] sm:$0xff]
    %v752 = vld [vmem:[%s731 + $0xa0] sm:$0xff]
    %v753 = vld [vmem:[%s731 + $0xa8] sm:$0xff]
    %v754 = vld [vmem:[%s731 + $0xb0] sm:$0xff]
    %v755 = vld [vmem:[%s731 + $0xb8] sm:$0xff]
    %v756 = vld [vmem:[%s731 + $0xc0] sm:$0xff]
    %v757 = vld [vmem:[%s731 + $0xc8] sm:$0xff]
    %v758 = vld [vmem:[%s731 + $0xd0] sm:$0xff]
    %v759 = vld [vmem:[%s731 + $0xd8] sm:$0xff]
    %v760 = vld [vmem:[%s731 + $0xe0] sm:$0xff]
    %v761 = vld [vmem:[%s731 + $0xe8] sm:$0xff]
    %v762 = vld [vmem:[%s731 + $0xf0] sm:$0xff]
    %v763 = vld [vmem:[%s731 + $0xf8] sm:$0xff]
    %v764 = vld [vmem:[%s731 + $0x100] sm:$0xff]
    %v765 = vld [vmem:[%s731 + $0x108] sm:$0xff]
    %v766 = vld [vmem:[%s731 + $0x110] sm:$0xff]
    %v767 = vld [vmem:[%s731 + $0x118] sm:$0xff]
    %v768 = vsel %vm471, %v694, 0
    %v770 = vsel %vm471, %v700, 0
    %v772 = vsel %vm471, %v720, 0
    %v774 = vsel %vm471, %v726, 0
    %776 = vmatprep.subr.mxu0 0.0
    %777 = vmatpush1.msra.mxu0 %v732
    %778 = vmatprep.subr.mxu0 0.0
    %779 = vmatpush1.msra.mxu0 %v733
    %780 = vmatprep.subr.mxu0 0.0
    %781 = vmatpush1.msra.mxu0 %v734
    %782 = vmatprep.subr.mxu0 0.0
    %783 = vmatpush1.msra.mxu0 %v735
    %784 = vmatprep.subr.mxu0 0.0
    %785 = vmatpush1.msra.mxu0 %v736
    %786 = vmatprep.subr.mxu0 0.0
    %787 = vmatpush1.msra.mxu0 %v737
    %788 = vmatprep.subr.mxu0 0.0
    %789 = vmatpush1.msra.mxu0 %v738
    %790 = vmatprep.subr.mxu0 0.0
    %791 = vmatpush1.msra.mxu0 %v739
    %792 = vmatprep.subr.mxu0 0.0
    %793 = vmatpush1.msra.mxu0 %v740
    %794 = vmatprep.subr.mxu0 0.0
    %795 = vmatpush1.msra.mxu0 %v741
    %796 = vmatprep.subr.mxu0 0.0
    %797 = vmatpush1.msra.mxu0 %v742
    %798 = vmatprep.subr.mxu0 0.0
    %799 = vmatpush1.msra.mxu0 %v743
    %800 = vmatprep.subr.mxu0 0.0
    %801 = vmatpush1.msra.mxu0 %v744
    %802 = vmatprep.subr.mxu0 0.0
    %803 = vmatpush1.msra.mxu0 %v745
    %804 = vmatprep.subr.mxu0 0.0
    %805 = vmatpush1.msra.mxu0 %v746
    %806 = vmatprep.subr.mxu0 0.0
    %807 = vmatpush1.msra.mxu0 %v747
    %808 = vmatprep.subr.mxu0 0.0
    %809 = vmatpush1.msra.mxu0 %v748
    %810 = vmatprep.subr.mxu0 0.0
    %811 = vmatpush1.msra.mxu0 %v749
    %812 = vmatprep.subr.mxu0 0.0
    %813 = vmatpush1.msra.mxu0 %v750
    %814 = vmatprep.subr.mxu0 0.0
    %815 = vmatpush1.msra.mxu0 %v751
    %816 = vmatprep.subr.mxu0 0.0
    %817 = vmatpush1.msra.mxu0 %v752
    %818 = vmatprep.subr.mxu0 0.0
    %819 = vmatpush1.msra.mxu0 %v753
    %820 = vmatprep.subr.mxu0 0.0
    %821 = vmatpush1.msra.mxu0 %v754
    %822 = vmatprep.subr.mxu0 0.0
    %823 = vmatpush1.msra.mxu0 %v755
    %824 = vmatprep.subr.mxu0 0.0
    %825 = vmatpush1.msra.mxu0 %v756
    %826 = vmatprep.subr.mxu0 0.0
    %827 = vmatpush1.msra.mxu0 %v757
    %828 = vmatprep.subr.mxu0 0.0
    %829 = vmatpush1.msra.mxu0 %v758
    %830 = vmatprep.subr.mxu0 0.0
    %831 = vmatpush1.msra.mxu0 %v759
    %832 = vmatprep.subr.mxu0 0.0
    %833 = vmatpush1.msra.mxu0 %v760
    %834 = vmatprep.subr.mxu0 0.0
    %835 = vmatpush1.msra.mxu0 %v761
    %836 = vmatprep.subr.mxu0 0.0
    %837 = vmatpush1.msra.mxu0 %v762
    %838 = vmatprep.subr.mxu0 0.0
    %839 = vmatpush1.msra.mxu0 %v763
    %840 = vmatprep.mubr.f32.mxu0 %v691
    %841 = vmatmul.mubr.f32.gmra.mrb[0].mxu0 %v688
    %v842 = vpop.f32.mrb[0].mxu0
    %v843 = vadd.f32 0.0, %v842
    %v844 = vpop.f32.mrb[0].mxu0
    %845 = vmatprep.mubr.f32.mxu0 %v698
    %846 = vmatmul.mubr.f32.gmra.mrb[0].mxu0 %v696
    %v847 = vpop.f32.mrb[0].mxu0
    %v848 = vadd.f32 0.0, %v847
    %v849 = vpop.f32.mrb[0].mxu0
    %850 = vmatprep.mubr.f32.mxu0 %v717
    %851 = vmatmul.mubr.f32.gmra.mrb[0].mxu0 %v714
    %v852 = vpop.f32.mrb[0].mxu0
    %v853 = vadd.f32 0.0, %v852
    %v854 = vpop.f32.mrb[0].mxu0
    %855 = vmatprep.mubr.f32.mxu0 %v724
    %856 = vmatmul.mubr.f32.gmra.mrb[0].mxu0 %v722
    %v857 = vpop.f32.mrb[0].mxu0
    %v858 = vadd.f32 0.0, %v857
    %v859 = vpop.f32.mrb[0].mxu0
    %860 = vdwg.mxu0
    %861 = vmatprep.subr.mxu0 0.0
    %862 = vmatpush1.msra.mxu0 %v764
    %863 = vmatprep.subr.mxu0 0.0
    %864 = vmatpush1.msra.mxu0 %v765
    %865 = vmatprep.subr.mxu0 0.0
    %866 = vmatpush1.msra.mxu0 %v766
    %867 = vmatprep.subr.mxu0 0.0
    %868 = vmatpush1.msra.mxu0 %v767
    %869 = vmatprep.subr.mxu0 0.0
    %870 = vmatpush1.msra.mxu0 0.0
    %871 = vmatprep.subr.mxu0 0.0
    %872 = vmatpush1.msra.mxu0 0.0
    %873 = vmatprep.subr.mxu0 0.0
    %874 = vmatpush1.msra.mxu0 0.0
    %875 = vmatprep.subr.mxu0 0.0
    %876 = vmatpush1.msra.mxu0 0.0
    %877 = vmatprep.subr.mxu0 0.0
    %878 = vmatpush1.msra.mxu0 0.0
    %879 = vmatprep.subr.mxu0 0.0
    %880 = vmatpush1.msra.mxu0 0.0
    %881 = vmatprep.subr.mxu0 0.0
    %882 = vmatpush1.msra.mxu0 0.0
    %883 = vmatprep.subr.mxu0 0.0
    %884 = vmatpush1.msra.mxu0 0.0
    %885 = vmatprep.subr.mxu0 0.0
    %886 = vmatpush1.msra.mxu0 0.0
    %887 = vmatprep.subr.mxu0 0.0
    %888 = vmatpush1.msra.mxu0 0.0
    %889 = vmatprep.subr.mxu0 0.0
    %890 = vmatpush1.msra.mxu0 0.0
    %891 = vmatprep.subr.mxu0 0.0
    %892 = vmatpush1.msra.mxu0 0.0
    %893 = vmatprep.subr.mxu0 0.0
    %894 = vmatpush1.msra.mxu0 0.0
    %895 = vmatprep.subr.mxu0 0.0
    %896 = vmatpush1.msra.mxu0 0.0
    %897 = vmatprep.subr.mxu0 0.0
    %898 = vmatpush1.msra.mxu0 0.0
    %899 = vmatprep.subr.mxu0 0.0
    %900 = vmatpush1.msra.mxu0 0.0
    %901 = vmatprep.subr.mxu0 0.0
    %902 = vmatpush1.msra.mxu0 0.0
    %903 = vmatprep.subr.mxu0 0.0
    %904 = vmatpush1.msra.mxu0 0.0
    %905 = vmatprep.subr.mxu0 0.0
    %906 = vmatpush1.msra.mxu0 0.0
    %907 = vmatprep.subr.mxu0 0.0
    %908 = vmatpush1.msra.mxu0 0.0
    %909 = vmatprep.subr.mxu0 0.0
    %910 = vmatpush1.msra.mxu0 0.0
    %911 = vmatprep.subr.mxu0 0.0
    %912 = vmatpush1.msra.mxu0 0.0
    %913 = vmatprep.subr.mxu0 0.0
    %914 = vmatpush1.msra.mxu0 0.0
    %915 = vmatprep.subr.mxu0 0.0
    %916 = vmatpush1.msra.mxu0 0.0
    %917 = vmatprep.subr.mxu0 0.0
    %918 = vmatpush1.msra.mxu0 0.0
    %919 = vmatprep.subr.mxu0 0.0
    %920 = vmatpush1.msra.mxu0 0.0
    %921 = vmatprep.subr.mxu0 0.0
    %922 = vmatpush1.msra.mxu0 0.0
    %923 = vmatprep.subr.mxu0 0.0
    %924 = vmatpush1.msra.mxu0 0.0
    %925 = vmatprep.mubr.f32.mxu0 0.0
    %926 = vmatmul.mubr.f32.gmra.mrb[0].mxu0 %v768
    %v927 = vpop.f32.mrb[0].mxu0
    %v928 = vadd.f32 %v843, %v927
    %v929 = vpop.f32.mrb[0].mxu0
    %930 = vmatprep.mubr.f32.mxu0 0.0
    %931 = vmatmul.mubr.f32.gmra.mrb[0].mxu0 %v770
    %v932 = vpop.f32.mrb[0].mxu0
    %v933 = vadd.f32 %v848, %v932
    %v934 = vpop.f32.mrb[0].mxu0
    %935 = vmatprep.mubr.f32.mxu0 0.0
    %936 = vmatmul.mubr.f32.gmra.mrb[0].mxu0 %v772
    %v937 = vpop.f32.mrb[0].mxu0
    %v938 = vadd.f32 %v853, %v937
    %v939 = vpop.f32.mrb[0].mxu0
    %940 = vmatprep.mubr.f32.mxu0 0.0
    %941 = vmatmul.mubr.f32.gmra.mrb[0].mxu0 %v774
    %v942 = vpop.f32.mrb[0].mxu0
    %v943 = vadd.f32 %v858, %v942
    %v944 = vpop.f32.mrb[0].mxu0
    %945 = vdwg.mxu0
    %v947 = vsel %vm471, %v586, 0
    %v949 = vsel %vm471, %v589, 0
    %v951 = vsel %vm471, %v617, 0
    %v953 = vsel %vm471, %v623, 0
    %955 = vmatprep.subr.mxu0 0.0
    %956 = vmatpush1.msra.mxu0 %v628
    %957 = vmatprep.subr.mxu0 0.0
    %958 = vmatpush1.msra.mxu0 %v629
    %959 = vmatprep.subr.mxu0 0.0
    %960 = vmatpush1.msra.mxu0 %v630
    %961 = vmatprep.subr.mxu0 0.0
    %962 = vmatpush1.msra.mxu0 %v631
    %963 = vmatprep.subr.mxu0 0.0
    %964 = vmatpush1.msra.mxu0 %v632
    %965 = vmatprep.subr.mxu0 0.0
    %966 = vmatpush1.msra.mxu0 %v633
    %967 = vmatprep.subr.mxu0 0.0
    %968 = vmatpush1.msra.mxu0 %v634
    %969 = vmatprep.subr.mxu0 0.0
    %970 = vmatpush1.msra.mxu0 %v635
    %971 = vmatprep.subr.mxu0 0.0
    %972 = vmatpush1.msra.mxu0 %v636
    %973 = vmatprep.subr.mxu0 0.0
    %974 = vmatpush1.msra.mxu0 %v637
    %975 = vmatprep.subr.mxu0 0.0
    %976 = vmatpush1.msra.mxu0 %v638
    %977 = vmatprep.subr.mxu0 0.0
    %978 = vmatpush1.msra.mxu0 %v639
    %979 = vmatprep.subr.mxu0 0.0
    %980 = vmatpush1.msra.mxu0 %v640
    %981 = vmatprep.subr.mxu0 0.0
    %982 = vmatpush1.msra.mxu0 %v641
    %983 = vmatprep.subr.mxu0 0.0
    %984 = vmatpush1.msra.mxu0 %v642
    %985 = vmatprep.subr.mxu0 0.0
    %986 = vmatpush1.msra.mxu0 %v643
    %987 = vmatprep.subr.mxu0 0.0
    %988 = vmatpush1.msra.mxu0 %v644
    %989 = vmatprep.subr.mxu0 0.0
    %990 = vmatpush1.msra.mxu0 %v645
    %991 = vmatprep.subr.mxu0 0.0
    %992 = vmatpush1.msra.mxu0 %v646
    %993 = vmatprep.subr.mxu0 0.0
    %994 = vmatpush1.msra.mxu0 %v647
    %995 = vmatprep.subr.mxu0 0.0
    %996 = vmatpush1.msra.mxu0 %v648
    %997 = vmatprep.subr.mxu0 0.0
    %998 = vmatpush1.msra.mxu0 %v649
    %999 = vmatprep.subr.mxu0 0.0
    %1000 = vmatpush1.msra.mxu0 %v650
    %1001 = vmatprep.subr.mxu0 0.0
    %1002 = vmatpush1.msra.mxu0 %v651
    %1003 = vmatprep.subr.mxu0 0.0
    %1004 = vmatpush1.msra.mxu0 %v652
    %1005 = vmatprep.subr.mxu0 0.0
    %1006 = vmatpush1.msra.mxu0 %v653
    %1007 = vmatprep.subr.mxu0 0.0
    %1008 = vmatpush1.msra.mxu0 %v654
    %1009 = vmatprep.subr.mxu0 0.0
    %1010 = vmatpush1.msra.mxu0 %v655
    %1011 = vmatprep.subr.mxu0 0.0
    %1012 = vmatpush1.msra.mxu0 %v656
    %1013 = vmatprep.subr.mxu0 0.0
    %1014 = vmatpush1.msra.mxu0 %v657
    %1015 = vmatprep.subr.mxu0 0.0
    %1016 = vmatpush1.msra.mxu0 %v658
    %1017 = vmatprep.subr.mxu0 0.0
    %1018 = vmatpush1.msra.mxu0 %v659
    %1019 = vmatprep.mubr.f32.mxu0 %v585
    %1020 = vmatmul.mubr.f32.gmra.mrb[0].mxu0 %v584
    %v1021 = vpop.f32.mrb[0].mxu0
    %v1022 = vadd.f32 %v928, %v1021
    %v1023 = vpop.f32.mrb[0].mxu0
    %1024 = vmatprep.mubr.f32.mxu0 %v588
    %1025 = vmatmul.mubr.f32.gmra.mrb[0].mxu0 %v587
    %v1026 = vpop.f32.mrb[0].mxu0
    %v1027 = vadd.f32 %v933, %v1026
    %v1028 = vpop.f32.mrb[0].mxu0
    %1029 = vmatprep.mubr.f32.mxu0 %v614
    %1030 = vmatmul.mubr.f32.gmra.mrb[0].mxu0 %v611
    %v1031 = vpop.f32.mrb[0].mxu0
    %v1032 = vadd.f32 %v938, %v1031
    %v1033 = vpop.f32.mrb[0].mxu0
    %1034 = vmatprep.mubr.f32.mxu0 %v621
    %1035 = vmatmul.mubr.f32.gmra.mrb[0].mxu0 %v619
    %v1036 = vpop.f32.mrb[0].mxu0
    %v1037 = vadd.f32 %v943, %v1036
    %v1038 = vpop.f32.mrb[0].mxu0
    %1039 = vdwg.mxu0
    %1040 = vmatprep.subr.mxu0 0.0
    %1041 = vmatpush1.msra.mxu0 %v660
    %1042 = vmatprep.subr.mxu0 0.0
    %1043 = vmatpush1.msra.mxu0 %v661
    %1044 = vmatprep.subr.mxu0 0.0
    %1045 = vmatpush1.msra.mxu0 %v662
    %1046 = vmatprep.subr.mxu0 0.0
    %1047 = vmatpush1.msra.mxu0 %v663
    %1048 = vmatprep.subr.mxu0 0.0
    %1049 = vmatpush1.msra.mxu0 0.0
    %1050 = vmatprep.subr.mxu0 0.0
    %1051 = vmatpush1.msra.mxu0 0.0
    %1052 = vmatprep.subr.mxu0 0.0
    %1053 = vmatpush1.msra.mxu0 0.0
    %1054 = vmatprep.subr.mxu0 0.0
    %1055 = vmatpush1.msra.mxu0 0.0
    %1056 = vmatprep.subr.mxu0 0.0
    %1057 = vmatpush1.msra.mxu0 0.0
    %1058 = vmatprep.subr.mxu0 0.0
    %1059 = vmatpush1.msra.mxu0 0.0
    %1060 = vmatprep.subr.mxu0 0.0
    %1061 = vmatpush1.msra.mxu0 0.0
    %1062 = vmatprep.subr.mxu0 0.0
    %1063 = vmatpush1.msra.mxu0 0.0
    %1064 = vmatprep.subr.mxu0 0.0
    %1065 = vmatpush1.msra.mxu0 0.0
    %1066 = vmatprep.subr.mxu0 0.0
    %1067 = vmatpush1.msra.mxu0 0.0
    %1068 = vmatprep.subr.mxu0 0.0
    %1069 = vmatpush1.msra.mxu0 0.0
    %1070 = vmatprep.subr.mxu0 0.0
    %1071 = vmatpush1.msra.mxu0 0.0
    %1072 = vmatprep.subr.mxu0 0.0
    %1073 = vmatpush1.msra.mxu0 0.0
    %1074 = vmatprep.subr.mxu0 0.0
    %1075 = vmatpush1.msra.mxu0 0.0
    %1076 = vmatprep.subr.mxu0 0.0
    %1077 = vmatpush1.msra.mxu0 0.0
    %1078 = vmatprep.subr.mxu0 0.0
    %1079 = vmatpush1.msra.mxu0 0.0
    %1080 = vmatprep.subr.mxu0 0.0
    %1081 = vmatpush1.msra.mxu0 0.0
    %1082 = vmatprep.subr.mxu0 0.0
    %1083 = vmatpush1.msra.mxu0 0.0
    %1084 = vmatprep.subr.mxu0 0.0
    %1085 = vmatpush1.msra.mxu0 0.0
    %1086 = vmatprep.subr.mxu0 0.0
    %1087 = vmatpush1.msra.mxu0 0.0
    %1088 = vmatprep.subr.mxu0 0.0
    %1089 = vmatpush1.msra.mxu0 0.0
    %1090 = vmatprep.subr.mxu0 0.0
    %1091 = vmatpush1.msra.mxu0 0.0
    %1092 = vmatprep.subr.mxu0 0.0
    %1093 = vmatpush1.msra.mxu0 0.0
    %1094 = vmatprep.subr.mxu0 0.0
    %1095 = vmatpush1.msra.mxu0 0.0
    %1096 = vmatprep.subr.mxu0 0.0
    %1097 = vmatpush1.msra.mxu0 0.0
    %1098 = vmatprep.subr.mxu0 0.0
    %1099 = vmatpush1.msra.mxu0 0.0
    %1100 = vmatprep.subr.mxu0 0.0
    %1101 = vmatpush1.msra.mxu0 0.0
    %1102 = vmatprep.subr.mxu0 0.0
    %1103 = vmatpush1.msra.mxu0 0.0
    %1104 = vmatprep.mubr.f32.mxu0 0.0
    %1105 = vmatmul.mubr.f32.gmra.mrb[0].mxu0 %v947
    %v1106 = vpop.f32.mrb[0].mxu0
    %v1107 = vadd.f32 %v1022, %v1106
    %v1108 = vpop.f32.mrb[0].mxu0
    %1109 = vmatprep.mubr.f32.mxu0 0.0
    %1110 = vmatmul.mubr.f32.gmra.mrb[0].mxu0 %v949
    %v1111 = vpop.f32.mrb[0].mxu0
    %v1112 = vadd.f32 %v1027, %v1111
    %v1113 = vpop.f32.mrb[0].mxu0
    %1114 = vmatprep.mubr.f32.mxu0 0.0
    %1115 = vmatmul.mubr.f32.gmra.mrb[0].mxu0 %v951
    %v1116 = vpop.f32.mrb[0].mxu0
    %v1117 = vadd.f32 %v1032, %v1116
    %v1118 = vpop.f32.mrb[0].mxu0
    %1119 = vmatprep.mubr.f32.mxu0 0.0
    %1120 = vmatmul.mubr.f32.gmra.mrb[0].mxu0 %v953
    %v1121 = vpop.f32.mrb[0].mxu0
    %v1122 = vadd.f32 %v1037, %v1121
    %v1123 = vpop.f32.mrb[0].mxu0
    %1124 = vdwg.mxu0
    %v1125 = vld [vmem:[#allocation3] sm:$0xfc]
    %v1126 = vld [vmem:[#allocation3 + $0x8] sm:$0xfc]
    %v1127 = vld [vmem:[#allocation3 + $0x10] sm:$0xfc]
    %v1128 = vld [vmem:[#allocation3 + $0x30] sm:$0x3]
    %v1129 = vld [vmem:[#allocation3 + $0x38] sm:$0x3]
    %v1130 = vld [vmem:[#allocation3 + $0x40] sm:$0x3]
    %v1131 = vld [vmem:[#allocation3 + $0x30] sm:$0xf0]
    %v1132 = vld [vmem:[#allocation3 + $0x38] sm:$0xf0]
    %v1133 = vld [vmem:[#allocation3 + $0x40] sm:$0xf0]
    %v1134 = vld [vmem:[#allocation3 + $0x60] sm:$0xf]
    %v1135 = vld [vmem:[#allocation3 + $0x68] sm:$0xf]
    %v1136 = vld [vmem:[#allocation3 + $0x70] sm:$0xf]
    %v1143 = vrot.slane %v1125, 2
    %v1144 = vrot.slane %v587, 2
    %v1145 = vsel %vm608, %v1143, %v1144
    %v1146 = vrot.slane %v1126, 2
    %v1147 = vrot.slane %v588, 2
    %v1148 = vsel %vm608, %v1146, %v1147
    %v1149 = vrot.slane %v1127, 2
    %v1150 = vrot.slane %v589, 2
    %v1151 = vsel %vm608, %v1149, %v1150
    %v1152 = vrot.slane %v1128, 2
    %v1153 = vsel %vm608, %v1144, %v1152
    %v1154 = vrot.slane %v1129, 2
    %v1155 = vsel %vm608, %v1147, %v1154
    %v1156 = vrot.slane %v1130, 2
    %v1157 = vsel %vm608, %v1150, %v1156
    %vm1168 = vcmask 1043456
    %v1169 = vrot.slane %v1131, 4
    %v1170 = vrot.slane %v593, 4
    %v1171 = vsel %vm1168, %v1169, %v1170
    %v1172 = vrot.slane %v1132, 4
    %v1173 = vrot.slane %v594, 4
    %v1174 = vsel %vm1168, %v1172, %v1173
    %v1175 = vrot.slane %v1133, 4
    %v1176 = vrot.slane %v595, 4
    %v1177 = vsel %vm1168, %v1175, %v1176
    %v1178 = vrot.slane %v1134, 4
    %v1179 = vsel %vm1168, %v1170, %v1178
    %v1180 = vrot.slane %v1135, 4
    %v1181 = vsel %vm1168, %v1173, %v1180
    %v1182 = vrot.slane %v1136, 4
    %v1183 = vsel %vm1168, %v1176, %v1182
    %s1188 = scalar_lea.vmem [#allocation6], 576
    %v1189 = vld [vmem:[%s1188] sm:$0xff]
    %v1190 = vld [vmem:[%s1188 + $0x8] sm:$0xff]
    %v1191 = vld [vmem:[%s1188 + $0x10] sm:$0xff]
    %v1192 = vld [vmem:[%s1188 + $0x18] sm:$0xff]
    %v1193 = vld [vmem:[%s1188 + $0x20] sm:$0xff]
    %v1194 = vld [vmem:[%s1188 + $0x28] sm:$0xff]
    %v1195 = vld [vmem:[%s1188 + $0x30] sm:$0xff]
    %v1196 = vld [vmem:[%s1188 + $0x38] sm:$0xff]
    %v1197 = vld [vmem:[%s1188 + $0x40] sm:$0xff]
    %v1198 = vld [vmem:[%s1188 + $0x48] sm:$0xff]
    %v1199 = vld [vmem:[%s1188 + $0x50] sm:$0xff]
    %v1200 = vld [vmem:[%s1188 + $0x58] sm:$0xff]
    %v1201 = vld [vmem:[%s1188 + $0x60] sm:$0xff]
    %v1202 = vld [vmem:[%s1188 + $0x68] sm:$0xff]
    %v1203 = vld [vmem:[%s1188 + $0x70] sm:$0xff]
    %v1204 = vld [vmem:[%s1188 + $0x78] sm:$0xff]
    %v1205 = vld [vmem:[%s1188 + $0x80] sm:$0xff]
    %v1206 = vld [vmem:[%s1188 + $0x88] sm:$0xff]
    %v1207 = vld [vmem:[%s1188 + $0x90] sm:$0xff]
    %v1208 = vld [vmem:[%s1188 + $0x98] sm:$0xff]
    %v1209 = vld [vmem:[%s1188 + $0xa0] sm:$0xff]
    %v1210 = vld [vmem:[%s1188 + $0xa8] sm:$0xff]
    %v1211 = vld [vmem:[%s1188 + $0xb0] sm:$0xff]
    %v1212 = vld [vmem:[%s1188 + $0xb8] sm:$0xff]
    %v1213 = vld [vmem:[%s1188 + $0xc0] sm:$0xff]
    %v1214 = vld [vmem:[%s1188 + $0xc8] sm:$0xff]
    %v1215 = vld [vmem:[%s1188 + $0xd0] sm:$0xff]
    %v1216 = vld [vmem:[%s1188 + $0xd8] sm:$0xff]
    %v1217 = vld [vmem:[%s1188 + $0xe0] sm:$0xff]
    %v1218 = vld [vmem:[%s1188 + $0xe8] sm:$0xff]
    %v1219 = vld [vmem:[%s1188 + $0xf0] sm:$0xff]
    %v1220 = vld [vmem:[%s1188 + $0xf8] sm:$0xff]
    %v1221 = vld [vmem:[%s1188 + $0x100] sm:$0xff]
    %v1222 = vld [vmem:[%s1188 + $0x108] sm:$0xff]
    %v1223 = vld [vmem:[%s1188 + $0x110] sm:$0xff]
    %v1224 = vld [vmem:[%s1188 + $0x118] sm:$0xff]
    %v1225 = vsel %vm471, %v1151, 0
    %v1227 = vsel %vm471, %v1157, 0
    %v1229 = vsel %vm471, %v1177, 0
    %v1231 = vsel %vm471, %v1183, 0
    %1233 = vmatprep.subr.mxu0 0.0
    %1234 = vmatpush1.msra.mxu0 %v1189
    %1235 = vmatprep.subr.mxu0 0.0
    %1236 = vmatpush1.msra.mxu0 %v1190
    %1237 = vmatprep.subr.mxu0 0.0
    %1238 = vmatpush1.msra.mxu0 %v1191
    %1239 = vmatprep.subr.mxu0 0.0
    %1240 = vmatpush1.msra.mxu0 %v1192
    %1241 = vmatprep.subr.mxu0 0.0
    %1242 = vmatpush1.msra.mxu0 %v1193
    %1243 = vmatprep.subr.mxu0 0.0
    %1244 = vmatpush1.msra.mxu0 %v1194
    %1245 = vmatprep.subr.mxu0 0.0
    %1246 = vmatpush1.msra.mxu0 %v1195
    %1247 = vmatprep.subr.mxu0 0.0
    %1248 = vmatpush1.msra.mxu0 %v1196
    %1249 = vmatprep.subr.mxu0 0.0
    %1250 = vmatpush1.msra.mxu0 %v1197
    %1251 = vmatprep.subr.mxu0 0.0
    %1252 = vmatpush1.msra.mxu0 %v1198
    %1253 = vmatprep.subr.mxu0 0.0
    %1254 = vmatpush1.msra.mxu0 %v1199
    %1255 = vmatprep.subr.mxu0 0.0
    %1256 = vmatpush1.msra.mxu0 %v1200
    %1257 = vmatprep.subr.mxu0 0.0
    %1258 = vmatpush1.msra.mxu0 %v1201
    %1259 = vmatprep.subr.mxu0 0.0
    %1260 = vmatpush1.msra.mxu0 %v1202
    %1261 = vmatprep.subr.mxu0 0.0
    %1262 = vmatpush1.msra.mxu0 %v1203
    %1263 = vmatprep.subr.mxu0 0.0
    %1264 = vmatpush1.msra.mxu0 %v1204
    %1265 = vmatprep.subr.mxu0 0.0
    %1266 = vmatpush1.msra.mxu0 %v1205
    %1267 = vmatprep.subr.mxu0 0.0
    %1268 = vmatpush1.msra.mxu0 %v1206
    %1269 = vmatprep.subr.mxu0 0.0
    %1270 = vmatpush1.msra.mxu0 %v1207
    %1271 = vmatprep.subr.mxu0 0.0
    %1272 = vmatpush1.msra.mxu0 %v1208
    %1273 = vmatprep.subr.mxu0 0.0
    %1274 = vmatpush1.msra.mxu0 %v1209
    %1275 = vmatprep.subr.mxu0 0.0
    %1276 = vmatpush1.msra.mxu0 %v1210
    %1277 = vmatprep.subr.mxu0 0.0
    %1278 = vmatpush1.msra.mxu0 %v1211
    %1279 = vmatprep.subr.mxu0 0.0
    %1280 = vmatpush1.msra.mxu0 %v1212
    %1281 = vmatprep.subr.mxu0 0.0
    %1282 = vmatpush1.msra.mxu0 %v1213
    %1283 = vmatprep.subr.mxu0 0.0
    %1284 = vmatpush1.msra.mxu0 %v1214
    %1285 = vmatprep.subr.mxu0 0.0
    %1286 = vmatpush1.msra.mxu0 %v1215
    %1287 = vmatprep.subr.mxu0 0.0
    %1288 = vmatpush1.msra.mxu0 %v1216
    %1289 = vmatprep.subr.mxu0 0.0
    %1290 = vmatpush1.msra.mxu0 %v1217
    %1291 = vmatprep.subr.mxu0 0.0
    %1292 = vmatpush1.msra.mxu0 %v1218
    %1293 = vmatprep.subr.mxu0 0.0
    %1294 = vmatpush1.msra.mxu0 %v1219
    %1295 = vmatprep.subr.mxu0 0.0
    %1296 = vmatpush1.msra.mxu0 %v1220
    %1297 = vmatprep.mubr.f32.mxu0 %v1148
    %1298 = vmatmul.mubr.f32.gmra.mrb[0].mxu0 %v1145
    %v1299 = vpop.f32.mrb[0].mxu0
    %v1300 = vadd.f32 0.0, %v1299
    %v1301 = vpop.f32.mrb[0].mxu0
    %1302 = vmatprep.mubr.f32.mxu0 %v1155
    %1303 = vmatmul.mubr.f32.gmra.mrb[0].mxu0 %v1153
    %v1304 = vpop.f32.mrb[0].mxu0
    %v1305 = vadd.f32 0.0, %v1304
    %v1306 = vpop.f32.mrb[0].mxu0
    %1307 = vmatprep.mubr.f32.mxu0 %v1174
    %1308 = vmatmul.mubr.f32.gmra.mrb[0].mxu0 %v1171
    %v1309 = vpop.f32.mrb[0].mxu0
    %v1310 = vadd.f32 0.0, %v1309
    %v1311 = vpop.f32.mrb[0].mxu0
    %1312 = vmatprep.mubr.f32.mxu0 %v1181
    %1313 = vmatmul.mubr.f32.gmra.mrb[0].mxu0 %v1179
    %v1314 = vpop.f32.mrb[0].mxu0
    %v1315 = vadd.f32 0.0, %v1314
    %v1316 = vpop.f32.mrb[0].mxu0
    %1317 = vdwg.mxu0
    %1318 = vmatprep.subr.mxu0 0.0
    %1319 = vmatpush1.msra.mxu0 %v1221
    %1320 = vmatprep.subr.mxu0 0.0
    %1321 = vmatpush1.msra.mxu0 %v1222
    %1322 = vmatprep.subr.mxu0 0.0
    %1323 = vmatpush1.msra.mxu0 %v1223
    %1324 = vmatprep.subr.mxu0 0.0
    %1325 = vmatpush1.msra.mxu0 %v1224
    %1326 = vmatprep.subr.mxu0 0.0
    %1327 = vmatpush1.msra.mxu0 0.0
    %1328 = vmatprep.subr.mxu0 0.0
    %1329 = vmatpush1.msra.mxu0 0.0
    %1330 = vmatprep.subr.mxu0 0.0
    %1331 = vmatpush1.msra.mxu0 0.0
    %1332 = vmatprep.subr.mxu0 0.0
    %1333 = vmatpush1.msra.mxu0 0.0
    %1334 = vmatprep.subr.mxu0 0.0
    %1335 = vmatpush1.msra.mxu0 0.0
    %1336 = vmatprep.subr.mxu0 0.0
    %1337 = vmatpush1.msra.mxu0 0.0
    %1338 = vmatprep.subr.mxu0 0.0
    %1339 = vmatpush1.msra.mxu0 0.0
    %1340 = vmatprep.subr.mxu0 0.0
    %1341 = vmatpush1.msra.mxu0 0.0
    %1342 = vmatprep.subr.mxu0 0.0
    %1343 = vmatpush1.msra.mxu0 0.0
    %1344 = vmatprep.subr.mxu0 0.0
    %1345 = vmatpush1.msra.mxu0 0.0
    %1346 = vmatprep.subr.mxu0 0.0
    %1347 = vmatpush1.msra.mxu0 0.0
    %1348 = vmatprep.subr.mxu0 0.0
    %1349 = vmatpush1.msra.mxu0 0.0
    %1350 = vmatprep.subr.mxu0 0.0
    %1351 = vmatpush1.msra.mxu0 0.0
    %1352 = vmatprep.subr.mxu0 0.0
    %1353 = vmatpush1.msra.mxu0 0.0
    %1354 = vmatprep.subr.mxu0 0.0
    %1355 = vmatpush1.msra.mxu0 0.0
    %1356 = vmatprep.subr.mxu0 0.0
    %1357 = vmatpush1.msra.mxu0 0.0
    %1358 = vmatprep.subr.mxu0 0.0
    %1359 = vmatpush1.msra.mxu0 0.0
    %1360 = vmatprep.subr.mxu0 0.0
    %1361 = vmatpush1.msra.mxu0 0.0
    %1362 = vmatprep.subr.mxu0 0.0
    %1363 = vmatpush1.msra.mxu0 0.0
    %1364 = vmatprep.subr.mxu0 0.0
    %1365 = vmatpush1.msra.mxu0 0.0
    %1366 = vmatprep.subr.mxu0 0.0
    %1367 = vmatpush1.msra.mxu0 0.0
    %1368 = vmatprep.subr.mxu0 0.0
    %1369 = vmatpush1.msra.mxu0 0.0
    %1370 = vmatprep.subr.mxu0 0.0
    %1371 = vmatpush1.msra.mxu0 0.0
    %1372 = vmatprep.subr.mxu0 0.0
    %1373 = vmatpush1.msra.mxu0 0.0
    %1374 = vmatprep.subr.mxu0 0.0
    %1375 = vmatpush1.msra.mxu0 0.0
    %1376 = vmatprep.subr.mxu0 0.0
    %1377 = vmatpush1.msra.mxu0 0.0
    %1378 = vmatprep.subr.mxu0 0.0
    %1379 = vmatpush1.msra.mxu0 0.0
    %1380 = vmatprep.subr.mxu0 0.0
    %1381 = vmatpush1.msra.mxu0 0.0
    %1382 = vmatprep.mubr.f32.mxu0 0.0
    %1383 = vmatmul.mubr.f32.gmra.mrb[0].mxu0 %v1225
    %v1384 = vpop.f32.mrb[0].mxu0
    %v1385 = vadd.f32 %v1300, %v1384
    %v1386 = vpop.f32.mrb[0].mxu0
    %1387 = vmatprep.mubr.f32.mxu0 0.0
    %1388 = vmatmul.mubr.f32.gmra.mrb[0].mxu0 %v1227
    %v1389 = vpop.f32.mrb[0].mxu0
    %v1390 = vadd.f32 %v1305, %v1389
    %v1391 = vpop.f32.mrb[0].mxu0
    %1392 = vmatprep.mubr.f32.mxu0 0.0
    %1393 = vmatmul.mubr.f32.gmra.mrb[0].mxu0 %v1229
    %v1394 = vpop.f32.mrb[0].mxu0
    %v1395 = vadd.f32 %v1310, %v1394
    %v1396 = vpop.f32.mrb[0].mxu0
    %1397 = vmatprep.mubr.f32.mxu0 0.0
    %1398 = vmatmul.mubr.f32.gmra.mrb[0].mxu0 %v1231
    %v1399 = vpop.f32.mrb[0].mxu0
    %v1400 = vadd.f32 %v1315, %v1399
    %v1401 = vpop.f32.mrb[0].mxu0
    %1402 = vdwg.mxu0
    %v1403 = vadd.f32 %v1107, %v1385
    %v1404 = vadd.f32 %v1112, %v1390
    %v1405 = vadd.f32 %v1117, %v1395
    %v1406 = vadd.f32 %v1122, %v1400
    %v1407 = vld [vmem:[%s4] sm:$0x1]
    %v1409 = vlaneseq
    %v1410 = vshrl.u32 %v1409, 7
    %v1411 = vsub.s32 0, %v1410
    %v1412 = vrot.slane %v1407, %v1411
    %v1414 = vadd.f32 %v1403, %v1412
    %v1415 = vadd.f32 %v1404, %v1412
    %v1416 = vadd.f32 %v1405, %v1412
    %v1417 = vadd.f32 %v1406, %v1412
    %v1418 = vmax.f32 %v1414, 0.0
    %v1419 = vmax.f32 %v1415, 0.0
    %v1420 = vmax.f32 %v1416, 0.0
    %v1421 = vmax.f32 %v1417, 0.0
    %1422 = vst [vmem:[#allocation4] sm:$0xff] 0.0
    %1423 = vst.msk [vmem:[#allocation4 + $0x8] sm:$0xff] %vm509, 0.0
    %1424 = vst [vmem:[#allocation4 + $0x10] sm:$0xff] 0.0
    %1425 = vst.msk [vmem:[#allocation4 + $0x18] sm:$0xff] %vm509, 0.0
    %1426 = vst [vmem:[#allocation4 + $0x20] sm:$0xff] 0.0
    %1427 = vst.msk [vmem:[#allocation4 + $0x28] sm:$0xff] %vm509, 0.0
    %1428 = vst [vmem:[#allocation4 + $0x30] sm:$0xff] 0.0
    %1429 = vst.msk [vmem:[#allocation4 + $0x38] sm:$0xff] %vm509, 0.0
    %1430 = vst [vmem:[#allocation4 + $0x40] sm:$0xf] 0.0
    %vm1431 = vcmask 125952
    %1432 = vst.msk [vmem:[#allocation4 + $0x48] sm:$0xf] %vm1431, 0.0
    %v1435 = vrot.slane %v1418, 7
    %v1436 = vrot.slane %v1419, 7
    %v1437 = vsel %vm490, %v1435, %v1436
    %1438 = vrot.lane.b32.xlu0 %v1435, 8
    %v1439 = vpop.permute.xlu0 %1438
    %1440 = vrot.lane.b32.xlu0 %v1437, 8
    %v1441 = vpop.permute.xlu0 %1440
    %1442 = vrot.lane.b32.xlu0 %v1436, 8
    %v1443 = vpop.permute.xlu0 %1442
    %vm1447 = vcmask 1047617
    %1448 = vst.msk [vmem:[#allocation4] sm:$0xfe] %vm1447, %v1439
    %vm1449 = vcmask 64513
    %1450 = vst.msk [vmem:[#allocation4 + $0x8] sm:$0xfe] %vm1449, %v1439
    %vm1451 = vcmask 1047616
    %1452 = vst.msk [vmem:[#allocation4 + $0x10] sm:$0xff] %vm1451, %v1441
    %vm1453 = vcmask 64512
    %1454 = vst.msk [vmem:[#allocation4 + $0x18] sm:$0xff] %vm1453, %v1441
    %vm1455 = vcmask 1040448
    %1456 = vst.msk [vmem:[#allocation4 + $0x20] sm:$0x1] %vm1455, %v1443
    %vm1457 = vcmask 57344
    %1458 = vst.msk [vmem:[#allocation4 + $0x28] sm:$0x1] %vm1457, %v1443
    %v1461 = vrot.slane %v1420, 5
    %v1462 = vrot.slane %v1421, 5
    %v1463 = vsel %vm540, %v1461, %v1462
    %1464 = vrot.lane.b32.xlu0 %v1461, 8
    %v1465 = vpop.permute.xlu0 %1464
    %1466 = vrot.lane.b32.xlu0 %v1463, 8
    %v1467 = vpop.permute.xlu0 %1466
    %1468 = vrot.lane.b32.xlu0 %v1462, 8
    %v1469 = vpop.permute.xlu0 %1468
    %vm1473 = vcmask 1047619
    %1474 = vst.msk [vmem:[#allocation4 + $0x20] sm:$0xf8] %vm1473, %v1465
    %vm1475 = vcmask 64515
    %1476 = vst.msk [vmem:[#allocation4 + $0x28] sm:$0xf8] %vm1475, %v1465
    %1477 = vst.msk [vmem:[#allocation4 + $0x30] sm:$0xff] %vm1451, %v1467
    %1478 = vst.msk [vmem:[#allocation4 + $0x38] sm:$0xff] %vm1453, %v1467
    %vm1479 = vcmask 1042496
    %1480 = vst.msk [vmem:[#allocation4 + $0x40] sm:$0x7] %vm1479, %v1469
    %vm1481 = vcmask 59392
    %1482 = vst.msk [vmem:[#allocation4 + $0x48] sm:$0x7] %vm1481, %v1469
    %v1483 = vld [vmem:[#allocation4] sm:$0xff]
    %v1484 = vld [vmem:[#allocation4 + $0x8] sm:$0xff]
    %v1485 = vld [vmem:[#allocation4 + $0x10] sm:$0xff]
    %v1486 = vld [vmem:[#allocation4 + $0x18] sm:$0xff]
    %v1487 = vld [vmem:[#allocation4 + $0x20] sm:$0xfc]
    %v1488 = vld [vmem:[#allocation4 + $0x28] sm:$0xfc]
    %v1489 = vld [vmem:[#allocation4 + $0x30] sm:$0xff]
    %v1490 = vld [vmem:[#allocation4 + $0x38] sm:$0xff]
    %v1491 = vld [vmem:[#allocation4 + $0x40] sm:$0x3]
    %v1492 = vld [vmem:[#allocation4 + $0x48] sm:$0x3]
    %v1499 = vrot.slane %v1487, 2
    %v1500 = vrot.slane %v1489, 2
    %v1501 = vsel %vm608, %v1499, %v1500
    %v1502 = vrot.slane %v1488, 2
    %v1503 = vrot.slane %v1490, 2
    %v1504 = vsel %vm608, %v1502, %v1503
    %v1505 = vrot.slane %v1491, 2
    %v1506 = vsel %vm608, %v1500, %v1505
    %v1507 = vrot.slane %v1492, 2
    %v1508 = vsel %vm608, %v1503, %v1507
    %v1511 = vld [vmem:[%s5] sm:$0xff]
    %v1512 = vld [vmem:[%s5 + $0x8] sm:$0xff]
    %v1513 = vld [vmem:[%s5 + $0x10] sm:$0xff]
    %v1514 = vld [vmem:[%s5 + $0x18] sm:$0xff]
    %v1515 = vld [vmem:[%s5 + $0x20] sm:$0xff]
    %v1516 = vld [vmem:[%s5 + $0x28] sm:$0xff]
    %v1517 = vld [vmem:[%s5 + $0x30] sm:$0xff]
    %v1518 = vld [vmem:[%s5 + $0x38] sm:$0xff]
    %v1519 = vld [vmem:[%s5 + $0x40] sm:$0xff]
    %v1520 = vld [vmem:[%s5 + $0x48] sm:$0xff]
    %v1521 = vld [vmem:[%s5 + $0x50] sm:$0xff]
    %v1522 = vld [vmem:[%s5 + $0x58] sm:$0xff]
    %v1523 = vld [vmem:[%s5 + $0x60] sm:$0xff]
    %v1524 = vld [vmem:[%s5 + $0x68] sm:$0xff]
    %v1525 = vld [vmem:[%s5 + $0x70] sm:$0xff]
    %v1526 = vld [vmem:[%s5 + $0x78] sm:$0xff]
    %v1527 = vld [vmem:[%s5 + $0x80] sm:$0xff]
    %v1528 = vld [vmem:[%s5 + $0x88] sm:$0xff]
    %v1529 = vld [vmem:[%s5 + $0x90] sm:$0xff]
    %v1530 = vld [vmem:[%s5 + $0x98] sm:$0xff]
    %v1531 = vld [vmem:[%s5 + $0xa0] sm:$0xff]
    %v1532 = vld [vmem:[%s5 + $0xa8] sm:$0xff]
    %v1533 = vld [vmem:[%s5 + $0xb0] sm:$0xff]
    %v1534 = vld [vmem:[%s5 + $0xb8] sm:$0xff]
    %v1535 = vld [vmem:[%s5 + $0xc0] sm:$0xff]
    %v1536 = vld [vmem:[%s5 + $0xc8] sm:$0xff]
    %v1537 = vld [vmem:[%s5 + $0xd0] sm:$0xff]
    %v1538 = vld [vmem:[%s5 + $0xd8] sm:$0xff]
    %v1539 = vld [vmem:[%s5 + $0xe0] sm:$0xff]
    %v1540 = vld [vmem:[%s5 + $0xe8] sm:$0xff]
    %v1541 = vld [vmem:[%s5 + $0xf0] sm:$0xff]
    %v1542 = vld [vmem:[%s5 + $0xf8] sm:$0xff]
    %v1543 = vld [vmem:[%s5 + $0x100] sm:$0xff]
    %v1544 = vld [vmem:[%s5 + $0x108] sm:$0xff]
    %v1545 = vld [vmem:[%s5 + $0x110] sm:$0xff]
    %v1546 = vld [vmem:[%s5 + $0x118] sm:$0xff]
    %v1547 = vld [vmem:[%s5 + $0x120] sm:$0xff]
    %v1548 = vld [vmem:[%s5 + $0x128] sm:$0xff]
    %v1549 = vld [vmem:[%s5 + $0x130] sm:$0xff]
    %v1550 = vld [vmem:[%s5 + $0x138] sm:$0xff]
    %v1551 = vld [vmem:[%s5 + $0x140] sm:$0xff]
    %v1552 = vld [vmem:[%s5 + $0x148] sm:$0xff]
    %v1553 = vld [vmem:[%s5 + $0x150] sm:$0xff]
    %v1554 = vld [vmem:[%s5 + $0x158] sm:$0xff]
    %v1555 = vld [vmem:[%s5 + $0x160] sm:$0xff]
    %v1556 = vld [vmem:[%s5 + $0x168] sm:$0xff]
    %v1557 = vld [vmem:[%s5 + $0x170] sm:$0xff]
    %v1558 = vld [vmem:[%s5 + $0x178] sm:$0xff]
    %v1559 = vld [vmem:[%s5 + $0x180] sm:$0xff]
    %v1560 = vld [vmem:[%s5 + $0x188] sm:$0xff]
    %v1561 = vld [vmem:[%s5 + $0x190] sm:$0xff]
    %v1562 = vld [vmem:[%s5 + $0x198] sm:$0xff]
    %v1563 = vld [vmem:[%s5 + $0x1a0] sm:$0xff]
    %v1564 = vld [vmem:[%s5 + $0x1a8] sm:$0xff]
    %v1565 = vld [vmem:[%s5 + $0x1b0] sm:$0xff]
    %v1566 = vld [vmem:[%s5 + $0x1b8] sm:$0xff]
    %v1567 = vld [vmem:[%s5 + $0x1c0] sm:$0xff]
    %v1568 = vld [vmem:[%s5 + $0x1c8] sm:$0xff]
    %v1569 = vld [vmem:[%s5 + $0x1d0] sm:$0xff]
    %v1570 = vld [vmem:[%s5 + $0x1d8] sm:$0xff]
    %v1571 = vld [vmem:[%s5 + $0x1e0] sm:$0xff]
    %v1572 = vld [vmem:[%s5 + $0x1e8] sm:$0xff]
    %v1573 = vld [vmem:[%s5 + $0x1f0] sm:$0xff]
    %v1574 = vld [vmem:[%s5 + $0x1f8] sm:$0xff]
    %v1575 = vld [vmem:[%s5 + $0x200] sm:$0xff]
    %v1576 = vld [vmem:[%s5 + $0x208] sm:$0xff]
    %v1577 = vld [vmem:[%s5 + $0x210] sm:$0xff]
    %v1578 = vld [vmem:[%s5 + $0x218] sm:$0xff]
    %v1579 = vld [vmem:[%s5 + $0x220] sm:$0xff]
    %v1580 = vld [vmem:[%s5 + $0x228] sm:$0xff]
    %v1581 = vld [vmem:[%s5 + $0x230] sm:$0xff]
    %v1582 = vld [vmem:[%s5 + $0x238] sm:$0xff]
    %v1583 = vld [vmem:[#allocation4] sm:$0xfe]
    %v1584 = vld [vmem:[#allocation4 + $0x8] sm:$0xfe]
    %v1585 = vld [vmem:[#allocation4 + $0x20] sm:$0x1]
    %v1586 = vld [vmem:[#allocation4 + $0x28] sm:$0x1]
    %v1587 = vld [vmem:[#allocation4 + $0x20] sm:$0xf8]
    %v1588 = vld [vmem:[#allocation4 + $0x28] sm:$0xf8]
    %v1589 = vld [vmem:[#allocation4 + $0x40] sm:$0x7]
    %v1590 = vld [vmem:[#allocation4 + $0x48] sm:$0x7]
    %v1597 = vrot.slane %v1583, 1
    %v1598 = vrot.slane %v1485, 1
    %v1599 = vsel %vm685, %v1597, %v1598
    %v1600 = vrot.slane %v1584, 1
    %v1601 = vrot.slane %v1486, 1
    %v1602 = vsel %vm685, %v1600, %v1601
    %v1603 = vrot.slane %v1585, 1
    %v1604 = vsel %vm685, %v1598, %v1603
    %v1605 = vrot.slane %v1586, 1
    %v1606 = vsel %vm685, %v1601, %v1605
    %v1613 = vrot.slane %v1587, 3
    %v1614 = vrot.slane %v1489, 3
    %v1615 = vsel %vm711, %v1613, %v1614
    %v1616 = vrot.slane %v1588, 3
    %v1617 = vrot.slane %v1490, 3
    %v1618 = vsel %vm711, %v1616, %v1617
    %v1619 = vrot.slane %v1589, 3
    %v1620 = vsel %vm711, %v1614, %v1619
    %v1621 = vrot.slane %v1590, 3
    %v1622 = vsel %vm711, %v1617, %v1621
    %s1625 = scalar_lea.vmem %s5, 576
    %v1626 = vld [vmem:[%s1625] sm:$0xff]
    %v1627 = vld [vmem:[%s1625 + $0x8] sm:$0xff]
    %v1628 = vld [vmem:[%s1625 + $0x10] sm:$0xff]
    %v1629 = vld [vmem:[%s1625 + $0x18] sm:$0xff]
    %v1630 = vld [vmem:[%s1625 + $0x20] sm:$0xff]
    %v1631 = vld [vmem:[%s1625 + $0x28] sm:$0xff]
    %v1632 = vld [vmem:[%s1625 + $0x30] sm:$0xff]
    %v1633 = vld [vmem:[%s1625 + $0x38] sm:$0xff]
    %v1634 = vld [vmem:[%s1625 + $0x40] sm:$0xff]
    %v1635 = vld [vmem:[%s1625 + $0x48] sm:$0xff]
    %v1636 = vld [vmem:[%s1625 + $0x50] sm:$0xff]
    %v1637 = vld [vmem:[%s1625 + $0x58] sm:$0xff]
    %v1638 = vld [vmem:[%s1625 + $0x60] sm:$0xff]
    %v1639 = vld [vmem:[%s1625 + $0x68] sm:$0xff]
    %v1640 = vld [vmem:[%s1625 + $0x70] sm:$0xff]
    %v1641 = vld [vmem:[%s1625 + $0x78] sm:$0xff]
    %v1642 = vld [vmem:[%s1625 + $0x80] sm:$0xff]
    %v1643 = vld [vmem:[%s1625 + $0x88] sm:$0xff]
    %v1644 = vld [vmem:[%s1625 + $0x90] sm:$0xff]
    %v1645 = vld [vmem:[%s1625 + $0x98] sm:$0xff]
    %v1646 = vld [vmem:[%s1625 + $0xa0] sm:$0xff]
    %v1647 = vld [vmem:[%s1625 + $0xa8] sm:$0xff]
    %v1648 = vld [vmem:[%s1625 + $0xb0] sm:$0xff]
    %v1649 = vld [vmem:[%s1625 + $0xb8] sm:$0xff]
    %v1650 = vld [vmem:[%s1625 + $0xc0] sm:$0xff]
    %v1651 = vld [vmem:[%s1625 + $0xc8] sm:$0xff]
    %v1652 = vld [vmem:[%s1625 + $0xd0] sm:$0xff]
    %v1653 = vld [vmem:[%s1625 + $0xd8] sm:$0xff]
    %v1654 = vld [vmem:[%s1625 + $0xe0] sm:$0xff]
    %v1655 = vld [vmem:[%s1625 + $0xe8] sm:$0xff]
    %v1656 = vld [vmem:[%s1625 + $0xf0] sm:$0xff]
    %v1657 = vld [vmem:[%s1625 + $0xf8] sm:$0xff]
    %v1658 = vld [vmem:[%s1625 + $0x100] sm:$0xff]
    %v1659 = vld [vmem:[%s1625 + $0x108] sm:$0xff]
    %v1660 = vld [vmem:[%s1625 + $0x110] sm:$0xff]
    %v1661 = vld [vmem:[%s1625 + $0x118] sm:$0xff]
    %v1662 = vld [vmem:[%s1625 + $0x120] sm:$0xff]
    %v1663 = vld [vmem:[%s1625 + $0x128] sm:$0xff]
    %v1664 = vld [vmem:[%s1625 + $0x130] sm:$0xff]
    %v1665 = vld [vmem:[%s1625 + $0x138] sm:$0xff]
    %v1666 = vld [vmem:[%s1625 + $0x140] sm:$0xff]
    %v1667 = vld [vmem:[%s1625 + $0x148] sm:$0xff]
    %v1668 = vld [vmem:[%s1625 + $0x150] sm:$0xff]
    %v1669 = vld [vmem:[%s1625 + $0x158] sm:$0xff]
    %v1670 = vld [vmem:[%s1625 + $0x160] sm:$0xff]
    %v1671 = vld [vmem:[%s1625 + $0x168] sm:$0xff]
    %v1672 = vld [vmem:[%s1625 + $0x170] sm:$0xff]
    %v1673 = vld [vmem:[%s1625 + $0x178] sm:$0xff]
    %v1674 = vld [vmem:[%s1625 + $0x180] sm:$0xff]
    %v1675 = vld [vmem:[%s1625 + $0x188] sm:$0xff]
    %v1676 = vld [vmem:[%s1625 + $0x190] sm:$0xff]
    %v1677 = vld [vmem:[%s1625 + $0x198] sm:$0xff]
    %v1678 = vld [vmem:[%s1625 + $0x1a0] sm:$0xff]
    %v1679 = vld [vmem:[%s1625 + $0x1a8] sm:$0xff]
    %v1680 = vld [vmem:[%s1625 + $0x1b0] sm:$0xff]
    %v1681 = vld [vmem:[%s1625 + $0x1b8] sm:$0xff]
    %v1682 = vld [vmem:[%s1625 + $0x1c0] sm:$0xff]
    %v1683 = vld [vmem:[%s1625 + $0x1c8] sm:$0xff]
    %v1684 = vld [vmem:[%s1625 + $0x1d0] sm:$0xff]
    %v1685 = vld [vmem:[%s1625 + $0x1d8] sm:$0xff]
    %v1686 = vld [vmem:[%s1625 + $0x1e0] sm:$0xff]
    %v1687 = vld [vmem:[%s1625 + $0x1e8] sm:$0xff]
    %v1688 = vld [vmem:[%s1625 + $0x1f0] sm:$0xff]
    %v1689 = vld [vmem:[%s1625 + $0x1f8] sm:$0xff]
    %v1690 = vld [vmem:[%s1625 + $0x200] sm:$0xff]
    %v1691 = vld [vmem:[%s1625 + $0x208] sm:$0xff]
    %v1692 = vld [vmem:[%s1625 + $0x210] sm:$0xff]
    %v1693 = vld [vmem:[%s1625 + $0x218] sm:$0xff]
    %v1694 = vld [vmem:[%s1625 + $0x220] sm:$0xff]
    %v1695 = vld [vmem:[%s1625 + $0x228] sm:$0xff]
    %v1696 = vld [vmem:[%s1625 + $0x230] sm:$0xff]
    %v1697 = vld [vmem:[%s1625 + $0x238] sm:$0xff]
    %v1698 = vsel %vm509, %v1602, 0
    %v1700 = vsel %vm509, %v1606, 0
    %v1702 = vsel %vm509, %v1618, 0
    %v1704 = vsel %vm509, %v1622, 0
    %1706 = vmatprep.subr.mxu0 %v1627
    %1707 = vmatpush1.msra.mxu0 %v1626
    %1708 = vmatprep.subr.mxu0 %v1631
    %1709 = vmatpush1.msra.mxu0 %v1630
    %1710 = vmatprep.subr.mxu0 %v1635
    %1711 = vmatpush1.msra.mxu0 %v1634
    %1712 = vmatprep.subr.mxu0 %v1639
    %1713 = vmatpush1.msra.mxu0 %v1638
    %1714 = vmatprep.subr.mxu0 %v1643
    %1715 = vmatpush1.msra.mxu0 %v1642
    %1716 = vmatprep.subr.mxu0 %v1647
    %1717 = vmatpush1.msra.mxu0 %v1646
    %1718 = vmatprep.subr.mxu0 %v1651
    %1719 = vmatpush1.msra.mxu0 %v1650
    %1720 = vmatprep.subr.mxu0 %v1655
    %1721 = vmatpush1.msra.mxu0 %v1654
    %1722 = vmatprep.subr.mxu0 %v1659
    %1723 = vmatpush1.msra.mxu0 %v1658
    %1724 = vmatprep.subr.mxu0 %v1663
    %1725 = vmatpush1.msra.mxu0 %v1662
    %1726 = vmatprep.subr.mxu0 %v1667
    %1727 = vmatpush1.msra.mxu0 %v1666
    %1728 = vmatprep.subr.mxu0 %v1671
    %1729 = vmatpush1.msra.mxu0 %v1670
    %1730 = vmatprep.subr.mxu0 %v1675
    %1731 = vmatpush1.msra.mxu0 %v1674
    %1732 = vmatprep.subr.mxu0 %v1679
    %1733 = vmatpush1.msra.mxu0 %v1678
    %1734 = vmatprep.subr.mxu0 %v1683
    %1735 = vmatpush1.msra.mxu0 %v1682
    %1736 = vmatprep.subr.mxu0 %v1687
    %1737 = vmatpush1.msra.mxu0 %v1686
    %1738 = vmatprep.subr.mxu0 %v1691
    %1739 = vmatpush1.msra.mxu0 %v1690
    %1740 = vmatprep.subr.mxu0 %v1695
    %1741 = vmatpush1.msra.mxu0 %v1694
    %1742 = vmatprep.subr.mxu0 0.0
    %1743 = vmatpush1.msra.mxu0 0.0
    %1744 = vmatprep.subr.mxu0 0.0
    %1745 = vmatpush1.msra.mxu0 0.0
    %1746 = vmatprep.subr.mxu0 0.0
    %1747 = vmatpush1.msra.mxu0 0.0
    %1748 = vmatprep.subr.mxu0 0.0
    %1749 = vmatpush1.msra.mxu0 0.0
    %1750 = vmatprep.subr.mxu0 0.0
    %1751 = vmatpush1.msra.mxu0 0.0
    %1752 = vmatprep.subr.mxu0 0.0
    %1753 = vmatpush1.msra.mxu0 0.0
    %1754 = vmatprep.subr.mxu0 0.0
    %1755 = vmatpush1.msra.mxu0 0.0
    %1756 = vmatprep.subr.mxu0 0.0
    %1757 = vmatpush1.msra.mxu0 0.0
    %1758 = vmatprep.subr.mxu0 0.0
    %1759 = vmatpush1.msra.mxu0 0.0
    %1760 = vmatprep.subr.mxu0 0.0
    %1761 = vmatpush1.msra.mxu0 0.0
    %1762 = vmatprep.subr.mxu0 0.0
    %1763 = vmatpush1.msra.mxu0 0.0
    %1764 = vmatprep.subr.mxu0 0.0
    %1765 = vmatpush1.msra.mxu0 0.0
    %1766 = vmatprep.subr.mxu0 0.0
    %1767 = vmatpush1.msra.mxu0 0.0
    %1768 = vmatprep.subr.mxu0 0.0
    %1769 = vmatpush1.msra.mxu0 0.0
    %1770 = vmatprep.mubr.f32.mxu0 %v1698
    %1771 = vmatmul.mubr.f32.gmra.mrb[0].mxu0 %v1599
    %v1772 = vpop.f32.mrb[0].mxu0
    %v1773 = vadd.f32 0.0, %v1772
    %v1774 = vpop.f32.mrb[0].mxu0
    %v1775 = vadd.f32 0.0, %v1774
    %1776 = vmatprep.mubr.f32.mxu0 %v1700
    %1777 = vmatmul.mubr.f32.gmra.mrb[0].mxu0 %v1604
    %v1778 = vpop.f32.mrb[0].mxu0
    %v1779 = vadd.f32 0.0, %v1778
    %v1780 = vpop.f32.mrb[0].mxu0
    %v1781 = vadd.f32 0.0, %v1780
    %1782 = vmatprep.mubr.f32.mxu0 %v1702
    %1783 = vmatmul.mubr.f32.gmra.mrb[0].mxu0 %v1615
    %v1784 = vpop.f32.mrb[0].mxu0
    %v1785 = vadd.f32 0.0, %v1784
    %v1786 = vpop.f32.mrb[0].mxu0
    %v1787 = vadd.f32 0.0, %v1786
    %1788 = vmatprep.mubr.f32.mxu0 %v1704
    %1789 = vmatmul.mubr.f32.gmra.mrb[0].mxu0 %v1620
    %v1790 = vpop.f32.mrb[0].mxu0
    %v1791 = vadd.f32 0.0, %v1790
    %v1792 = vpop.f32.mrb[0].mxu0
    %v1793 = vadd.f32 0.0, %v1792
    %1794 = vdwg.mxu0
    %1795 = vmatprep.subr.mxu0 %v1629
    %1796 = vmatpush1.msra.mxu0 %v1628
    %1797 = vmatprep.subr.mxu0 %v1633
    %1798 = vmatpush1.msra.mxu0 %v1632
    %1799 = vmatprep.subr.mxu0 %v1637
    %1800 = vmatpush1.msra.mxu0 %v1636
    %1801 = vmatprep.subr.mxu0 %v1641
    %1802 = vmatpush1.msra.mxu0 %v1640
    %1803 = vmatprep.subr.mxu0 %v1645
    %1804 = vmatpush1.msra.mxu0 %v1644
    %1805 = vmatprep.subr.mxu0 %v1649
    %1806 = vmatpush1.msra.mxu0 %v1648
    %1807 = vmatprep.subr.mxu0 %v1653
    %1808 = vmatpush1.msra.mxu0 %v1652
    %1809 = vmatprep.subr.mxu0 %v1657
    %1810 = vmatpush1.msra.mxu0 %v1656
    %1811 = vmatprep.subr.mxu0 %v1661
    %1812 = vmatpush1.msra.mxu0 %v1660
    %1813 = vmatprep.subr.mxu0 %v1665
    %1814 = vmatpush1.msra.mxu0 %v1664
    %1815 = vmatprep.subr.mxu0 %v1669
    %1816 = vmatpush1.msra.mxu0 %v1668
    %1817 = vmatprep.subr.mxu0 %v1673
    %1818 = vmatpush1.msra.mxu0 %v1672
    %1819 = vmatprep.subr.mxu0 %v1677
    %1820 = vmatpush1.msra.mxu0 %v1676
    %1821 = vmatprep.subr.mxu0 %v1681
    %1822 = vmatpush1.msra.mxu0 %v1680
    %1823 = vmatprep.subr.mxu0 %v1685
    %1824 = vmatpush1.msra.mxu0 %v1684
    %1825 = vmatprep.subr.mxu0 %v1689
    %1826 = vmatpush1.msra.mxu0 %v1688
    %1827 = vmatprep.subr.mxu0 %v1693
    %1828 = vmatpush1.msra.mxu0 %v1692
    %1829 = vmatprep.subr.mxu0 %v1697
    %1830 = vmatpush1.msra.mxu0 %v1696
    %1831 = vmatprep.subr.mxu0 0.0
    %1832 = vmatpush1.msra.mxu0 0.0
    %1833 = vmatprep.subr.mxu0 0.0
    %1834 = vmatpush1.msra.mxu0 0.0
    %1835 = vmatprep.subr.mxu0 0.0
    %1836 = vmatpush1.msra.mxu0 0.0
    %1837 = vmatprep.subr.mxu0 0.0
    %1838 = vmatpush1.msra.mxu0 0.0
    %1839 = vmatprep.subr.mxu0 0.0
    %1840 = vmatpush1.msra.mxu0 0.0
    %1841 = vmatprep.subr.mxu0 0.0
    %1842 = vmatpush1.msra.mxu0 0.0
    %1843 = vmatprep.subr.mxu0 0.0
    %1844 = vmatpush1.msra.mxu0 0.0
    %1845 = vmatprep.subr.mxu0 0.0
    %1846 = vmatpush1.msra.mxu0 0.0
    %1847 = vmatprep.subr.mxu0 0.0
    %1848 = vmatpush1.msra.mxu0 0.0
    %1849 = vmatprep.subr.mxu0 0.0
    %1850 = vmatpush1.msra.mxu0 0.0
    %1851 = vmatprep.subr.mxu0 0.0
    %1852 = vmatpush1.msra.mxu0 0.0
    %1853 = vmatprep.subr.mxu0 0.0
    %1854 = vmatpush1.msra.mxu0 0.0
    %1855 = vmatprep.subr.mxu0 0.0
    %1856 = vmatpush1.msra.mxu0 0.0
    %1857 = vmatprep.subr.mxu0 0.0
    %1858 = vmatpush1.msra.mxu0 0.0
    %1859 = vmatprep.mubr.f32.mxu0 %v1698
    %1860 = vmatmul.mubr.f32.gmra.mrb[0].mxu0 %v1599
    %v1861 = vpop.f32.mrb[0].mxu0
    %v1862 = vadd.f32 0.0, %v1861
    %v1863 = vpop.f32.mrb[0].mxu0
    %v1864 = vadd.f32 0.0, %v1863
    %1865 = vmatprep.mubr.f32.mxu0 %v1700
    %1866 = vmatmul.mubr.f32.gmra.mrb[0].mxu0 %v1604
    %v1867 = vpop.f32.mrb[0].mxu0
    %v1868 = vadd.f32 0.0, %v1867
    %v1869 = vpop.f32.mrb[0].mxu0
    %v1870 = vadd.f32 0.0, %v1869
    %1871 = vmatprep.mubr.f32.mxu0 %v1702
    %1872 = vmatmul.mubr.f32.gmra.mrb[0].mxu0 %v1615
    %v1873 = vpop.f32.mrb[0].mxu0
    %v1874 = vadd.f32 0.0, %v1873
    %v1875 = vpop.f32.mrb[0].mxu0
    %v1876 = vadd.f32 0.0, %v1875
    %1877 = vmatprep.mubr.f32.mxu0 %v1704
    %1878 = vmatmul.mubr.f32.gmra.mrb[0].mxu0 %v1620
    %v1879 = vpop.f32.mrb[0].mxu0
    %v1880 = vadd.f32 0.0, %v1879
    %v1881 = vpop.f32.mrb[0].mxu0
    %v1882 = vadd.f32 0.0, %v1881
    %1883 = vdwg.mxu0
    %v1885 = vsel %vm509, %v1484, 0
    %v1887 = vsel %vm509, %v1486, 0
    %v1889 = vsel %vm509, %v1504, 0
    %v1891 = vsel %vm509, %v1508, 0
    %1893 = vmatprep.subr.mxu0 %v1512
    %1894 = vmatpush1.msra.mxu0 %v1511
    %1895 = vmatprep.subr.mxu0 %v1516
    %1896 = vmatpush1.msra.mxu0 %v1515
    %1897 = vmatprep.subr.mxu0 %v1520
    %1898 = vmatpush1.msra.mxu0 %v1519
    %1899 = vmatprep.subr.mxu0 %v1524
    %1900 = vmatpush1.msra.mxu0 %v1523
    %1901 = vmatprep.subr.mxu0 %v1528
    %1902 = vmatpush1.msra.mxu0 %v1527
    %1903 = vmatprep.subr.mxu0 %v1532
    %1904 = vmatpush1.msra.mxu0 %v1531
    %1905 = vmatprep.subr.mxu0 %v1536
    %1906 = vmatpush1.msra.mxu0 %v1535
    %1907 = vmatprep.subr.mxu0 %v1540
    %1908 = vmatpush1.msra.mxu0 %v1539
    %1909 = vmatprep.subr.mxu0 %v1544
    %1910 = vmatpush1.msra.mxu0 %v1543
    %1911 = vmatprep.subr.mxu0 %v1548
    %1912 = vmatpush1.msra.mxu0 %v1547
    %1913 = vmatprep.subr.mxu0 %v1552
    %1914 = vmatpush1.msra.mxu0 %v1551
    %1915 = vmatprep.subr.mxu0 %v1556
    %1916 = vmatpush1.msra.mxu0 %v1555
    %1917 = vmatprep.subr.mxu0 %v1560
    %1918 = vmatpush1.msra.mxu0 %v1559
    %1919 = vmatprep.subr.mxu0 %v1564
    %1920 = vmatpush1.msra.mxu0 %v1563
    %1921 = vmatprep.subr.mxu0 %v1568
    %1922 = vmatpush1.msra.mxu0 %v1567
    %1923 = vmatprep.subr.mxu0 %v1572
    %1924 = vmatpush1.msra.mxu0 %v1571
    %1925 = vmatprep.subr.mxu0 %v1576
    %1926 = vmatpush1.msra.mxu0 %v1575
    %1927 = vmatprep.subr.mxu0 %v1580
    %1928 = vmatpush1.msra.mxu0 %v1579
    %1929 = vmatprep.subr.mxu0 0.0
    %1930 = vmatpush1.msra.mxu0 0.0
    %1931 = vmatprep.subr.mxu0 0.0
    %1932 = vmatpush1.msra.mxu0 0.0
    %1933 = vmatprep.subr.mxu0 0.0
    %1934 = vmatpush1.msra.mxu0 0.0
    %1935 = vmatprep.subr.mxu0 0.0
    %1936 = vmatpush1.msra.mxu0 0.0
    %1937 = vmatprep.subr.mxu0 0.0
    %1938 = vmatpush1.msra.mxu0 0.0
    %1939 = vmatprep.subr.mxu0 0.0
    %1940 = vmatpush1.msra.mxu0 0.0
    %1941 = vmatprep.subr.mxu0 0.0
    %1942 = vmatpush1.msra.mxu0 0.0
    %1943 = vmatprep.subr.mxu0 0.0
    %1944 = vmatpush1.msra.mxu0 0.0
    %1945 = vmatprep.subr.mxu0 0.0
    %1946 = vmatpush1.msra.mxu0 0.0
    %1947 = vmatprep.subr.mxu0 0.0
    %1948 = vmatpush1.msra.mxu0 0.0
    %1949 = vmatprep.subr.mxu0 0.0
    %1950 = vmatpush1.msra.mxu0 0.0
    %1951 = vmatprep.subr.mxu0 0.0
    %1952 = vmatpush1.msra.mxu0 0.0
    %1953 = vmatprep.subr.mxu0 0.0
    %1954 = vmatpush1.msra.mxu0 0.0
    %1955 = vmatprep.subr.mxu0 0.0
    %1956 = vmatpush1.msra.mxu0 0.0
    %1957 = vmatprep.mubr.f32.mxu0 %v1885
    %1958 = vmatmul.mubr.f32.gmra.mrb[0].mxu0 %v1483
    %v1959 = vpop.f32.mrb[0].mxu0
    %v1960 = vadd.f32 %v1773, %v1959
    %v1961 = vpop.f32.mrb[0].mxu0
    %v1962 = vadd.f32 %v1775, %v1961
    %1963 = vmatprep.mubr.f32.mxu0 %v1887
    %1964 = vmatmul.mubr.f32.gmra.mrb[0].mxu0 %v1485
    %v1965 = vpop.f32.mrb[0].mxu0
    %v1966 = vadd.f32 %v1779, %v1965
    %v1967 = vpop.f32.mrb[0].mxu0
    %v1968 = vadd.f32 %v1781, %v1967
    %1969 = vmatprep.mubr.f32.mxu0 %v1889
    %1970 = vmatmul.mubr.f32.gmra.mrb[0].mxu0 %v1501
    %v1971 = vpop.f32.mrb[0].mxu0
    %v1972 = vadd.f32 %v1785, %v1971
    %v1973 = vpop.f32.mrb[0].mxu0
    %v1974 = vadd.f32 %v1787, %v1973
    %1975 = vmatprep.mubr.f32.mxu0 %v1891
    %1976 = vmatmul.mubr.f32.gmra.mrb[0].mxu0 %v1506
    %v1977 = vpop.f32.mrb[0].mxu0
    %v1978 = vadd.f32 %v1791, %v1977
    %v1979 = vpop.f32.mrb[0].mxu0
    %v1980 = vadd.f32 %v1793, %v1979
    %1981 = vdwg.mxu0
    %1982 = vmatprep.subr.mxu0 %v1514
    %1983 = vmatpush1.msra.mxu0 %v1513
    %1984 = vmatprep.subr.mxu0 %v1518
    %1985 = vmatpush1.msra.mxu0 %v1517
    %1986 = vmatprep.subr.mxu0 %v1522
    %1987 = vmatpush1.msra.mxu0 %v1521
    %1988 = vmatprep.subr.mxu0 %v1526
    %1989 = vmatpush1.msra.mxu0 %v1525
    %1990 = vmatprep.subr.mxu0 %v1530
    %1991 = vmatpush1.msra.mxu0 %v1529
    %1992 = vmatprep.subr.mxu0 %v1534
    %1993 = vmatpush1.msra.mxu0 %v1533
    %1994 = vmatprep.subr.mxu0 %v1538
    %1995 = vmatpush1.msra.mxu0 %v1537
    %1996 = vmatprep.subr.mxu0 %v1542
    %1997 = vmatpush1.msra.mxu0 %v1541
    %1998 = vmatprep.subr.mxu0 %v1546
    %1999 = vmatpush1.msra.mxu0 %v1545
    %2000 = vmatprep.subr.mxu0 %v1550
    %2001 = vmatpush1.msra.mxu0 %v1549
    %2002 = vmatprep.subr.mxu0 %v1554
    %2003 = vmatpush1.msra.mxu0 %v1553
    %2004 = vmatprep.subr.mxu0 %v1558
    %2005 = vmatpush1.msra.mxu0 %v1557
    %2006 = vmatprep.subr.mxu0 %v1562
    %2007 = vmatpush1.msra.mxu0 %v1561
    %2008 = vmatprep.subr.mxu0 %v1566
    %2009 = vmatpush1.msra.mxu0 %v1565
    %2010 = vmatprep.subr.mxu0 %v1570
    %2011 = vmatpush1.msra.mxu0 %v1569
    %2012 = vmatprep.subr.mxu0 %v1574
    %2013 = vmatpush1.msra.mxu0 %v1573
    %2014 = vmatprep.subr.mxu0 %v1578
    %2015 = vmatpush1.msra.mxu0 %v1577
    %2016 = vmatprep.subr.mxu0 %v1582
    %2017 = vmatpush1.msra.mxu0 %v1581
    %2018 = vmatprep.subr.mxu0 0.0
    %2019 = vmatpush1.msra.mxu0 0.0
    %2020 = vmatprep.subr.mxu0 0.0
    %2021 = vmatpush1.msra.mxu0 0.0
    %2022 = vmatprep.subr.mxu0 0.0
    %2023 = vmatpush1.msra.mxu0 0.0
    %2024 = vmatprep.subr.mxu0 0.0
    %2025 = vmatpush1.msra.mxu0 0.0
    %2026 = vmatprep.subr.mxu0 0.0
    %2027 = vmatpush1.msra.mxu0 0.0
    %2028 = vmatprep.subr.mxu0 0.0
    %2029 = vmatpush1.msra.mxu0 0.0
    %2030 = vmatprep.subr.mxu0 0.0
    %2031 = vmatpush1.msra.mxu0 0.0
    %2032 = vmatprep.subr.mxu0 0.0
    %2033 = vmatpush1.msra.mxu0 0.0
    %2034 = vmatprep.subr.mxu0 0.0
    %2035 = vmatpush1.msra.mxu0 0.0
    %2036 = vmatprep.subr.mxu0 0.0
    %2037 = vmatpush1.msra.mxu0 0.0
    %2038 = vmatprep.subr.mxu0 0.0
    %2039 = vmatpush1.msra.mxu0 0.0
    %2040 = vmatprep.subr.mxu0 0.0
    %2041 = vmatpush1.msra.mxu0 0.0
    %2042 = vmatprep.subr.mxu0 0.0
    %2043 = vmatpush1.msra.mxu0 0.0
    %2044 = vmatprep.subr.mxu0 0.0
    %2045 = vmatpush1.msra.mxu0 0.0
    %2046 = vmatprep.mubr.f32.mxu0 %v1885
    %2047 = vmatmul.mubr.f32.gmra.mrb[0].mxu0 %v1483
    %v2048 = vpop.f32.mrb[0].mxu0
    %v2049 = vadd.f32 %v1862, %v2048
    %v2050 = vpop.f32.mrb[0].mxu0
    %v2051 = vadd.f32 %v1864, %v2050
    %2052 = vmatprep.mubr.f32.mxu0 %v1887
    %2053 = vmatmul.mubr.f32.gmra.mrb[0].mxu0 %v1485
    %v2054 = vpop.f32.mrb[0].mxu0
    %v2055 = vadd.f32 %v1868, %v2054
    %v2056 = vpop.f32.mrb[0].mxu0
    %v2057 = vadd.f32 %v1870, %v2056
    %2058 = vmatprep.mubr.f32.mxu0 %v1889
    %2059 = vmatmul.mubr.f32.gmra.mrb[0].mxu0 %v1501
    %v2060 = vpop.f32.mrb[0].mxu0
    %v2061 = vadd.f32 %v1874, %v2060
    %v2062 = vpop.f32.mrb[0].mxu0
    %v2063 = vadd.f32 %v1876, %v2062
    %2064 = vmatprep.mubr.f32.mxu0 %v1891
    %2065 = vmatmul.mubr.f32.gmra.mrb[0].mxu0 %v1506
    %v2066 = vpop.f32.mrb[0].mxu0
    %v2067 = vadd.f32 %v1880, %v2066
    %v2068 = vpop.f32.mrb[0].mxu0
    %v2069 = vadd.f32 %v1882, %v2068
    %2070 = vdwg.mxu0
    %v2071 = vld [vmem:[#allocation4] sm:$0xfc]
    %v2072 = vld [vmem:[#allocation4 + $0x8] sm:$0xfc]
    %v2073 = vld [vmem:[#allocation4 + $0x20] sm:$0x3]
    %v2074 = vld [vmem:[#allocation4 + $0x28] sm:$0x3]
    %v2075 = vld [vmem:[#allocation4 + $0x20] sm:$0xf0]
    %v2076 = vld [vmem:[#allocation4 + $0x28] sm:$0xf0]
    %v2077 = vld [vmem:[#allocation4 + $0x40] sm:$0xf]
    %v2078 = vld [vmem:[#allocation4 + $0x48] sm:$0xf]
    %v2083 = vrot.slane %v2071, 2
    %v2084 = vrot.slane %v1485, 2
    %v2085 = vsel %vm608, %v2083, %v2084
    %v2086 = vrot.slane %v2072, 2
    %v2087 = vrot.slane %v1486, 2
    %v2088 = vsel %vm608, %v2086, %v2087
    %v2089 = vrot.slane %v2073, 2
    %v2090 = vsel %vm608, %v2084, %v2089
    %v2091 = vrot.slane %v2074, 2
    %v2092 = vsel %vm608, %v2087, %v2091
    %v2099 = vrot.slane %v2075, 4
    %v2100 = vrot.slane %v1489, 4
    %v2101 = vsel %vm1168, %v2099, %v2100
    %v2102 = vrot.slane %v2076, 4
    %v2103 = vrot.slane %v1490, 4
    %v2104 = vsel %vm1168, %v2102, %v2103
    %v2105 = vrot.slane %v2077, 4
    %v2106 = vsel %vm1168, %v2100, %v2105
    %v2107 = vrot.slane %v2078, 4
    %v2108 = vsel %vm1168, %v2103, %v2107
    %s2111 = scalar_lea.vmem %s5, 1152
    %v2112 = vld [vmem:[%s2111] sm:$0xff]
    %v2113 = vld [vmem:[%s2111 + $0x8] sm:$0xff]
    %v2114 = vld [vmem:[%s2111 + $0x10] sm:$0xff]
    %v2115 = vld [vmem:[%s2111 + $0x18] sm:$0xff]
    %v2116 = vld [vmem:[%s2111 + $0x20] sm:$0xff]
    %v2117 = vld [vmem:[%s2111 + $0x28] sm:$0xff]
    %v2118 = vld [vmem:[%s2111 + $0x30] sm:$0xff]
    %v2119 = vld [vmem:[%s2111 + $0x38] sm:$0xff]
    %v2120 = vld [vmem:[%s2111 + $0x40] sm:$0xff]
    %v2121 = vld [vmem:[%s2111 + $0x48] sm:$0xff]
    %v2122 = vld [vmem:[%s2111 + $0x50] sm:$0xff]
    %v2123 = vld [vmem:[%s2111 + $0x58] sm:$0xff]
    %v2124 = vld [vmem:[%s2111 + $0x60] sm:$0xff]
    %v2125 = vld [vmem:[%s2111 + $0x68] sm:$0xff]
    %v2126 = vld [vmem:[%s2111 + $0x70] sm:$0xff]
    %v2127 = vld [vmem:[%s2111 + $0x78] sm:$0xff]
    %v2128 = vld [vmem:[%s2111 + $0x80] sm:$0xff]
    %v2129 = vld [vmem:[%s2111 + $0x88] sm:$0xff]
    %v2130 = vld [vmem:[%s2111 + $0x90] sm:$0xff]
    %v2131 = vld [vmem:[%s2111 + $0x98] sm:$0xff]
    %v2132 = vld [vmem:[%s2111 + $0xa0] sm:$0xff]
    %v2133 = vld [vmem:[%s2111 + $0xa8] sm:$0xff]
    %v2134 = vld [vmem:[%s2111 + $0xb0] sm:$0xff]
    %v2135 = vld [vmem:[%s2111 + $0xb8] sm:$0xff]
    %v2136 = vld [vmem:[%s2111 + $0xc0] sm:$0xff]
    %v2137 = vld [vmem:[%s2111 + $0xc8] sm:$0xff]
    %v2138 = vld [vmem:[%s2111 + $0xd0] sm:$0xff]
    %v2139 = vld [vmem:[%s2111 + $0xd8] sm:$0xff]
    %v2140 = vld [vmem:[%s2111 + $0xe0] sm:$0xff]
    %v2141 = vld [vmem:[%s2111 + $0xe8] sm:$0xff]
    %v2142 = vld [vmem:[%s2111 + $0xf0] sm:$0xff]
    %v2143 = vld [vmem:[%s2111 + $0xf8] sm:$0xff]
    %v2144 = vld [vmem:[%s2111 + $0x100] sm:$0xff]
    %v2145 = vld [vmem:[%s2111 + $0x108] sm:$0xff]
    %v2146 = vld [vmem:[%s2111 + $0x110] sm:$0xff]
    %v2147 = vld [vmem:[%s2111 + $0x118] sm:$0xff]
    %v2148 = vld [vmem:[%s2111 + $0x120] sm:$0xff]
    %v2149 = vld [vmem:[%s2111 + $0x128] sm:$0xff]
    %v2150 = vld [vmem:[%s2111 + $0x130] sm:$0xff]
    %v2151 = vld [vmem:[%s2111 + $0x138] sm:$0xff]
    %v2152 = vld [vmem:[%s2111 + $0x140] sm:$0xff]
    %v2153 = vld [vmem:[%s2111 + $0x148] sm:$0xff]
    %v2154 = vld [vmem:[%s2111 + $0x150] sm:$0xff]
    %v2155 = vld [vmem:[%s2111 + $0x158] sm:$0xff]
    %v2156 = vld [vmem:[%s2111 + $0x160] sm:$0xff]
    %v2157 = vld [vmem:[%s2111 + $0x168] sm:$0xff]
    %v2158 = vld [vmem:[%s2111 + $0x170] sm:$0xff]
    %v2159 = vld [vmem:[%s2111 + $0x178] sm:$0xff]
    %v2160 = vld [vmem:[%s2111 + $0x180] sm:$0xff]
    %v2161 = vld [vmem:[%s2111 + $0x188] sm:$0xff]
    %v2162 = vld [vmem:[%s2111 + $0x190] sm:$0xff]
    %v2163 = vld [vmem:[%s2111 + $0x198] sm:$0xff]
    %v2164 = vld [vmem:[%s2111 + $0x1a0] sm:$0xff]
    %v2165 = vld [vmem:[%s2111 + $0x1a8] sm:$0xff]
    %v2166 = vld [vmem:[%s2111 + $0x1b0] sm:$0xff]
    %v2167 = vld [vmem:[%s2111 + $0x1b8] sm:$0xff]
    %v2168 = vld [vmem:[%s2111 + $0x1c0] sm:$0xff]
    %v2169 = vld [vmem:[%s2111 + $0x1c8] sm:$0xff]
    %v2170 = vld [vmem:[%s2111 + $0x1d0] sm:$0xff]
    %v2171 = vld [vmem:[%s2111 + $0x1d8] sm:$0xff]
    %v2172 = vld [vmem:[%s2111 + $0x1e0] sm:$0xff]
    %v2173 = vld [vmem:[%s2111 + $0x1e8] sm:$0xff]
    %v2174 = vld [vmem:[%s2111 + $0x1f0] sm:$0xff]
    %v2175 = vld [vmem:[%s2111 + $0x1f8] sm:$0xff]
    %v2176 = vld [vmem:[%s2111 + $0x200] sm:$0xff]
    %v2177 = vld [vmem:[%s2111 + $0x208] sm:$0xff]
    %v2178 = vld [vmem:[%s2111 + $0x210] sm:$0xff]
    %v2179 = vld [vmem:[%s2111 + $0x218] sm:$0xff]
    %v2180 = vld [vmem:[%s2111 + $0x220] sm:$0xff]
    %v2181 = vld [vmem:[%s2111 + $0x228] sm:$0xff]
    %v2182 = vld [vmem:[%s2111 + $0x230] sm:$0xff]
    %v2183 = vld [vmem:[%s2111 + $0x238] sm:$0xff]
    %v2184 = vsel %vm509, %v2088, 0
    %v2186 = vsel %vm509, %v2092, 0
    %v2188 = vsel %vm509, %v2104, 0
    %v2190 = vsel %vm509, %v2108, 0
    %2192 = vmatprep.subr.mxu0 %v2113
    %2193 = vmatpush1.msra.mxu0 %v2112
    %2194 = vmatprep.subr.mxu0 %v2117
    %2195 = vmatpush1.msra.mxu0 %v2116
    %2196 = vmatprep.subr.mxu0 %v2121
    %2197 = vmatpush1.msra.mxu0 %v2120
    %2198 = vmatprep.subr.mxu0 %v2125
    %2199 = vmatpush1.msra.mxu0 %v2124
    %2200 = vmatprep.subr.mxu0 %v2129
    %2201 = vmatpush1.msra.mxu0 %v2128
    %2202 = vmatprep.subr.mxu0 %v2133
    %2203 = vmatpush1.msra.mxu0 %v2132
    %2204 = vmatprep.subr.mxu0 %v2137
    %2205 = vmatpush1.msra.mxu0 %v2136
    %2206 = vmatprep.subr.mxu0 %v2141
    %2207 = vmatpush1.msra.mxu0 %v2140
    %2208 = vmatprep.subr.mxu0 %v2145
    %2209 = vmatpush1.msra.mxu0 %v2144
    %2210 = vmatprep.subr.mxu0 %v2149
    %2211 = vmatpush1.msra.mxu0 %v2148
    %2212 = vmatprep.subr.mxu0 %v2153
    %2213 = vmatpush1.msra.mxu0 %v2152
    %2214 = vmatprep.subr.mxu0 %v2157
    %2215 = vmatpush1.msra.mxu0 %v2156
    %2216 = vmatprep.subr.mxu0 %v2161
    %2217 = vmatpush1.msra.mxu0 %v2160
    %2218 = vmatprep.subr.mxu0 %v2165
    %2219 = vmatpush1.msra.mxu0 %v2164
    %2220 = vmatprep.subr.mxu0 %v2169
    %2221 = vmatpush1.msra.mxu0 %v2168
    %2222 = vmatprep.subr.mxu0 %v2173
    %2223 = vmatpush1.msra.mxu0 %v2172
    %2224 = vmatprep.subr.mxu0 %v2177
    %2225 = vmatpush1.msra.mxu0 %v2176
    %2226 = vmatprep.subr.mxu0 %v2181
    %2227 = vmatpush1.msra.mxu0 %v2180
    %2228 = vmatprep.subr.mxu0 0.0
    %2229 = vmatpush1.msra.mxu0 0.0
    %2230 = vmatprep.subr.mxu0 0.0
    %2231 = vmatpush1.msra.mxu0 0.0
    %2232 = vmatprep.subr.mxu0 0.0
    %2233 = vmatpush1.msra.mxu0 0.0
    %2234 = vmatprep.subr.mxu0 0.0
    %2235 = vmatpush1.msra.mxu0 0.0
    %2236 = vmatprep.subr.mxu0 0.0
    %2237 = vmatpush1.msra.mxu0 0.0
    %2238 = vmatprep.subr.mxu0 0.0
    %2239 = vmatpush1.msra.mxu0 0.0
    %2240 = vmatprep.subr.mxu0 0.0
    %2241 = vmatpush1.msra.mxu0 0.0
    %2242 = vmatprep.subr.mxu0 0.0
    %2243 = vmatpush1.msra.mxu0 0.0
    %2244 = vmatprep.subr.mxu0 0.0
    %2245 = vmatpush1.msra.mxu0 0.0
    %2246 = vmatprep.subr.mxu0 0.0
    %2247 = vmatpush1.msra.mxu0 0.0
    %2248 = vmatprep.subr.mxu0 0.0
    %2249 = vmatpush1.msra.mxu0 0.0
    %2250 = vmatprep.subr.mxu0 0.0
    %2251 = vmatpush1.msra.mxu0 0.0
    %2252 = vmatprep.subr.mxu0 0.0
    %2253 = vmatpush1.msra.mxu0 0.0
    %2254 = vmatprep.subr.mxu0 0.0
    %2255 = vmatpush1.msra.mxu0 0.0
    %2256 = vmatprep.mubr.f32.mxu0 %v2184
    %2257 = vmatmul.mubr.f32.gmra.mrb[0].mxu0 %v2085
    %v2258 = vpop.f32.mrb[0].mxu0
    %v2259 = vadd.f32 0.0, %v2258
    %v2260 = vpop.f32.mrb[0].mxu0
    %v2261 = vadd.f32 0.0, %v2260
    %2262 = vmatprep.mubr.f32.mxu0 %v2186
    %2263 = vmatmul.mubr.f32.gmra.mrb[0].mxu0 %v2090
    %v2264 = vpop.f32.mrb[0].mxu0
    %v2265 = vadd.f32 0.0, %v2264
    %v2266 = vpop.f32.mrb[0].mxu0
    %v2267 = vadd.f32 0.0, %v2266
    %2268 = vmatprep.mubr.f32.mxu0 %v2188
    %2269 = vmatmul.mubr.f32.gmra.mrb[0].mxu0 %v2101
    %v2270 = vpop.f32.mrb[0].mxu0
    %v2271 = vadd.f32 0.0, %v2270
    %v2272 = vpop.f32.mrb[0].mxu0
    %v2273 = vadd.f32 0.0, %v2272
    %2274 = vmatprep.mubr.f32.mxu0 %v2190
    %2275 = vmatmul.mubr.f32.gmra.mrb[0].mxu0 %v2106
    %v2276 = vpop.f32.mrb[0].mxu0
    %v2277 = vadd.f32 0.0, %v2276
    %v2278 = vpop.f32.mrb[0].mxu0
    %v2279 = vadd.f32 0.0, %v2278
    %2280 = vdwg.mxu0
    %2281 = vmatprep.subr.mxu0 %v2115
    %2282 = vmatpush1.msra.mxu0 %v2114
    %2283 = vmatprep.subr.mxu0 %v2119
    %2284 = vmatpush1.msra.mxu0 %v2118
    %2285 = vmatprep.subr.mxu0 %v2123
    %2286 = vmatpush1.msra.mxu0 %v2122
    %2287 = vmatprep.subr.mxu0 %v2127
    %2288 = vmatpush1.msra.mxu0 %v2126
    %2289 = vmatprep.subr.mxu0 %v2131
    %2290 = vmatpush1.msra.mxu0 %v2130
    %2291 = vmatprep.subr.mxu0 %v2135
    %2292 = vmatpush1.msra.mxu0 %v2134
    %2293 = vmatprep.subr.mxu0 %v2139
    %2294 = vmatpush1.msra.mxu0 %v2138
    %2295 = vmatprep.subr.mxu0 %v2143
    %2296 = vmatpush1.msra.mxu0 %v2142
    %2297 = vmatprep.subr.mxu0 %v2147
    %2298 = vmatpush1.msra.mxu0 %v2146
    %2299 = vmatprep.subr.mxu0 %v2151
    %2300 = vmatpush1.msra.mxu0 %v2150
    %2301 = vmatprep.subr.mxu0 %v2155
    %2302 = vmatpush1.msra.mxu0 %v2154
    %2303 = vmatprep.subr.mxu0 %v2159
    %2304 = vmatpush1.msra.mxu0 %v2158
    %2305 = vmatprep.subr.mxu0 %v2163
    %2306 = vmatpush1.msra.mxu0 %v2162
    %2307 = vmatprep.subr.mxu0 %v2167
    %2308 = vmatpush1.msra.mxu0 %v2166
    %2309 = vmatprep.subr.mxu0 %v2171
    %2310 = vmatpush1.msra.mxu0 %v2170
    %2311 = vmatprep.subr.mxu0 %v2175
    %2312 = vmatpush1.msra.mxu0 %v2174
    %2313 = vmatprep.subr.mxu0 %v2179
    %2314 = vmatpush1.msra.mxu0 %v2178
    %2315 = vmatprep.subr.mxu0 %v2183
    %2316 = vmatpush1.msra.mxu0 %v2182
    %2317 = vmatprep.subr.mxu0 0.0
    %2318 = vmatpush1.msra.mxu0 0.0
    %2319 = vmatprep.subr.mxu0 0.0
    %2320 = vmatpush1.msra.mxu0 0.0
    %2321 = vmatprep.subr.mxu0 0.0
    %2322 = vmatpush1.msra.mxu0 0.0
    %2323 = vmatprep.subr.mxu0 0.0
    %2324 = vmatpush1.msra.mxu0 0.0
    %2325 = vmatprep.subr.mxu0 0.0
    %2326 = vmatpush1.msra.mxu0 0.0
    %2327 = vmatprep.subr.mxu0 0.0
    %2328 = vmatpush1.msra.mxu0 0.0
    %2329 = vmatprep.subr.mxu0 0.0
    %2330 = vmatpush1.msra.mxu0 0.0
    %2331 = vmatprep.subr.mxu0 0.0
    %2332 = vmatpush1.msra.mxu0 0.0
    %2333 = vmatprep.subr.mxu0 0.0
    %2334 = vmatpush1.msra.mxu0 0.0
    %2335 = vmatprep.subr.mxu0 0.0
    %2336 = vmatpush1.msra.mxu0 0.0
    %2337 = vmatprep.subr.mxu0 0.0
    %2338 = vmatpush1.msra.mxu0 0.0
    %2339 = vmatprep.subr.mxu0 0.0
    %2340 = vmatpush1.msra.mxu0 0.0
    %2341 = vmatprep.subr.mxu0 0.0
    %2342 = vmatpush1.msra.mxu0 0.0
    %2343 = vmatprep.subr.mxu0 0.0
    %2344 = vmatpush1.msra.mxu0 0.0
    %2345 = vmatprep.mubr.f32.mxu0 %v2184
    %2346 = vmatmul.mubr.f32.gmra.mrb[0].mxu0 %v2085
    %v2347 = vpop.f32.mrb[0].mxu0
    %v2348 = vadd.f32 0.0, %v2347
    %v2349 = vpop.f32.mrb[0].mxu0
    %v2350 = vadd.f32 0.0, %v2349
    %2351 = vmatprep.mubr.f32.mxu0 %v2186
    %2352 = vmatmul.mubr.f32.gmra.mrb[0].mxu0 %v2090
    %v2353 = vpop.f32.mrb[0].mxu0
    %v2354 = vadd.f32 0.0, %v2353
    %v2355 = vpop.f32.mrb[0].mxu0
    %v2356 = vadd.f32 0.0, %v2355
    %2357 = vmatprep.mubr.f32.mxu0 %v2188
    %2358 = vmatmul.mubr.f32.gmra.mrb[0].mxu0 %v2101
    %v2359 = vpop.f32.mrb[0].mxu0
    %v2360 = vadd.f32 0.0, %v2359
    %v2361 = vpop.f32.mrb[0].mxu0
    %v2362 = vadd.f32 0.0, %v2361
    %2363 = vmatprep.mubr.f32.mxu0 %v2190
    %2364 = vmatmul.mubr.f32.gmra.mrb[0].mxu0 %v2106
    %v2365 = vpop.f32.mrb[0].mxu0
    %v2366 = vadd.f32 0.0, %v2365
    %v2367 = vpop.f32.mrb[0].mxu0
    %v2368 = vadd.f32 0.0, %v2367
    %2369 = vdwg.mxu0
    %v2370 = vadd.f32 %v1960, %v2259
    %v2371 = vadd.f32 %v1962, %v2261
    %v2372 = vadd.f32 %v2049, %v2348
    %v2373 = vadd.f32 %v2051, %v2350
    %v2374 = vadd.f32 %v1966, %v2265
    %v2375 = vadd.f32 %v1968, %v2267
    %v2376 = vadd.f32 %v2055, %v2354
    %v2377 = vadd.f32 %v2057, %v2356
    %v2378 = vadd.f32 %v1972, %v2271
    %v2379 = vadd.f32 %v1974, %v2273
    %v2380 = vadd.f32 %v2061, %v2360
    %v2381 = vadd.f32 %v2063, %v2362
    %v2382 = vadd.f32 %v1978, %v2277
    %v2383 = vadd.f32 %v1980, %v2279
    %v2384 = vadd.f32 %v2067, %v2366
    %v2385 = vadd.f32 %v2069, %v2368
    %v2386 = vld [vmem:[%s6] sm:$0xf]
    %v2388 = vlaneseq
    %v2389 = vshrl.u32 %v2388, 7
    %v2390 = vsub.s32 0, %v2389
    %v2391 = vrot.slane %v2386, %v2390
    %v2392 = vlaneseq
    %v2393 = vshrl.u32 %v2392, 7
    %v2394 = vsub.s32 1, %v2393
    %v2395 = vrot.slane %v2386, %v2394
    %v2396 = vlaneseq
    %v2397 = vshrl.u32 %v2396, 7
    %v2398 = vsub.s32 2, %v2397
    %v2399 = vrot.slane %v2386, %v2398
    %v2400 = vlaneseq
    %v2401 = vshrl.u32 %v2400, 7
    %v2402 = vsub.s32 3, %v2401
    %v2403 = vrot.slane %v2386, %v2402
    %v2408 = vadd.f32 %v2370, %v2391
    %v2409 = vadd.f32 %v2371, %v2395
    %v2410 = vadd.f32 %v2372, %v2399
    %v2411 = vadd.f32 %v2373, %v2403
    %v2412 = vadd.f32 %v2374, %v2391
    %v2413 = vadd.f32 %v2375, %v2395
    %v2414 = vadd.f32 %v2376, %v2399
    %v2415 = vadd.f32 %v2377, %v2403
    %v2416 = vadd.f32 %v2378, %v2391
    %v2417 = vadd.f32 %v2379, %v2395
    %v2418 = vadd.f32 %v2380, %v2399
    %v2419 = vadd.f32 %v2381, %v2403
    %v2420 = vadd.f32 %v2382, %v2391
    %v2421 = vadd.f32 %v2383, %v2395
    %v2422 = vadd.f32 %v2384, %v2399
    %v2423 = vadd.f32 %v2385, %v2403
    %v2424 = vmax.f32 %v2408, 0.0
    %v2425 = vmax.f32 %v2409, 0.0
    %v2426 = vmax.f32 %v2410, 0.0
    %v2427 = vmax.f32 %v2411, 0.0
    %v2428 = vmax.f32 %v2412, 0.0
    %v2429 = vmax.f32 %v2413, 0.0
    %v2430 = vmax.f32 %v2414, 0.0
    %v2431 = vmax.f32 %v2415, 0.0
    %v2432 = vmax.f32 %v2416, 0.0
    %v2433 = vmax.f32 %v2417, 0.0
    %v2434 = vmax.f32 %v2418, 0.0
    %v2435 = vmax.f32 %v2419, 0.0
    %v2436 = vmax.f32 %v2420, 0.0
    %v2437 = vmax.f32 %v2421, 0.0
    %v2438 = vmax.f32 %v2422, 0.0
    %v2439 = vmax.f32 %v2423, 0.0
    %2440 = vst [vmem:[#allocation5] sm:$0xff] 0.0
    %2441 = vst [vmem:[#allocation5 + $0x8] sm:$0xff] 0.0
    %2442 = vst [vmem:[#allocation5 + $0x10] sm:$0xff] 0.0
    %2443 = vst [vmem:[#allocation5 + $0x18] sm:$0xff] 0.0
    %vm2444 = vcmask 523264
    %2445 = vst.msk [vmem:[#allocation5 + $0x20] sm:$0xff] %vm2444, 0.0
    %2446 = vst [vmem:[#allocation5 + $0x28] sm:$0xff] 0.0
    %2447 = vst [vmem:[#allocation5 + $0x30] sm:$0xff] 0.0
    %2448 = vst [vmem:[#allocation5 + $0x38] sm:$0xff] 0.0
    %2449 = vst [vmem:[#allocation5 + $0x40] sm:$0xff] 0.0
    %2450 = vst.msk [vmem:[#allocation5 + $0x48] sm:$0xff] %vm2444, 0.0
    %2451 = vst [vmem:[#allocation5 + $0x50] sm:$0xff] 0.0
    %2452 = vst [vmem:[#allocation5 + $0x58] sm:$0xff] 0.0
    %2453 = vst [vmem:[#allocation5 + $0x60] sm:$0xff] 0.0
    %2454 = vst [vmem:[#allocation5 + $0x68] sm:$0xff] 0.0
    %2455 = vst.msk [vmem:[#allocation5 + $0x70] sm:$0xff] %vm2444, 0.0
    %2456 = vst [vmem:[#allocation5 + $0x78] sm:$0xff] 0.0
    %2457 = vst [vmem:[#allocation5 + $0x80] sm:$0xff] 0.0
    %2458 = vst [vmem:[#allocation5 + $0x88] sm:$0xff] 0.0
    %2459 = vst [vmem:[#allocation5 + $0x90] sm:$0xff] 0.0
    %2460 = vst.msk [vmem:[#allocation5 + $0x98] sm:$0xff] %vm2444, 0.0
    %2461 = vst [vmem:[#allocation5 + $0xa0] sm:$0xf] 0.0
    %2462 = vst [vmem:[#allocation5 + $0xa8] sm:$0xf] 0.0
    %2463 = vst [vmem:[#allocation5 + $0xb0] sm:$0xf] 0.0
    %2464 = vst [vmem:[#allocation5 + $0xb8] sm:$0xf] 0.0
    %vm2465 = vcmask 519168
    %2466 = vst.msk [vmem:[#allocation5 + $0xc0] sm:$0xf] %vm2465, 0.0
    %v2475 = vrot.slane %v2424, 7
    %v2476 = vrot.slane %v2425, 7
    %v2477 = vrot.slane %v2426, 7
    %v2478 = vrot.slane %v2427, 7
    %v2479 = vrot.slane %v2428, 7
    %v2480 = vsel %vm490, %v2475, %v2479
    %v2481 = vrot.slane %v2429, 7
    %v2482 = vsel %vm490, %v2476, %v2481
    %v2483 = vrot.slane %v2430, 7
    %v2484 = vsel %vm490, %v2477, %v2483
    %v2485 = vrot.slane %v2431, 7
    %v2486 = vsel %vm490, %v2478, %v2485
    %2487 = vrot.lane.b32.xlu0 %v2475, 32
    %v2488 = vpop.permute.xlu0 %2487
    %2489 = vrot.lane.b32.xlu0 %v2476, 32
    %v2490 = vpop.permute.xlu0 %2489
    %2491 = vrot.lane.b32.xlu0 %v2477, 32
    %v2492 = vpop.permute.xlu0 %2491
    %2493 = vrot.lane.b32.xlu0 %v2478, 32
    %v2494 = vpop.permute.xlu0 %2493
    %2495 = vrot.lane.b32.xlu0 %v2480, 32
    %v2496 = vpop.permute.xlu0 %2495
    %2497 = vrot.lane.b32.xlu0 %v2482, 32
    %v2498 = vpop.permute.xlu0 %2497
    %2499 = vrot.lane.b32.xlu0 %v2484, 32
    %v2500 = vpop.permute.xlu0 %2499
    %2501 = vrot.lane.b32.xlu0 %v2486, 32
    %v2502 = vpop.permute.xlu0 %2501
    %2503 = vrot.lane.b32.xlu0 %v2479, 32
    %v2504 = vpop.permute.xlu0 %2503
    %2505 = vrot.lane.b32.xlu0 %v2481, 32
    %v2506 = vpop.permute.xlu0 %2505
    %2507 = vrot.lane.b32.xlu0 %v2483, 32
    %v2508 = vpop.permute.xlu0 %2507
    %2509 = vrot.lane.b32.xlu0 %v2485, 32
    %v2510 = vpop.permute.xlu0 %2509
    %v2511 = vsel %vm471, %v2488, %v2490
    %v2512 = vsel %vm471, %v2490, %v2492
    %v2513 = vsel %vm471, %v2492, %v2494
    %v2514 = vsel %vm471, %v2496, %v2498
    %v2515 = vsel %vm471, %v2498, %v2500
    %v2516 = vsel %vm471, %v2500, %v2502
    %v2517 = vsel %vm471, %v2504, %v2506
    %v2518 = vsel %vm471, %v2506, %v2508
    %v2519 = vsel %vm471, %v2508, %v2510
    %vm2535 = vcmask 1047809
    %2536 = vst.msk [vmem:[#allocation5] sm:$0xfe] %vm2535, %v2488
    %2537 = vst [vmem:[#allocation5 + $0x8] sm:$0xfe] %v2511
    %2538 = vst [vmem:[#allocation5 + $0x10] sm:$0xfe] %v2512
    %2539 = vst [vmem:[#allocation5 + $0x18] sm:$0xfe] %v2513
    %vm2540 = vcmask 261121
    %2541 = vst.msk [vmem:[#allocation5 + $0x20] sm:$0xfe] %vm2540, %v2494
    %vm2542 = vcmask 1047808
    %2543 = vst.msk [vmem:[#allocation5 + $0x28] sm:$0xff] %vm2542, %v2496
    %2544 = vst [vmem:[#allocation5 + $0x30] sm:$0xff] %v2514
    %2545 = vst [vmem:[#allocation5 + $0x38] sm:$0xff] %v2515
    %2546 = vst [vmem:[#allocation5 + $0x40] sm:$0xff] %v2516
    %2547 = vst.msk [vmem:[#allocation5 + $0x48] sm:$0xff] %vm471, %v2502
    %vm2548 = vcmask 1040640
    %2549 = vst.msk [vmem:[#allocation5 + $0x50] sm:$0x1] %vm2548, %v2504
    %2550 = vst [vmem:[#allocation5 + $0x58] sm:$0x1] %v2517
    %2551 = vst [vmem:[#allocation5 + $0x60] sm:$0x1] %v2518
    %2552 = vst [vmem:[#allocation5 + $0x68] sm:$0x1] %v2519
    %vm2553 = vcmask 253952
    %2554 = vst.msk [vmem:[#allocation5 + $0x70] sm:$0x1] %vm2553, %v2510
    %v2563 = vrot.slane %v2432, 5
    %v2564 = vrot.slane %v2433, 5
    %v2565 = vrot.slane %v2434, 5
    %v2566 = vrot.slane %v2435, 5
    %v2567 = vrot.slane %v2436, 5
    %v2568 = vsel %vm540, %v2563, %v2567
    %v2569 = vrot.slane %v2437, 5
    %v2570 = vsel %vm540, %v2564, %v2569
    %v2571 = vrot.slane %v2438, 5
    %v2572 = vsel %vm540, %v2565, %v2571
    %v2573 = vrot.slane %v2439, 5
    %v2574 = vsel %vm540, %v2566, %v2573
    %2575 = vrot.lane.b32.xlu0 %v2563, 32
    %v2576 = vpop.permute.xlu0 %2575
    %2577 = vrot.lane.b32.xlu0 %v2564, 32
    %v2578 = vpop.permute.xlu0 %2577
    %2579 = vrot.lane.b32.xlu0 %v2565, 32
    %v2580 = vpop.permute.xlu0 %2579
    %2581 = vrot.lane.b32.xlu0 %v2566, 32
    %v2582 = vpop.permute.xlu0 %2581
    %2583 = vrot.lane.b32.xlu0 %v2568, 32
    %v2584 = vpop.permute.xlu0 %2583
    %2585 = vrot.lane.b32.xlu0 %v2570, 32
    %v2586 = vpop.permute.xlu0 %2585
    %2587 = vrot.lane.b32.xlu0 %v2572, 32
    %v2588 = vpop.permute.xlu0 %2587
    %2589 = vrot.lane.b32.xlu0 %v2574, 32
    %v2590 = vpop.permute.xlu0 %2589
    %2591 = vrot.lane.b32.xlu0 %v2567, 32
    %v2592 = vpop.permute.xlu0 %2591
    %2593 = vrot.lane.b32.xlu0 %v2569, 32
    %v2594 = vpop.permute.xlu0 %2593
    %2595 = vrot.lane.b32.xlu0 %v2571, 32
    %v2596 = vpop.permute.xlu0 %2595
    %2597 = vrot.lane.b32.xlu0 %v2573, 32
    %v2598 = vpop.permute.xlu0 %2597
    %v2599 = vsel %vm471, %v2576, %v2578
    %v2600 = vsel %vm471, %v2578, %v2580
    %v2601 = vsel %vm471, %v2580, %v2582
    %v2602 = vsel %vm471, %v2584, %v2586
    %v2603 = vsel %vm471, %v2586, %v2588
    %v2604 = vsel %vm471, %v2588, %v2590
    %v2605 = vsel %vm471, %v2592, %v2594
    %v2606 = vsel %vm471, %v2594, %v2596
    %v2607 = vsel %vm471, %v2596, %v2598
    %vm2623 = vcmask 1047811
    %2624 = vst.msk [vmem:[#allocation5 + $0x50] sm:$0xf8] %vm2623, %v2576
    %2625 = vst [vmem:[#allocation5 + $0x58] sm:$0xf8] %v2599
    %2626 = vst [vmem:[#allocation5 + $0x60] sm:$0xf8] %v2600
    %2627 = vst [vmem:[#allocation5 + $0x68] sm:$0xf8] %v2601
    %vm2628 = vcmask 261123
    %2629 = vst.msk [vmem:[#allocation5 + $0x70] sm:$0xf8] %vm2628, %v2582
    %2630 = vst.msk [vmem:[#allocation5 + $0x78] sm:$0xff] %vm2542, %v2584
    %2631 = vst [vmem:[#allocation5 + $0x80] sm:$0xff] %v2602
    %2632 = vst [vmem:[#allocation5 + $0x88] sm:$0xff] %v2603
    %2633 = vst [vmem:[#allocation5 + $0x90] sm:$0xff] %v2604
    %2634 = vst.msk [vmem:[#allocation5 + $0x98] sm:$0xff] %vm471, %v2590
    %vm2635 = vcmask 1042688
    %2636 = vst.msk [vmem:[#allocation5 + $0xa0] sm:$0x7] %vm2635, %v2592
    %2637 = vst [vmem:[#allocation5 + $0xa8] sm:$0x7] %v2605
    %2638 = vst [vmem:[#allocation5 + $0xb0] sm:$0x7] %v2606
    %2639 = vst [vmem:[#allocation5 + $0xb8] sm:$0x7] %v2607
    %vm2640 = vcmask 256000
    %2641 = vst.msk [vmem:[#allocation5 + $0xc0] sm:$0x7] %vm2640, %v2598
    %v2642 = vld [vmem:[#allocation5] sm:$0xff]
    %v2643 = vld [vmem:[#allocation5 + $0x8] sm:$0xff]
    %v2644 = vld [vmem:[#allocation5 + $0x10] sm:$0xff]
    %v2645 = vld [vmem:[#allocation5 + $0x18] sm:$0xff]
    %v2646 = vld [vmem:[#allocation5 + $0x20] sm:$0xff]
    %v2647 = vld [vmem:[#allocation5 + $0x28] sm:$0xff]
    %v2648 = vld [vmem:[#allocation5 + $0x30] sm:$0xff]
    %v2649 = vld [vmem:[#allocation5 + $0x38] sm:$0xff]
    %v2650 = vld [vmem:[#allocation5 + $0x40] sm:$0xff]
    %v2651 = vld [vmem:[#allocation5 + $0x48] sm:$0xff]
    %v2652 = vld [vmem:[#allocation5 + $0x50] sm:$0xfc]
    %v2653 = vld [vmem:[#allocation5 + $0x58] sm:$0xfc]
    %v2654 = vld [vmem:[#allocation5 + $0x60] sm:$0xfc]
    %v2655 = vld [vmem:[#allocation5 + $0x68] sm:$0xfc]
    %v2656 = vld [vmem:[#allocation5 + $0x70] sm:$0xfc]
    %v2657 = vld [vmem:[#allocation5 + $0x78] sm:$0xff]
    %v2658 = vld [vmem:[#allocation5 + $0x80] sm:$0xff]
    %v2659 = vld [vmem:[#allocation5 + $0x88] sm:$0xff]
    %v2660 = vld [vmem:[#allocation5 + $0x90] sm:$0xff]
    %v2661 = vld [vmem:[#allocation5 + $0x98] sm:$0xff]
    %v2662 = vld [vmem:[#allocation5 + $0xa0] sm:$0x3]
    %v2663 = vld [vmem:[#allocation5 + $0xa8] sm:$0x3]
    %v2664 = vld [vmem:[#allocation5 + $0xb0] sm:$0x3]
    %v2665 = vld [vmem:[#allocation5 + $0xb8] sm:$0x3]
    %v2666 = vld [vmem:[#allocation5 + $0xc0] sm:$0x3]
    %v2682 = vrot.slane %v2652, 2
    %v2683 = vrot.slane %v2657, 2
    %v2684 = vsel %vm608, %v2682, %v2683
    %v2685 = vrot.slane %v2653, 2
    %v2686 = vrot.slane %v2658, 2
    %v2687 = vsel %vm608, %v2685, %v2686
    %v2688 = vrot.slane %v2654, 2
    %v2689 = vrot.slane %v2659, 2
    %v2690 = vsel %vm608, %v2688, %v2689
    %v2691 = vrot.slane %v2655, 2
    %v2692 = vrot.slane %v2660, 2
    %v2693 = vsel %vm608, %v2691, %v2692
    %v2694 = vrot.slane %v2656, 2
    %v2695 = vrot.slane %v2661, 2
    %v2696 = vsel %vm608, %v2694, %v2695
    %v2697 = vrot.slane %v2662, 2
    %v2698 = vsel %vm608, %v2683, %v2697
    %v2699 = vrot.slane %v2663, 2
    %v2700 = vsel %vm608, %v2686, %v2699
    %v2701 = vrot.slane %v2664, 2
    %v2702 = vsel %vm608, %v2689, %v2701
    %v2703 = vrot.slane %v2665, 2
    %v2704 = vsel %vm608, %v2692, %v2703
    %v2705 = vrot.slane %v2666, 2
    %v2706 = vsel %vm608, %v2695, %v2705
    %v2715 = vld [vmem:[%s7] sm:$0xff]
    %v2716 = vld [vmem:[%s7 + $0x8] sm:$0xff]
    %v2717 = vld [vmem:[%s7 + $0x10] sm:$0xff]
    %v2718 = vld [vmem:[%s7 + $0x18] sm:$0xff]
    %v2719 = vld [vmem:[%s7 + $0x20] sm:$0xff]
    %v2720 = vld [vmem:[%s7 + $0x28] sm:$0xff]
    %v2721 = vld [vmem:[%s7 + $0x30] sm:$0xff]
    %v2722 = vld [vmem:[%s7 + $0x38] sm:$0xff]
    %v2723 = vld [vmem:[%s7 + $0x40] sm:$0xff]
    %v2724 = vld [vmem:[%s7 + $0x48] sm:$0xff]
    %v2725 = vld [vmem:[%s7 + $0x50] sm:$0xff]
    %v2726 = vld [vmem:[%s7 + $0x58] sm:$0xff]
    %v2727 = vld [vmem:[%s7 + $0x60] sm:$0xff]
    %v2728 = vld [vmem:[%s7 + $0x68] sm:$0xff]
    %v2729 = vld [vmem:[%s7 + $0x70] sm:$0xff]
    %v2730 = vld [vmem:[%s7 + $0x78] sm:$0xff]
    %v2731 = vld [vmem:[%s7 + $0x80] sm:$0xff]
    %v2732 = vld [vmem:[%s7 + $0x88] sm:$0xff]
    %v2733 = vld [vmem:[%s7 + $0x90] sm:$0xff]
    %v2734 = vld [vmem:[%s7 + $0x98] sm:$0xff]
    %v2735 = vld [vmem:[%s7 + $0xa0] sm:$0xff]
    %v2736 = vld [vmem:[%s7 + $0xa8] sm:$0xff]
    %v2737 = vld [vmem:[%s7 + $0xb0] sm:$0xff]
    %v2738 = vld [vmem:[%s7 + $0xb8] sm:$0xff]
    %v2739 = vld [vmem:[%s7 + $0xc0] sm:$0xff]
    %v2740 = vld [vmem:[%s7 + $0xc8] sm:$0xff]
    %v2741 = vld [vmem:[%s7 + $0xd0] sm:$0xff]
    %v2742 = vld [vmem:[%s7 + $0xd8] sm:$0xff]
    %v2743 = vld [vmem:[%s7 + $0xe0] sm:$0xff]
    %v2744 = vld [vmem:[%s7 + $0xe8] sm:$0xff]
    %v2745 = vld [vmem:[%s7 + $0xf0] sm:$0xff]
    %v2746 = vld [vmem:[%s7 + $0xf8] sm:$0xff]
    %v2747 = vld [vmem:[%s7 + $0x100] sm:$0xff]
    %v2748 = vld [vmem:[%s7 + $0x108] sm:$0xff]
    %v2749 = vld [vmem:[%s7 + $0x110] sm:$0xff]
    %v2750 = vld [vmem:[%s7 + $0x118] sm:$0xff]
    %v2751 = vld [vmem:[%s7 + $0x120] sm:$0xff]
    %v2752 = vld [vmem:[%s7 + $0x128] sm:$0xff]
    %v2753 = vld [vmem:[%s7 + $0x130] sm:$0xff]
    %v2754 = vld [vmem:[%s7 + $0x138] sm:$0xff]
    %v2755 = vld [vmem:[%s7 + $0x140] sm:$0xff]
    %v2756 = vld [vmem:[%s7 + $0x148] sm:$0xff]
    %v2757 = vld [vmem:[%s7 + $0x150] sm:$0xff]
    %v2758 = vld [vmem:[%s7 + $0x158] sm:$0xff]
    %v2759 = vld [vmem:[%s7 + $0x160] sm:$0xff]
    %v2760 = vld [vmem:[%s7 + $0x168] sm:$0xff]
    %v2761 = vld [vmem:[%s7 + $0x170] sm:$0xff]
    %v2762 = vld [vmem:[%s7 + $0x178] sm:$0xff]
    %v2763 = vld [vmem:[%s7 + $0x180] sm:$0xff]
    %v2764 = vld [vmem:[%s7 + $0x188] sm:$0xff]
    %v2765 = vld [vmem:[%s7 + $0x190] sm:$0xff]
    %v2766 = vld [vmem:[%s7 + $0x198] sm:$0xff]
    %v2767 = vld [vmem:[%s7 + $0x1a0] sm:$0xff]
    %v2768 = vld [vmem:[%s7 + $0x1a8] sm:$0xff]
    %v2769 = vld [vmem:[%s7 + $0x1b0] sm:$0xff]
    %v2770 = vld [vmem:[%s7 + $0x1b8] sm:$0xff]
    %v2771 = vld [vmem:[%s7 + $0x1c0] sm:$0xff]
    %v2772 = vld [vmem:[%s7 + $0x1c8] sm:$0xff]
    %v2773 = vld [vmem:[%s7 + $0x1d0] sm:$0xff]
    %v2774 = vld [vmem:[%s7 + $0x1d8] sm:$0xff]
    %v2775 = vld [vmem:[%s7 + $0x1e0] sm:$0xff]
    %v2776 = vld [vmem:[%s7 + $0x1e8] sm:$0xff]
    %v2777 = vld [vmem:[%s7 + $0x1f0] sm:$0xff]
    %v2778 = vld [vmem:[%s7 + $0x1f8] sm:$0xff]
    %v2779 = vld [vmem:[%s7 + $0x200] sm:$0xff]
    %v2780 = vld [vmem:[%s7 + $0x208] sm:$0xff]
    %v2781 = vld [vmem:[%s7 + $0x210] sm:$0xff]
    %v2782 = vld [vmem:[%s7 + $0x218] sm:$0xff]
    %v2783 = vld [vmem:[%s7 + $0x220] sm:$0xff]
    %v2784 = vld [vmem:[%s7 + $0x228] sm:$0xff]
    %v2785 = vld [vmem:[%s7 + $0x230] sm:$0xff]
    %v2786 = vld [vmem:[%s7 + $0x238] sm:$0xff]
    %v2787 = vld [vmem:[#allocation5] sm:$0xfe]
    %v2788 = vld [vmem:[#allocation5 + $0x8] sm:$0xfe]
    %v2789 = vld [vmem:[#allocation5 + $0x10] sm:$0xfe]
    %v2790 = vld [vmem:[#allocation5 + $0x18] sm:$0xfe]
    %v2791 = vld [vmem:[#allocation5 + $0x20] sm:$0xfe]
    %v2792 = vld [vmem:[#allocation5 + $0x50] sm:$0x1]
    %v2793 = vld [vmem:[#allocation5 + $0x58] sm:$0x1]
    %v2794 = vld [vmem:[#allocation5 + $0x60] sm:$0x1]
    %v2795 = vld [vmem:[#allocation5 + $0x68] sm:$0x1]
    %v2796 = vld [vmem:[#allocation5 + $0x70] sm:$0x1]
    %v2797 = vld [vmem:[#allocation5 + $0x50] sm:$0xf8]
    %v2798 = vld [vmem:[#allocation5 + $0x58] sm:$0xf8]
    %v2799 = vld [vmem:[#allocation5 + $0x60] sm:$0xf8]
    %v2800 = vld [vmem:[#allocation5 + $0x68] sm:$0xf8]
    %v2801 = vld [vmem:[#allocation5 + $0x70] sm:$0xf8]
    %v2802 = vld [vmem:[#allocation5 + $0xa0] sm:$0x7]
    %v2803 = vld [vmem:[#allocation5 + $0xa8] sm:$0x7]
    %v2804 = vld [vmem:[#allocation5 + $0xb0] sm:$0x7]
    %v2805 = vld [vmem:[#allocation5 + $0xb8] sm:$0x7]
    %v2806 = vld [vmem:[#allocation5 + $0xc0] sm:$0x7]
    %v2822 = vrot.slane %v2787, 1
    %v2823 = vrot.slane %v2647, 1
    %v2824 = vsel %vm685, %v2822, %v2823
    %v2825 = vrot.slane %v2788, 1
    %v2826 = vrot.slane %v2648, 1
    %v2827 = vsel %vm685, %v2825, %v2826
    %v2828 = vrot.slane %v2789, 1
    %v2829 = vrot.slane %v2649, 1
    %v2830 = vsel %vm685, %v2828, %v2829
    %v2831 = vrot.slane %v2790, 1
    %v2832 = vrot.slane %v2650, 1
    %v2833 = vsel %vm685, %v2831, %v2832
    %v2834 = vrot.slane %v2791, 1
    %v2835 = vrot.slane %v2651, 1
    %v2836 = vsel %vm685, %v2834, %v2835
    %v2837 = vrot.slane %v2792, 1
    %v2838 = vsel %vm685, %v2823, %v2837
    %v2839 = vrot.slane %v2793, 1
    %v2840 = vsel %vm685, %v2826, %v2839
    %v2841 = vrot.slane %v2794, 1
    %v2842 = vsel %vm685, %v2829, %v2841
    %v2843 = vrot.slane %v2795, 1
    %v2844 = vsel %vm685, %v2832, %v2843
    %v2845 = vrot.slane %v2796, 1
    %v2846 = vsel %vm685, %v2835, %v2845
    %v2865 = vrot.slane %v2797, 3
    %v2866 = vrot.slane %v2657, 3
    %v2867 = vsel %vm711, %v2865, %v2866
    %v2868 = vrot.slane %v2798, 3
    %v2869 = vrot.slane %v2658, 3
    %v2870 = vsel %vm711, %v2868, %v2869
    %v2871 = vrot.slane %v2799, 3
    %v2872 = vrot.slane %v2659, 3
    %v2873 = vsel %vm711, %v2871, %v2872
    %v2874 = vrot.slane %v2800, 3
    %v2875 = vrot.slane %v2660, 3
    %v2876 = vsel %vm711, %v2874, %v2875
    %v2877 = vrot.slane %v2801, 3
    %v2878 = vrot.slane %v2661, 3
    %v2879 = vsel %vm711, %v2877, %v2878
    %v2880 = vrot.slane %v2802, 3
    %v2881 = vsel %vm711, %v2866, %v2880
    %v2882 = vrot.slane %v2803, 3
    %v2883 = vsel %vm711, %v2869, %v2882
    %v2884 = vrot.slane %v2804, 3
    %v2885 = vsel %vm711, %v2872, %v2884
    %v2886 = vrot.slane %v2805, 3
    %v2887 = vsel %vm711, %v2875, %v2886
    %v2888 = vrot.slane %v2806, 3
    %v2889 = vsel %vm711, %v2878, %v2888
    %s2898 = scalar_lea.vmem %s7, 576
    %v2899 = vld [vmem:[%s2898] sm:$0xff]
    %v2900 = vld [vmem:[%s2898 + $0x8] sm:$0xff]
    %v2901 = vld [vmem:[%s2898 + $0x10] sm:$0xff]
    %v2902 = vld [vmem:[%s2898 + $0x18] sm:$0xff]
    %v2903 = vld [vmem:[%s2898 + $0x20] sm:$0xff]
    %v2904 = vld [vmem:[%s2898 + $0x28] sm:$0xff]
    %v2905 = vld [vmem:[%s2898 + $0x30] sm:$0xff]
    %v2906 = vld [vmem:[%s2898 + $0x38] sm:$0xff]
    %v2907 = vld [vmem:[%s2898 + $0x40] sm:$0xff]
    %v2908 = vld [vmem:[%s2898 + $0x48] sm:$0xff]
    %v2909 = vld [vmem:[%s2898 + $0x50] sm:$0xff]
    %v2910 = vld [vmem:[%s2898 + $0x58] sm:$0xff]
    %v2911 = vld [vmem:[%s2898 + $0x60] sm:$0xff]
    %v2912 = vld [vmem:[%s2898 + $0x68] sm:$0xff]
    %v2913 = vld [vmem:[%s2898 + $0x70] sm:$0xff]
    %v2914 = vld [vmem:[%s2898 + $0x78] sm:$0xff]
    %v2915 = vld [vmem:[%s2898 + $0x80] sm:$0xff]
    %v2916 = vld [vmem:[%s2898 + $0x88] sm:$0xff]
    %v2917 = vld [vmem:[%s2898 + $0x90] sm:$0xff]
    %v2918 = vld [vmem:[%s2898 + $0x98] sm:$0xff]
    %v2919 = vld [vmem:[%s2898 + $0xa0] sm:$0xff]
    %v2920 = vld [vmem:[%s2898 + $0xa8] sm:$0xff]
    %v2921 = vld [vmem:[%s2898 + $0xb0] sm:$0xff]
    %v2922 = vld [vmem:[%s2898 + $0xb8] sm:$0xff]
    %v2923 = vld [vmem:[%s2898 + $0xc0] sm:$0xff]
    %v2924 = vld [vmem:[%s2898 + $0xc8] sm:$0xff]
    %v2925 = vld [vmem:[%s2898 + $0xd0] sm:$0xff]
    %v2926 = vld [vmem:[%s2898 + $0xd8] sm:$0xff]
    %v2927 = vld [vmem:[%s2898 + $0xe0] sm:$0xff]
    %v2928 = vld [vmem:[%s2898 + $0xe8] sm:$0xff]
    %v2929 = vld [vmem:[%s2898 + $0xf0] sm:$0xff]
    %v2930 = vld [vmem:[%s2898 + $0xf8] sm:$0xff]
    %v2931 = vld [vmem:[%s2898 + $0x100] sm:$0xff]
    %v2932 = vld [vmem:[%s2898 + $0x108] sm:$0xff]
    %v2933 = vld [vmem:[%s2898 + $0x110] sm:$0xff]
    %v2934 = vld [vmem:[%s2898 + $0x118] sm:$0xff]
    %v2935 = vld [vmem:[%s2898 + $0x120] sm:$0xff]
    %v2936 = vld [vmem:[%s2898 + $0x128] sm:$0xff]
    %v2937 = vld [vmem:[%s2898 + $0x130] sm:$0xff]
    %v2938 = vld [vmem:[%s2898 + $0x138] sm:$0xff]
    %v2939 = vld [vmem:[%s2898 + $0x140] sm:$0xff]
    %v2940 = vld [vmem:[%s2898 + $0x148] sm:$0xff]
    %v2941 = vld [vmem:[%s2898 + $0x150] sm:$0xff]
    %v2942 = vld [vmem:[%s2898 + $0x158] sm:$0xff]
    %v2943 = vld [vmem:[%s2898 + $0x160] sm:$0xff]
    %v2944 = vld [vmem:[%s2898 + $0x168] sm:$0xff]
    %v2945 = vld [vmem:[%s2898 + $0x170] sm:$0xff]
    %v2946 = vld [vmem:[%s2898 + $0x178] sm:$0xff]
    %v2947 = vld [vmem:[%s2898 + $0x180] sm:$0xff]
    %v2948 = vld [vmem:[%s2898 + $0x188] sm:$0xff]
    %v2949 = vld [vmem:[%s2898 + $0x190] sm:$0xff]
    %v2950 = vld [vmem:[%s2898 + $0x198] sm:$0xff]
    %v2951 = vld [vmem:[%s2898 + $0x1a0] sm:$0xff]
    %v2952 = vld [vmem:[%s2898 + $0x1a8] sm:$0xff]
    %v2953 = vld [vmem:[%s2898 + $0x1b0] sm:$0xff]
    %v2954 = vld [vmem:[%s2898 + $0x1b8] sm:$0xff]
    %v2955 = vld [vmem:[%s2898 + $0x1c0] sm:$0xff]
    %v2956 = vld [vmem:[%s2898 + $0x1c8] sm:$0xff]
    %v2957 = vld [vmem:[%s2898 + $0x1d0] sm:$0xff]
    %v2958 = vld [vmem:[%s2898 + $0x1d8] sm:$0xff]
    %v2959 = vld [vmem:[%s2898 + $0x1e0] sm:$0xff]
    %v2960 = vld [vmem:[%s2898 + $0x1e8] sm:$0xff]
    %v2961 = vld [vmem:[%s2898 + $0x1f0] sm:$0xff]
    %v2962 = vld [vmem:[%s2898 + $0x1f8] sm:$0xff]
    %v2963 = vld [vmem:[%s2898 + $0x200] sm:$0xff]
    %v2964 = vld [vmem:[%s2898 + $0x208] sm:$0xff]
    %v2965 = vld [vmem:[%s2898 + $0x210] sm:$0xff]
    %v2966 = vld [vmem:[%s2898 + $0x218] sm:$0xff]
    %v2967 = vld [vmem:[%s2898 + $0x220] sm:$0xff]
    %v2968 = vld [vmem:[%s2898 + $0x228] sm:$0xff]
    %v2969 = vld [vmem:[%s2898 + $0x230] sm:$0xff]
    %v2970 = vld [vmem:[%s2898 + $0x238] sm:$0xff]
    %v2971 = vsel %vm2444, %v2836, 0
    %v2973 = vsel %vm2444, %v2846, 0
    %v2975 = vsel %vm2444, %v2879, 0
    %v2977 = vsel %vm2444, %v2889, 0
    %2979 = vmatprep.subr.mxu0 0.0
    %2980 = vmatpush1.msra.mxu0 %v2899
    %2981 = vmatprep.subr.mxu0 0.0
    %2982 = vmatpush1.msra.mxu0 %v2900
    %2983 = vmatprep.subr.mxu0 0.0
    %2984 = vmatpush1.msra.mxu0 %v2901
    %2985 = vmatprep.subr.mxu0 0.0
    %2986 = vmatpush1.msra.mxu0 %v2902
    %2987 = vmatprep.subr.mxu0 0.0
    %2988 = vmatpush1.msra.mxu0 %v2903
    %2989 = vmatprep.subr.mxu0 0.0
    %2990 = vmatpush1.msra.mxu0 %v2904
    %2991 = vmatprep.subr.mxu0 0.0
    %2992 = vmatpush1.msra.mxu0 %v2905
    %2993 = vmatprep.subr.mxu0 0.0
    %2994 = vmatpush1.msra.mxu0 %v2906
    %2995 = vmatprep.subr.mxu0 0.0
    %2996 = vmatpush1.msra.mxu0 %v2907
    %2997 = vmatprep.subr.mxu0 0.0
    %2998 = vmatpush1.msra.mxu0 %v2908
    %2999 = vmatprep.subr.mxu0 0.0
    %3000 = vmatpush1.msra.mxu0 %v2909
    %3001 = vmatprep.subr.mxu0 0.0
    %3002 = vmatpush1.msra.mxu0 %v2910
    %3003 = vmatprep.subr.mxu0 0.0
    %3004 = vmatpush1.msra.mxu0 %v2911
    %3005 = vmatprep.subr.mxu0 0.0
    %3006 = vmatpush1.msra.mxu0 %v2912
    %3007 = vmatprep.subr.mxu0 0.0
    %3008 = vmatpush1.msra.mxu0 %v2913
    %3009 = vmatprep.subr.mxu0 0.0
    %3010 = vmatpush1.msra.mxu0 %v2914
    %3011 = vmatprep.subr.mxu0 0.0
    %3012 = vmatpush1.msra.mxu0 %v2915
    %3013 = vmatprep.subr.mxu0 0.0
    %3014 = vmatpush1.msra.mxu0 %v2916
    %3015 = vmatprep.subr.mxu0 0.0
    %3016 = vmatpush1.msra.mxu0 %v2917
    %3017 = vmatprep.subr.mxu0 0.0
    %3018 = vmatpush1.msra.mxu0 %v2918
    %3019 = vmatprep.subr.mxu0 0.0
    %3020 = vmatpush1.msra.mxu0 %v2919
    %3021 = vmatprep.subr.mxu0 0.0
    %3022 = vmatpush1.msra.mxu0 %v2920
    %3023 = vmatprep.subr.mxu0 0.0
    %3024 = vmatpush1.msra.mxu0 %v2921
    %3025 = vmatprep.subr.mxu0 0.0
    %3026 = vmatpush1.msra.mxu0 %v2922
    %3027 = vmatprep.subr.mxu0 0.0
    %3028 = vmatpush1.msra.mxu0 %v2923
    %3029 = vmatprep.subr.mxu0 0.0
    %3030 = vmatpush1.msra.mxu0 %v2924
    %3031 = vmatprep.subr.mxu0 0.0
    %3032 = vmatpush1.msra.mxu0 %v2925
    %3033 = vmatprep.subr.mxu0 0.0
    %3034 = vmatpush1.msra.mxu0 %v2926
    %3035 = vmatprep.subr.mxu0 0.0
    %3036 = vmatpush1.msra.mxu0 %v2927
    %3037 = vmatprep.subr.mxu0 0.0
    %3038 = vmatpush1.msra.mxu0 %v2928
    %3039 = vmatprep.subr.mxu0 0.0
    %3040 = vmatpush1.msra.mxu0 %v2929
    %3041 = vmatprep.subr.mxu0 0.0
    %3042 = vmatpush1.msra.mxu0 %v2930
    %3043 = vmatprep.mubr.f32.mxu0 %v2827
    %3044 = vmatmul.mubr.f32.gmra.mrb[0].mxu0 %v2824
    %v3045 = vpop.f32.mrb[0].mxu0
    %v3046 = vadd.f32 0.0, %v3045
    %v3047 = vpop.f32.mrb[0].mxu0
    %3048 = vmatprep.mubr.f32.mxu0 %v2840
    %3049 = vmatmul.mubr.f32.gmra.mrb[0].mxu0 %v2838
    %v3050 = vpop.f32.mrb[0].mxu0
    %v3051 = vadd.f32 0.0, %v3050
    %v3052 = vpop.f32.mrb[0].mxu0
    %3053 = vmatprep.mubr.f32.mxu0 %v2870
    %3054 = vmatmul.mubr.f32.gmra.mrb[0].mxu0 %v2867
    %v3055 = vpop.f32.mrb[0].mxu0
    %v3056 = vadd.f32 0.0, %v3055
    %v3057 = vpop.f32.mrb[0].mxu0
    %3058 = vmatprep.mubr.f32.mxu0 %v2883
    %3059 = vmatmul.mubr.f32.gmra.mrb[0].mxu0 %v2881
    %v3060 = vpop.f32.mrb[0].mxu0
    %v3061 = vadd.f32 0.0, %v3060
    %v3062 = vpop.f32.mrb[0].mxu0
    %3063 = vdwg.mxu0
    %3064 = vmatprep.subr.mxu0 0.0
    %3065 = vmatpush1.msra.mxu0 %v2931
    %3066 = vmatprep.subr.mxu0 0.0
    %3067 = vmatpush1.msra.mxu0 %v2932
    %3068 = vmatprep.subr.mxu0 0.0
    %3069 = vmatpush1.msra.mxu0 %v2933
    %3070 = vmatprep.subr.mxu0 0.0
    %3071 = vmatpush1.msra.mxu0 %v2934
    %3072 = vmatprep.subr.mxu0 0.0
    %3073 = vmatpush1.msra.mxu0 %v2935
    %3074 = vmatprep.subr.mxu0 0.0
    %3075 = vmatpush1.msra.mxu0 %v2936
    %3076 = vmatprep.subr.mxu0 0.0
    %3077 = vmatpush1.msra.mxu0 %v2937
    %3078 = vmatprep.subr.mxu0 0.0
    %3079 = vmatpush1.msra.mxu0 %v2938
    %3080 = vmatprep.subr.mxu0 0.0
    %3081 = vmatpush1.msra.mxu0 %v2939
    %3082 = vmatprep.subr.mxu0 0.0
    %3083 = vmatpush1.msra.mxu0 %v2940
    %3084 = vmatprep.subr.mxu0 0.0
    %3085 = vmatpush1.msra.mxu0 %v2941
    %3086 = vmatprep.subr.mxu0 0.0
    %3087 = vmatpush1.msra.mxu0 %v2942
    %3088 = vmatprep.subr.mxu0 0.0
    %3089 = vmatpush1.msra.mxu0 %v2943
    %3090 = vmatprep.subr.mxu0 0.0
    %3091 = vmatpush1.msra.mxu0 %v2944
    %3092 = vmatprep.subr.mxu0 0.0
    %3093 = vmatpush1.msra.mxu0 %v2945
    %3094 = vmatprep.subr.mxu0 0.0
    %3095 = vmatpush1.msra.mxu0 %v2946
    %3096 = vmatprep.subr.mxu0 0.0
    %3097 = vmatpush1.msra.mxu0 %v2947
    %3098 = vmatprep.subr.mxu0 0.0
    %3099 = vmatpush1.msra.mxu0 %v2948
    %3100 = vmatprep.subr.mxu0 0.0
    %3101 = vmatpush1.msra.mxu0 %v2949
    %3102 = vmatprep.subr.mxu0 0.0
    %3103 = vmatpush1.msra.mxu0 %v2950
    %3104 = vmatprep.subr.mxu0 0.0
    %3105 = vmatpush1.msra.mxu0 %v2951
    %3106 = vmatprep.subr.mxu0 0.0
    %3107 = vmatpush1.msra.mxu0 %v2952
    %3108 = vmatprep.subr.mxu0 0.0
    %3109 = vmatpush1.msra.mxu0 %v2953
    %3110 = vmatprep.subr.mxu0 0.0
    %3111 = vmatpush1.msra.mxu0 %v2954
    %3112 = vmatprep.subr.mxu0 0.0
    %3113 = vmatpush1.msra.mxu0 %v2955
    %3114 = vmatprep.subr.mxu0 0.0
    %3115 = vmatpush1.msra.mxu0 %v2956
    %3116 = vmatprep.subr.mxu0 0.0
    %3117 = vmatpush1.msra.mxu0 %v2957
    %3118 = vmatprep.subr.mxu0 0.0
    %3119 = vmatpush1.msra.mxu0 %v2958
    %3120 = vmatprep.subr.mxu0 0.0
    %3121 = vmatpush1.msra.mxu0 %v2959
    %3122 = vmatprep.subr.mxu0 0.0
    %3123 = vmatpush1.msra.mxu0 %v2960
    %3124 = vmatprep.subr.mxu0 0.0
    %3125 = vmatpush1.msra.mxu0 %v2961
    %3126 = vmatprep.subr.mxu0 0.0
    %3127 = vmatpush1.msra.mxu0 %v2962
    %3128 = vmatprep.mubr.f32.mxu0 %v2833
    %3129 = vmatmul.mubr.f32.gmra.mrb[0].mxu0 %v2830
    %v3130 = vpop.f32.mrb[0].mxu0
    %v3131 = vadd.f32 %v3046, %v3130
    %v3132 = vpop.f32.mrb[0].mxu0
    %3133 = vmatprep.mubr.f32.mxu0 %v2844
    %3134 = vmatmul.mubr.f32.gmra.mrb[0].mxu0 %v2842
    %v3135 = vpop.f32.mrb[0].mxu0
    %v3136 = vadd.f32 %v3051, %v3135
    %v3137 = vpop.f32.mrb[0].mxu0
    %3138 = vmatprep.mubr.f32.mxu0 %v2876
    %3139 = vmatmul.mubr.f32.gmra.mrb[0].mxu0 %v2873
    %v3140 = vpop.f32.mrb[0].mxu0
    %v3141 = vadd.f32 %v3056, %v3140
    %v3142 = vpop.f32.mrb[0].mxu0
    %3143 = vmatprep.mubr.f32.mxu0 %v2887
    %3144 = vmatmul.mubr.f32.gmra.mrb[0].mxu0 %v2885
    %v3145 = vpop.f32.mrb[0].mxu0
    %v3146 = vadd.f32 %v3061, %v3145
    %v3147 = vpop.f32.mrb[0].mxu0
    %3148 = vdwg.mxu0
    %3149 = vmatprep.subr.mxu0 0.0
    %3150 = vmatpush1.msra.mxu0 %v2963
    %3151 = vmatprep.subr.mxu0 0.0
    %3152 = vmatpush1.msra.mxu0 %v2964
    %3153 = vmatprep.subr.mxu0 0.0
    %3154 = vmatpush1.msra.mxu0 %v2965
    %3155 = vmatprep.subr.mxu0 0.0
    %3156 = vmatpush1.msra.mxu0 %v2966
    %3157 = vmatprep.subr.mxu0 0.0
    %3158 = vmatpush1.msra.mxu0 %v2967
    %3159 = vmatprep.subr.mxu0 0.0
    %3160 = vmatpush1.msra.mxu0 %v2968
    %3161 = vmatprep.subr.mxu0 0.0
    %3162 = vmatpush1.msra.mxu0 %v2969
    %3163 = vmatprep.subr.mxu0 0.0
    %3164 = vmatpush1.msra.mxu0 %v2970
    %3165 = vmatprep.subr.mxu0 0.0
    %3166 = vmatpush1.msra.mxu0 0.0
    %3167 = vmatprep.subr.mxu0 0.0
    %3168 = vmatpush1.msra.mxu0 0.0
    %3169 = vmatprep.subr.mxu0 0.0
    %3170 = vmatpush1.msra.mxu0 0.0
    %3171 = vmatprep.subr.mxu0 0.0
    %3172 = vmatpush1.msra.mxu0 0.0
    %3173 = vmatprep.subr.mxu0 0.0
    %3174 = vmatpush1.msra.mxu0 0.0
    %3175 = vmatprep.subr.mxu0 0.0
    %3176 = vmatpush1.msra.mxu0 0.0
    %3177 = vmatprep.subr.mxu0 0.0
    %3178 = vmatpush1.msra.mxu0 0.0
    %3179 = vmatprep.subr.mxu0 0.0
    %3180 = vmatpush1.msra.mxu0 0.0
    %3181 = vmatprep.subr.mxu0 0.0
    %3182 = vmatpush1.msra.mxu0 0.0
    %3183 = vmatprep.subr.mxu0 0.0
    %3184 = vmatpush1.msra.mxu0 0.0
    %3185 = vmatprep.subr.mxu0 0.0
    %3186 = vmatpush1.msra.mxu0 0.0
    %3187 = vmatprep.subr.mxu0 0.0
    %3188 = vmatpush1.msra.mxu0 0.0
    %3189 = vmatprep.subr.mxu0 0.0
    %3190 = vmatpush1.msra.mxu0 0.0
    %3191 = vmatprep.subr.mxu0 0.0
    %3192 = vmatpush1.msra.mxu0 0.0
    %3193 = vmatprep.subr.mxu0 0.0
    %3194 = vmatpush1.msra.mxu0 0.0
    %3195 = vmatprep.subr.mxu0 0.0
    %3196 = vmatpush1.msra.mxu0 0.0
    %3197 = vmatprep.subr.mxu0 0.0
    %3198 = vmatpush1.msra.mxu0 0.0
    %3199 = vmatprep.subr.mxu0 0.0
    %3200 = vmatpush1.msra.mxu0 0.0
    %3201 = vmatprep.subr.mxu0 0.0
    %3202 = vmatpush1.msra.mxu0 0.0
    %3203 = vmatprep.subr.mxu0 0.0
    %3204 = vmatpush1.msra.mxu0 0.0
    %3205 = vmatprep.subr.mxu0 0.0
    %3206 = vmatpush1.msra.mxu0 0.0
    %3207 = vmatprep.subr.mxu0 0.0
    %3208 = vmatpush1.msra.mxu0 0.0
    %3209 = vmatprep.subr.mxu0 0.0
    %3210 = vmatpush1.msra.mxu0 0.0
    %3211 = vmatprep.subr.mxu0 0.0
    %3212 = vmatpush1.msra.mxu0 0.0
    %3213 = vmatprep.mubr.f32.mxu0 0.0
    %3214 = vmatmul.mubr.f32.gmra.mrb[0].mxu0 %v2971
    %v3215 = vpop.f32.mrb[0].mxu0
    %v3216 = vadd.f32 %v3131, %v3215
    %v3217 = vpop.f32.mrb[0].mxu0
    %3218 = vmatprep.mubr.f32.mxu0 0.0
    %3219 = vmatmul.mubr.f32.gmra.mrb[0].mxu0 %v2973
    %v3220 = vpop.f32.mrb[0].mxu0
    %v3221 = vadd.f32 %v3136, %v3220
    %v3222 = vpop.f32.mrb[0].mxu0
    %3223 = vmatprep.mubr.f32.mxu0 0.0
    %3224 = vmatmul.mubr.f32.gmra.mrb[0].mxu0 %v2975
    %v3225 = vpop.f32.mrb[0].mxu0
    %v3226 = vadd.f32 %v3141, %v3225
    %v3227 = vpop.f32.mrb[0].mxu0
    %3228 = vmatprep.mubr.f32.mxu0 0.0
    %3229 = vmatmul.mubr.f32.gmra.mrb[0].mxu0 %v2977
    %v3230 = vpop.f32.mrb[0].mxu0
    %v3231 = vadd.f32 %v3146, %v3230
    %v3232 = vpop.f32.mrb[0].mxu0
    %3233 = vdwg.mxu0
    %v3235 = vsel %vm2444, %v2646, 0
    %v3237 = vsel %vm2444, %v2651, 0
    %v3239 = vsel %vm2444, %v2696, 0
    %v3241 = vsel %vm2444, %v2706, 0
    %3243 = vmatprep.subr.mxu0 0.0
    %3244 = vmatpush1.msra.mxu0 %v2715
    %3245 = vmatprep.subr.mxu0 0.0
    %3246 = vmatpush1.msra.mxu0 %v2716
    %3247 = vmatprep.subr.mxu0 0.0
    %3248 = vmatpush1.msra.mxu0 %v2717
    %3249 = vmatprep.subr.mxu0 0.0
    %3250 = vmatpush1.msra.mxu0 %v2718
    %3251 = vmatprep.subr.mxu0 0.0
    %3252 = vmatpush1.msra.mxu0 %v2719
    %3253 = vmatprep.subr.mxu0 0.0
    %3254 = vmatpush1.msra.mxu0 %v2720
    %3255 = vmatprep.subr.mxu0 0.0
    %3256 = vmatpush1.msra.mxu0 %v2721
    %3257 = vmatprep.subr.mxu0 0.0
    %3258 = vmatpush1.msra.mxu0 %v2722
    %3259 = vmatprep.subr.mxu0 0.0
    %3260 = vmatpush1.msra.mxu0 %v2723
    %3261 = vmatprep.subr.mxu0 0.0
    %3262 = vmatpush1.msra.mxu0 %v2724
    %3263 = vmatprep.subr.mxu0 0.0
    %3264 = vmatpush1.msra.mxu0 %v2725
    %3265 = vmatprep.subr.mxu0 0.0
    %3266 = vmatpush1.msra.mxu0 %v2726
    %3267 = vmatprep.subr.mxu0 0.0
    %3268 = vmatpush1.msra.mxu0 %v2727
    %3269 = vmatprep.subr.mxu0 0.0
    %3270 = vmatpush1.msra.mxu0 %v2728
    %3271 = vmatprep.subr.mxu0 0.0
    %3272 = vmatpush1.msra.mxu0 %v2729
    %3273 = vmatprep.subr.mxu0 0.0
    %3274 = vmatpush1.msra.mxu0 %v2730
    %3275 = vmatprep.subr.mxu0 0.0
    %3276 = vmatpush1.msra.mxu0 %v2731
    %3277 = vmatprep.subr.mxu0 0.0
    %3278 = vmatpush1.msra.mxu0 %v2732
    %3279 = vmatprep.subr.mxu0 0.0
    %3280 = vmatpush1.msra.mxu0 %v2733
    %3281 = vmatprep.subr.mxu0 0.0
    %3282 = vmatpush1.msra.mxu0 %v2734
    %3283 = vmatprep.subr.mxu0 0.0
    %3284 = vmatpush1.msra.mxu0 %v2735
    %3285 = vmatprep.subr.mxu0 0.0
    %3286 = vmatpush1.msra.mxu0 %v2736
    %3287 = vmatprep.subr.mxu0 0.0
    %3288 = vmatpush1.msra.mxu0 %v2737
    %3289 = vmatprep.subr.mxu0 0.0
    %3290 = vmatpush1.msra.mxu0 %v2738
    %3291 = vmatprep.subr.mxu0 0.0
    %3292 = vmatpush1.msra.mxu0 %v2739
    %3293 = vmatprep.subr.mxu0 0.0
    %3294 = vmatpush1.msra.mxu0 %v2740
    %3295 = vmatprep.subr.mxu0 0.0
    %3296 = vmatpush1.msra.mxu0 %v2741
    %3297 = vmatprep.subr.mxu0 0.0
    %3298 = vmatpush1.msra.mxu0 %v2742
    %3299 = vmatprep.subr.mxu0 0.0
    %3300 = vmatpush1.msra.mxu0 %v2743
    %3301 = vmatprep.subr.mxu0 0.0
    %3302 = vmatpush1.msra.mxu0 %v2744
    %3303 = vmatprep.subr.mxu0 0.0
    %3304 = vmatpush1.msra.mxu0 %v2745
    %3305 = vmatprep.subr.mxu0 0.0
    %3306 = vmatpush1.msra.mxu0 %v2746
    %3307 = vmatprep.mubr.f32.mxu0 %v2643
    %3308 = vmatmul.mubr.f32.gmra.mrb[0].mxu0 %v2642
    %v3309 = vpop.f32.mrb[0].mxu0
    %v3310 = vadd.f32 %v3216, %v3309
    %v3311 = vpop.f32.mrb[0].mxu0
    %3312 = vmatprep.mubr.f32.mxu0 %v2648
    %3313 = vmatmul.mubr.f32.gmra.mrb[0].mxu0 %v2647
    %v3314 = vpop.f32.mrb[0].mxu0
    %v3315 = vadd.f32 %v3221, %v3314
    %v3316 = vpop.f32.mrb[0].mxu0
    %3317 = vmatprep.mubr.f32.mxu0 %v2687
    %3318 = vmatmul.mubr.f32.gmra.mrb[0].mxu0 %v2684
    %v3319 = vpop.f32.mrb[0].mxu0
    %v3320 = vadd.f32 %v3226, %v3319
    %v3321 = vpop.f32.mrb[0].mxu0
    %3322 = vmatprep.mubr.f32.mxu0 %v2700
    %3323 = vmatmul.mubr.f32.gmra.mrb[0].mxu0 %v2698
    %v3324 = vpop.f32.mrb[0].mxu0
    %v3325 = vadd.f32 %v3231, %v3324
    %v3326 = vpop.f32.mrb[0].mxu0
    %3327 = vdwg.mxu0
    %3328 = vmatprep.subr.mxu0 0.0
    %3329 = vmatpush1.msra.mxu0 %v2747
    %3330 = vmatprep.subr.mxu0 0.0
    %3331 = vmatpush1.msra.mxu0 %v2748
    %3332 = vmatprep.subr.mxu0 0.0
    %3333 = vmatpush1.msra.mxu0 %v2749
    %3334 = vmatprep.subr.mxu0 0.0
    %3335 = vmatpush1.msra.mxu0 %v2750
    %3336 = vmatprep.subr.mxu0 0.0
    %3337 = vmatpush1.msra.mxu0 %v2751
    %3338 = vmatprep.subr.mxu0 0.0
    %3339 = vmatpush1.msra.mxu0 %v2752
    %3340 = vmatprep.subr.mxu0 0.0
    %3341 = vmatpush1.msra.mxu0 %v2753
    %3342 = vmatprep.subr.mxu0 0.0
    %3343 = vmatpush1.msra.mxu0 %v2754
    %3344 = vmatprep.subr.mxu0 0.0
    %3345 = vmatpush1.msra.mxu0 %v2755
    %3346 = vmatprep.subr.mxu0 0.0
    %3347 = vmatpush1.msra.mxu0 %v2756
    %3348 = vmatprep.subr.mxu0 0.0
    %3349 = vmatpush1.msra.mxu0 %v2757
    %3350 = vmatprep.subr.mxu0 0.0
    %3351 = vmatpush1.msra.mxu0 %v2758
    %3352 = vmatprep.subr.mxu0 0.0
    %3353 = vmatpush1.msra.mxu0 %v2759
    %3354 = vmatprep.subr.mxu0 0.0
    %3355 = vmatpush1.msra.mxu0 %v2760
    %3356 = vmatprep.subr.mxu0 0.0
    %3357 = vmatpush1.msra.mxu0 %v2761
    %3358 = vmatprep.subr.mxu0 0.0
    %3359 = vmatpush1.msra.mxu0 %v2762
    %3360 = vmatprep.subr.mxu0 0.0
    %3361 = vmatpush1.msra.mxu0 %v2763
    %3362 = vmatprep.subr.mxu0 0.0
    %3363 = vmatpush1.msra.mxu0 %v2764
    %3364 = vmatprep.subr.mxu0 0.0
    %3365 = vmatpush1.msra.mxu0 %v2765
    %3366 = vmatprep.subr.mxu0 0.0
    %3367 = vmatpush1.msra.mxu0 %v2766
    %3368 = vmatprep.subr.mxu0 0.0
    %3369 = vmatpush1.msra.mxu0 %v2767
    %3370 = vmatprep.subr.mxu0 0.0
    %3371 = vmatpush1.msra.mxu0 %v2768
    %3372 = vmatprep.subr.mxu0 0.0
    %3373 = vmatpush1.msra.mxu0 %v2769
    %3374 = vmatprep.subr.mxu0 0.0
    %3375 = vmatpush1.msra.mxu0 %v2770
    %3376 = vmatprep.subr.mxu0 0.0
    %3377 = vmatpush1.msra.mxu0 %v2771
    %3378 = vmatprep.subr.mxu0 0.0
    %3379 = vmatpush1.msra.mxu0 %v2772
    %3380 = vmatprep.subr.mxu0 0.0
    %3381 = vmatpush1.msra.mxu0 %v2773
    %3382 = vmatprep.subr.mxu0 0.0
    %3383 = vmatpush1.msra.mxu0 %v2774
    %3384 = vmatprep.subr.mxu0 0.0
    %3385 = vmatpush1.msra.mxu0 %v2775
    %3386 = vmatprep.subr.mxu0 0.0
    %3387 = vmatpush1.msra.mxu0 %v2776
    %3388 = vmatprep.subr.mxu0 0.0
    %3389 = vmatpush1.msra.mxu0 %v2777
    %3390 = vmatprep.subr.mxu0 0.0
    %3391 = vmatpush1.msra.mxu0 %v2778
    %3392 = vmatprep.mubr.f32.mxu0 %v2645
    %3393 = vmatmul.mubr.f32.gmra.mrb[0].mxu0 %v2644
    %v3394 = vpop.f32.mrb[0].mxu0
    %v3395 = vadd.f32 %v3310, %v3394
    %v3396 = vpop.f32.mrb[0].mxu0
    %3397 = vmatprep.mubr.f32.mxu0 %v2650
    %3398 = vmatmul.mubr.f32.gmra.mrb[0].mxu0 %v2649
    %v3399 = vpop.f32.mrb[0].mxu0
    %v3400 = vadd.f32 %v3315, %v3399
    %v3401 = vpop.f32.mrb[0].mxu0
    %3402 = vmatprep.mubr.f32.mxu0 %v2693
    %3403 = vmatmul.mubr.f32.gmra.mrb[0].mxu0 %v2690
    %v3404 = vpop.f32.mrb[0].mxu0
    %v3405 = vadd.f32 %v3320, %v3404
    %v3406 = vpop.f32.mrb[0].mxu0
    %3407 = vmatprep.mubr.f32.mxu0 %v2704
    %3408 = vmatmul.mubr.f32.gmra.mrb[0].mxu0 %v2702
    %v3409 = vpop.f32.mrb[0].mxu0
    %v3410 = vadd.f32 %v3325, %v3409
    %v3411 = vpop.f32.mrb[0].mxu0
    %3412 = vdwg.mxu0
    %3413 = vmatprep.subr.mxu0 0.0
    %3414 = vmatpush1.msra.mxu0 %v2779
    %3415 = vmatprep.subr.mxu0 0.0
    %3416 = vmatpush1.msra.mxu0 %v2780
    %3417 = vmatprep.subr.mxu0 0.0
    %3418 = vmatpush1.msra.mxu0 %v2781
    %3419 = vmatprep.subr.mxu0 0.0
    %3420 = vmatpush1.msra.mxu0 %v2782
    %3421 = vmatprep.subr.mxu0 0.0
    %3422 = vmatpush1.msra.mxu0 %v2783
    %3423 = vmatprep.subr.mxu0 0.0
    %3424 = vmatpush1.msra.mxu0 %v2784
    %3425 = vmatprep.subr.mxu0 0.0
    %3426 = vmatpush1.msra.mxu0 %v2785
    %3427 = vmatprep.subr.mxu0 0.0
    %3428 = vmatpush1.msra.mxu0 %v2786
    %3429 = vmatprep.subr.mxu0 0.0
    %3430 = vmatpush1.msra.mxu0 0.0
    %3431 = vmatprep.subr.mxu0 0.0
    %3432 = vmatpush1.msra.mxu0 0.0
    %3433 = vmatprep.subr.mxu0 0.0
    %3434 = vmatpush1.msra.mxu0 0.0
    %3435 = vmatprep.subr.mxu0 0.0
    %3436 = vmatpush1.msra.mxu0 0.0
    %3437 = vmatprep.subr.mxu0 0.0
    %3438 = vmatpush1.msra.mxu0 0.0
    %3439 = vmatprep.subr.mxu0 0.0
    %3440 = vmatpush1.msra.mxu0 0.0
    %3441 = vmatprep.subr.mxu0 0.0
    %3442 = vmatpush1.msra.mxu0 0.0
    %3443 = vmatprep.subr.mxu0 0.0
    %3444 = vmatpush1.msra.mxu0 0.0
    %3445 = vmatprep.subr.mxu0 0.0
    %3446 = vmatpush1.msra.mxu0 0.0
    %3447 = vmatprep.subr.mxu0 0.0
    %3448 = vmatpush1.msra.mxu0 0.0
    %3449 = vmatprep.subr.mxu0 0.0
    %3450 = vmatpush1.msra.mxu0 0.0
    %3451 = vmatprep.subr.mxu0 0.0
    %3452 = vmatpush1.msra.mxu0 0.0
    %3453 = vmatprep.subr.mxu0 0.0
    %3454 = vmatpush1.msra.mxu0 0.0
    %3455 = vmatprep.subr.mxu0 0.0
    %3456 = vmatpush1.msra.mxu0 0.0
    %3457 = vmatprep.subr.mxu0 0.0
    %3458 = vmatpush1.msra.mxu0 0.0
    %3459 = vmatprep.subr.mxu0 0.0
    %3460 = vmatpush1.msra.mxu0 0.0
    %3461 = vmatprep.subr.mxu0 0.0
    %3462 = vmatpush1.msra.mxu0 0.0
    %3463 = vmatprep.subr.mxu0 0.0
    %3464 = vmatpush1.msra.mxu0 0.0
    %3465 = vmatprep.subr.mxu0 0.0
    %3466 = vmatpush1.msra.mxu0 0.0
    %3467 = vmatprep.subr.mxu0 0.0
    %3468 = vmatpush1.msra.mxu0 0.0
    %3469 = vmatprep.subr.mxu0 0.0
    %3470 = vmatpush1.msra.mxu0 0.0
    %3471 = vmatprep.subr.mxu0 0.0
    %3472 = vmatpush1.msra.mxu0 0.0
    %3473 = vmatprep.subr.mxu0 0.0
    %3474 = vmatpush1.msra.mxu0 0.0
    %3475 = vmatprep.subr.mxu0 0.0
    %3476 = vmatpush1.msra.mxu0 0.0
    %3477 = vmatprep.mubr.f32.mxu0 0.0
    %3478 = vmatmul.mubr.f32.gmra.mrb[0].mxu0 %v3235
    %v3479 = vpop.f32.mrb[0].mxu0
    %v3480 = vadd.f32 %v3395, %v3479
    %v3481 = vpop.f32.mrb[0].mxu0
    %3482 = vmatprep.mubr.f32.mxu0 0.0
    %3483 = vmatmul.mubr.f32.gmra.mrb[0].mxu0 %v3237
    %v3484 = vpop.f32.mrb[0].mxu0
    %v3485 = vadd.f32 %v3400, %v3484
    %v3486 = vpop.f32.mrb[0].mxu0
    %3487 = vmatprep.mubr.f32.mxu0 0.0
    %3488 = vmatmul.mubr.f32.gmra.mrb[0].mxu0 %v3239
    %v3489 = vpop.f32.mrb[0].mxu0
    %v3490 = vadd.f32 %v3405, %v3489
    %v3491 = vpop.f32.mrb[0].mxu0
    %3492 = vmatprep.mubr.f32.mxu0 0.0
    %3493 = vmatmul.mubr.f32.gmra.mrb[0].mxu0 %v3241
    %v3494 = vpop.f32.mrb[0].mxu0
    %v3495 = vadd.f32 %v3410, %v3494
    %v3496 = vpop.f32.mrb[0].mxu0
    %3497 = vdwg.mxu0
    %v3498 = vld [vmem:[#allocation5] sm:$0xfc]
    %v3499 = vld [vmem:[#allocation5 + $0x8] sm:$0xfc]
    %v3500 = vld [vmem:[#allocation5 + $0x10] sm:$0xfc]
    %v3501 = vld [vmem:[#allocation5 + $0x18] sm:$0xfc]
    %v3502 = vld [vmem:[#allocation5 + $0x20] sm:$0xfc]
    %v3503 = vld [vmem:[#allocation5 + $0x50] sm:$0x3]
    %v3504 = vld [vmem:[#allocation5 + $0x58] sm:$0x3]
    %v3505 = vld [vmem:[#allocation5 + $0x60] sm:$0x3]
    %v3506 = vld [vmem:[#allocation5 + $0x68] sm:$0x3]
    %v3507 = vld [vmem:[#allocation5 + $0x70] sm:$0x3]
    %v3508 = vld [vmem:[#allocation5 + $0x50] sm:$0xf0]
    %v3509 = vld [vmem:[#allocation5 + $0x58] sm:$0xf0]
    %v3510 = vld [vmem:[#allocation5 + $0x60] sm:$0xf0]
    %v3511 = vld [vmem:[#allocation5 + $0x68] sm:$0xf0]
    %v3512 = vld [vmem:[#allocation5 + $0x70] sm:$0xf0]
    %v3513 = vld [vmem:[#allocation5 + $0xa0] sm:$0xf]
    %v3514 = vld [vmem:[#allocation5 + $0xa8] sm:$0xf]
    %v3515 = vld [vmem:[#allocation5 + $0xb0] sm:$0xf]
    %v3516 = vld [vmem:[#allocation5 + $0xb8] sm:$0xf]
    %v3517 = vld [vmem:[#allocation5 + $0xc0] sm:$0xf]
    %v3528 = vrot.slane %v3498, 2
    %v3529 = vrot.slane %v2647, 2
    %v3530 = vsel %vm608, %v3528, %v3529
    %v3531 = vrot.slane %v3499, 2
    %v3532 = vrot.slane %v2648, 2
    %v3533 = vsel %vm608, %v3531, %v3532
    %v3534 = vrot.slane %v3500, 2
    %v3535 = vrot.slane %v2649, 2
    %v3536 = vsel %vm608, %v3534, %v3535
    %v3537 = vrot.slane %v3501, 2
    %v3538 = vrot.slane %v2650, 2
    %v3539 = vsel %vm608, %v3537, %v3538
    %v3540 = vrot.slane %v3502, 2
    %v3541 = vrot.slane %v2651, 2
    %v3542 = vsel %vm608, %v3540, %v3541
    %v3543 = vrot.slane %v3503, 2
    %v3544 = vsel %vm608, %v3529, %v3543
    %v3545 = vrot.slane %v3504, 2
    %v3546 = vsel %vm608, %v3532, %v3545
    %v3547 = vrot.slane %v3505, 2
    %v3548 = vsel %vm608, %v3535, %v3547
    %v3549 = vrot.slane %v3506, 2
    %v3550 = vsel %vm608, %v3538, %v3549
    %v3551 = vrot.slane %v3507, 2
    %v3552 = vsel %vm608, %v3541, %v3551
    %v3571 = vrot.slane %v3508, 4
    %v3572 = vrot.slane %v2657, 4
    %v3573 = vsel %vm1168, %v3571, %v3572
    %v3574 = vrot.slane %v3509, 4
    %v3575 = vrot.slane %v2658, 4
    %v3576 = vsel %vm1168, %v3574, %v3575
    %v3577 = vrot.slane %v3510, 4
    %v3578 = vrot.slane %v2659, 4
    %v3579 = vsel %vm1168, %v3577, %v3578
    %v3580 = vrot.slane %v3511, 4
    %v3581 = vrot.slane %v2660, 4
    %v3582 = vsel %vm1168, %v3580, %v3581
    %v3583 = vrot.slane %v3512, 4
    %v3584 = vrot.slane %v2661, 4
    %v3585 = vsel %vm1168, %v3583, %v3584
    %v3586 = vrot.slane %v3513, 4
    %v3587 = vsel %vm1168, %v3572, %v3586
    %v3588 = vrot.slane %v3514, 4
    %v3589 = vsel %vm1168, %v3575, %v3588
    %v3590 = vrot.slane %v3515, 4
    %v3591 = vsel %vm1168, %v3578, %v3590
    %v3592 = vrot.slane %v3516, 4
    %v3593 = vsel %vm1168, %v3581, %v3592
    %v3594 = vrot.slane %v3517, 4
    %v3595 = vsel %vm1168, %v3584, %v3594
    %s3604 = scalar_lea.vmem %s7, 1152
    %v3605 = vld [vmem:[%s3604] sm:$0xff]
    %v3606 = vld [vmem:[%s3604 + $0x8] sm:$0xff]
    %v3607 = vld [vmem:[%s3604 + $0x10] sm:$0xff]
    %v3608 = vld [vmem:[%s3604 + $0x18] sm:$0xff]
    %v3609 = vld [vmem:[%s3604 + $0x20] sm:$0xff]
    %v3610 = vld [vmem:[%s3604 + $0x28] sm:$0xff]
    %v3611 = vld [vmem:[%s3604 + $0x30] sm:$0xff]
    %v3612 = vld [vmem:[%s3604 + $0x38] sm:$0xff]
    %v3613 = vld [vmem:[%s3604 + $0x40] sm:$0xff]
    %v3614 = vld [vmem:[%s3604 + $0x48] sm:$0xff]
    %v3615 = vld [vmem:[%s3604 + $0x50] sm:$0xff]
    %v3616 = vld [vmem:[%s3604 + $0x58] sm:$0xff]
    %v3617 = vld [vmem:[%s3604 + $0x60] sm:$0xff]
    %v3618 = vld [vmem:[%s3604 + $0x68] sm:$0xff]
    %v3619 = vld [vmem:[%s3604 + $0x70] sm:$0xff]
    %v3620 = vld [vmem:[%s3604 + $0x78] sm:$0xff]
    %v3621 = vld [vmem:[%s3604 + $0x80] sm:$0xff]
    %v3622 = vld [vmem:[%s3604 + $0x88] sm:$0xff]
    %v3623 = vld [vmem:[%s3604 + $0x90] sm:$0xff]
    %v3624 = vld [vmem:[%s3604 + $0x98] sm:$0xff]
    %v3625 = vld [vmem:[%s3604 + $0xa0] sm:$0xff]
    %v3626 = vld [vmem:[%s3604 + $0xa8] sm:$0xff]
    %v3627 = vld [vmem:[%s3604 + $0xb0] sm:$0xff]
    %v3628 = vld [vmem:[%s3604 + $0xb8] sm:$0xff]
    %v3629 = vld [vmem:[%s3604 + $0xc0] sm:$0xff]
    %v3630 = vld [vmem:[%s3604 + $0xc8] sm:$0xff]
    %v3631 = vld [vmem:[%s3604 + $0xd0] sm:$0xff]
    %v3632 = vld [vmem:[%s3604 + $0xd8] sm:$0xff]
    %v3633 = vld [vmem:[%s3604 + $0xe0] sm:$0xff]
    %v3634 = vld [vmem:[%s3604 + $0xe8] sm:$0xff]
    %v3635 = vld [vmem:[%s3604 + $0xf0] sm:$0xff]
    %v3636 = vld [vmem:[%s3604 + $0xf8] sm:$0xff]
    %v3637 = vld [vmem:[%s3604 + $0x100] sm:$0xff]
    %v3638 = vld [vmem:[%s3604 + $0x108] sm:$0xff]
    %v3639 = vld [vmem:[%s3604 + $0x110] sm:$0xff]
    %v3640 = vld [vmem:[%s3604 + $0x118] sm:$0xff]
    %v3641 = vld [vmem:[%s3604 + $0x120] sm:$0xff]
    %v3642 = vld [vmem:[%s3604 + $0x128] sm:$0xff]
    %v3643 = vld [vmem:[%s3604 + $0x130] sm:$0xff]
    %v3644 = vld [vmem:[%s3604 + $0x138] sm:$0xff]
    %v3645 = vld [vmem:[%s3604 + $0x140] sm:$0xff]
    %v3646 = vld [vmem:[%s3604 + $0x148] sm:$0xff]
    %v3647 = vld [vmem:[%s3604 + $0x150] sm:$0xff]
    %v3648 = vld [vmem:[%s3604 + $0x158] sm:$0xff]
    %v3649 = vld [vmem:[%s3604 + $0x160] sm:$0xff]
    %v3650 = vld [vmem:[%s3604 + $0x168] sm:$0xff]
    %v3651 = vld [vmem:[%s3604 + $0x170] sm:$0xff]
    %v3652 = vld [vmem:[%s3604 + $0x178] sm:$0xff]
    %v3653 = vld [vmem:[%s3604 + $0x180] sm:$0xff]
    %v3654 = vld [vmem:[%s3604 + $0x188] sm:$0xff]
    %v3655 = vld [vmem:[%s3604 + $0x190] sm:$0xff]
    %v3656 = vld [vmem:[%s3604 + $0x198] sm:$0xff]
    %v3657 = vld [vmem:[%s3604 + $0x1a0] sm:$0xff]
    %v3658 = vld [vmem:[%s3604 + $0x1a8] sm:$0xff]
    %v3659 = vld [vmem:[%s3604 + $0x1b0] sm:$0xff]
    %v3660 = vld [vmem:[%s3604 + $0x1b8] sm:$0xff]
    %v3661 = vld [vmem:[%s3604 + $0x1c0] sm:$0xff]
    %v3662 = vld [vmem:[%s3604 + $0x1c8] sm:$0xff]
    %v3663 = vld [vmem:[%s3604 + $0x1d0] sm:$0xff]
    %v3664 = vld [vmem:[%s3604 + $0x1d8] sm:$0xff]
    %v3665 = vld [vmem:[%s3604 + $0x1e0] sm:$0xff]
    %v3666 = vld [vmem:[%s3604 + $0x1e8] sm:$0xff]
    %v3667 = vld [vmem:[%s3604 + $0x1f0] sm:$0xff]
    %v3668 = vld [vmem:[%s3604 + $0x1f8] sm:$0xff]
    %v3669 = vld [vmem:[%s3604 + $0x200] sm:$0xff]
    %v3670 = vld [vmem:[%s3604 + $0x208] sm:$0xff]
    %v3671 = vld [vmem:[%s3604 + $0x210] sm:$0xff]
    %v3672 = vld [vmem:[%s3604 + $0x218] sm:$0xff]
    %v3673 = vld [vmem:[%s3604 + $0x220] sm:$0xff]
    %v3674 = vld [vmem:[%s3604 + $0x228] sm:$0xff]
    %v3675 = vld [vmem:[%s3604 + $0x230] sm:$0xff]
    %v3676 = vld [vmem:[%s3604 + $0x238] sm:$0xff]
    %v3677 = vsel %vm2444, %v3542, 0
    %v3679 = vsel %vm2444, %v3552, 0
    %v3681 = vsel %vm2444, %v3585, 0
    %v3683 = vsel %vm2444, %v3595, 0
    %3685 = vmatprep.subr.mxu0 0.0
    %3686 = vmatpush1.msra.mxu0 %v3605
    %3687 = vmatprep.subr.mxu0 0.0
    %3688 = vmatpush1.msra.mxu0 %v3606
    %3689 = vmatprep.subr.mxu0 0.0
    %3690 = vmatpush1.msra.mxu0 %v3607
    %3691 = vmatprep.subr.mxu0 0.0
    %3692 = vmatpush1.msra.mxu0 %v3608
    %3693 = vmatprep.subr.mxu0 0.0
    %3694 = vmatpush1.msra.mxu0 %v3609
    %3695 = vmatprep.subr.mxu0 0.0
    %3696 = vmatpush1.msra.mxu0 %v3610
    %3697 = vmatprep.subr.mxu0 0.0
    %3698 = vmatpush1.msra.mxu0 %v3611
    %3699 = vmatprep.subr.mxu0 0.0
    %3700 = vmatpush1.msra.mxu0 %v3612
    %3701 = vmatprep.subr.mxu0 0.0
    %3702 = vmatpush1.msra.mxu0 %v3613
    %3703 = vmatprep.subr.mxu0 0.0
    %3704 = vmatpush1.msra.mxu0 %v3614
    %3705 = vmatprep.subr.mxu0 0.0
    %3706 = vmatpush1.msra.mxu0 %v3615
    %3707 = vmatprep.subr.mxu0 0.0
    %3708 = vmatpush1.msra.mxu0 %v3616
    %3709 = vmatprep.subr.mxu0 0.0
    %3710 = vmatpush1.msra.mxu0 %v3617
    %3711 = vmatprep.subr.mxu0 0.0
    %3712 = vmatpush1.msra.mxu0 %v3618
    %3713 = vmatprep.subr.mxu0 0.0
    %3714 = vmatpush1.msra.mxu0 %v3619
    %3715 = vmatprep.subr.mxu0 0.0
    %3716 = vmatpush1.msra.mxu0 %v3620
    %3717 = vmatprep.subr.mxu0 0.0
    %3718 = vmatpush1.msra.mxu0 %v3621
    %3719 = vmatprep.subr.mxu0 0.0
    %3720 = vmatpush1.msra.mxu0 %v3622
    %3721 = vmatprep.subr.mxu0 0.0
    %3722 = vmatpush1.msra.mxu0 %v3623
    %3723 = vmatprep.subr.mxu0 0.0
    %3724 = vmatpush1.msra.mxu0 %v3624
    %3725 = vmatprep.subr.mxu0 0.0
    %3726 = vmatpush1.msra.mxu0 %v3625
    %3727 = vmatprep.subr.mxu0 0.0
    %3728 = vmatpush1.msra.mxu0 %v3626
    %3729 = vmatprep.subr.mxu0 0.0
    %3730 = vmatpush1.msra.mxu0 %v3627
    %3731 = vmatprep.subr.mxu0 0.0
    %3732 = vmatpush1.msra.mxu0 %v3628
    %3733 = vmatprep.subr.mxu0 0.0
    %3734 = vmatpush1.msra.mxu0 %v3629
    %3735 = vmatprep.subr.mxu0 0.0
    %3736 = vmatpush1.msra.mxu0 %v3630
    %3737 = vmatprep.subr.mxu0 0.0
    %3738 = vmatpush1.msra.mxu0 %v3631
    %3739 = vmatprep.subr.mxu0 0.0
    %3740 = vmatpush1.msra.mxu0 %v3632
    %3741 = vmatprep.subr.mxu0 0.0
    %3742 = vmatpush1.msra.mxu0 %v3633
    %3743 = vmatprep.subr.mxu0 0.0
    %3744 = vmatpush1.msra.mxu0 %v3634
    %3745 = vmatprep.subr.mxu0 0.0
    %3746 = vmatpush1.msra.mxu0 %v3635
    %3747 = vmatprep.subr.mxu0 0.0
    %3748 = vmatpush1.msra.mxu0 %v3636
    %3749 = vmatprep.mubr.f32.mxu0 %v3533
    %3750 = vmatmul.mubr.f32.gmra.mrb[0].mxu0 %v3530
    %v3751 = vpop.f32.mrb[0].mxu0
    %v3752 = vadd.f32 0.0, %v3751
    %v3753 = vpop.f32.mrb[0].mxu0
    %3754 = vmatprep.mubr.f32.mxu0 %v3546
    %3755 = vmatmul.mubr.f32.gmra.mrb[0].mxu0 %v3544
    %v3756 = vpop.f32.mrb[0].mxu0
    %v3757 = vadd.f32 0.0, %v3756
    %v3758 = vpop.f32.mrb[0].mxu0
    %3759 = vmatprep.mubr.f32.mxu0 %v3576
    %3760 = vmatmul.mubr.f32.gmra.mrb[0].mxu0 %v3573
    %v3761 = vpop.f32.mrb[0].mxu0
    %v3762 = vadd.f32 0.0, %v3761
    %v3763 = vpop.f32.mrb[0].mxu0
    %3764 = vmatprep.mubr.f32.mxu0 %v3589
    %3765 = vmatmul.mubr.f32.gmra.mrb[0].mxu0 %v3587
    %v3766 = vpop.f32.mrb[0].mxu0
    %v3767 = vadd.f32 0.0, %v3766
    %v3768 = vpop.f32.mrb[0].mxu0
    %3769 = vdwg.mxu0
    %3770 = vmatprep.subr.mxu0 0.0
    %3771 = vmatpush1.msra.mxu0 %v3637
    %3772 = vmatprep.subr.mxu0 0.0
    %3773 = vmatpush1.msra.mxu0 %v3638
    %3774 = vmatprep.subr.mxu0 0.0
    %3775 = vmatpush1.msra.mxu0 %v3639
    %3776 = vmatprep.subr.mxu0 0.0
    %3777 = vmatpush1.msra.mxu0 %v3640
    %3778 = vmatprep.subr.mxu0 0.0
    %3779 = vmatpush1.msra.mxu0 %v3641
    %3780 = vmatprep.subr.mxu0 0.0
    %3781 = vmatpush1.msra.mxu0 %v3642
    %3782 = vmatprep.subr.mxu0 0.0
    %3783 = vmatpush1.msra.mxu0 %v3643
    %3784 = vmatprep.subr.mxu0 0.0
    %3785 = vmatpush1.msra.mxu0 %v3644
    %3786 = vmatprep.subr.mxu0 0.0
    %3787 = vmatpush1.msra.mxu0 %v3645
    %3788 = vmatprep.subr.mxu0 0.0
    %3789 = vmatpush1.msra.mxu0 %v3646
    %3790 = vmatprep.subr.mxu0 0.0
    %3791 = vmatpush1.msra.mxu0 %v3647
    %3792 = vmatprep.subr.mxu0 0.0
    %3793 = vmatpush1.msra.mxu0 %v3648
    %3794 = vmatprep.subr.mxu0 0.0
    %3795 = vmatpush1.msra.mxu0 %v3649
    %3796 = vmatprep.subr.mxu0 0.0
    %3797 = vmatpush1.msra.mxu0 %v3650
    %3798 = vmatprep.subr.mxu0 0.0
    %3799 = vmatpush1.msra.mxu0 %v3651
    %3800 = vmatprep.subr.mxu0 0.0
    %3801 = vmatpush1.msra.mxu0 %v3652
    %3802 = vmatprep.subr.mxu0 0.0
    %3803 = vmatpush1.msra.mxu0 %v3653
    %3804 = vmatprep.subr.mxu0 0.0
    %3805 = vmatpush1.msra.mxu0 %v3654
    %3806 = vmatprep.subr.mxu0 0.0
    %3807 = vmatpush1.msra.mxu0 %v3655
    %3808 = vmatprep.subr.mxu0 0.0
    %3809 = vmatpush1.msra.mxu0 %v3656
    %3810 = vmatprep.subr.mxu0 0.0
    %3811 = vmatpush1.msra.mxu0 %v3657
    %3812 = vmatprep.subr.mxu0 0.0
    %3813 = vmatpush1.msra.mxu0 %v3658
    %3814 = vmatprep.subr.mxu0 0.0
    %3815 = vmatpush1.msra.mxu0 %v3659
    %3816 = vmatprep.subr.mxu0 0.0
    %3817 = vmatpush1.msra.mxu0 %v3660
    %3818 = vmatprep.subr.mxu0 0.0
    %3819 = vmatpush1.msra.mxu0 %v3661
    %3820 = vmatprep.subr.mxu0 0.0
    %3821 = vmatpush1.msra.mxu0 %v3662
    %3822 = vmatprep.subr.mxu0 0.0
    %3823 = vmatpush1.msra.mxu0 %v3663
    %3824 = vmatprep.subr.mxu0 0.0
    %3825 = vmatpush1.msra.mxu0 %v3664
    %3826 = vmatprep.subr.mxu0 0.0
    %3827 = vmatpush1.msra.mxu0 %v3665
    %3828 = vmatprep.subr.mxu0 0.0
    %3829 = vmatpush1.msra.mxu0 %v3666
    %3830 = vmatprep.subr.mxu0 0.0
    %3831 = vmatpush1.msra.mxu0 %v3667
    %3832 = vmatprep.subr.mxu0 0.0
    %3833 = vmatpush1.msra.mxu0 %v3668
    %3834 = vmatprep.mubr.f32.mxu0 %v3539
    %3835 = vmatmul.mubr.f32.gmra.mrb[0].mxu0 %v3536
    %v3836 = vpop.f32.mrb[0].mxu0
    %v3837 = vadd.f32 %v3752, %v3836
    %v3838 = vpop.f32.mrb[0].mxu0
    %3839 = vmatprep.mubr.f32.mxu0 %v3550
    %3840 = vmatmul.mubr.f32.gmra.mrb[0].mxu0 %v3548
    %v3841 = vpop.f32.mrb[0].mxu0
    %v3842 = vadd.f32 %v3757, %v3841
    %v3843 = vpop.f32.mrb[0].mxu0
    %3844 = vmatprep.mubr.f32.mxu0 %v3582
    %3845 = vmatmul.mubr.f32.gmra.mrb[0].mxu0 %v3579
    %v3846 = vpop.f32.mrb[0].mxu0
    %v3847 = vadd.f32 %v3762, %v3846
    %v3848 = vpop.f32.mrb[0].mxu0
    %3849 = vmatprep.mubr.f32.mxu0 %v3593
    %3850 = vmatmul.mubr.f32.gmra.mrb[0].mxu0 %v3591
    %v3851 = vpop.f32.mrb[0].mxu0
    %v3852 = vadd.f32 %v3767, %v3851
    %v3853 = vpop.f32.mrb[0].mxu0
    %3854 = vdwg.mxu0
    %3855 = vmatprep.subr.mxu0 0.0
    %3856 = vmatpush1.msra.mxu0 %v3669
    %3857 = vmatprep.subr.mxu0 0.0
    %3858 = vmatpush1.msra.mxu0 %v3670
    %3859 = vmatprep.subr.mxu0 0.0
    %3860 = vmatpush1.msra.mxu0 %v3671
    %3861 = vmatprep.subr.mxu0 0.0
    %3862 = vmatpush1.msra.mxu0 %v3672
    %3863 = vmatprep.subr.mxu0 0.0
    %3864 = vmatpush1.msra.mxu0 %v3673
    %3865 = vmatprep.subr.mxu0 0.0
    %3866 = vmatpush1.msra.mxu0 %v3674
    %3867 = vmatprep.subr.mxu0 0.0
    %3868 = vmatpush1.msra.mxu0 %v3675
    %3869 = vmatprep.subr.mxu0 0.0
    %3870 = vmatpush1.msra.mxu0 %v3676
    %3871 = vmatprep.subr.mxu0 0.0
    %3872 = vmatpush1.msra.mxu0 0.0
    %3873 = vmatprep.subr.mxu0 0.0
    %3874 = vmatpush1.msra.mxu0 0.0
    %3875 = vmatprep.subr.mxu0 0.0
    %3876 = vmatpush1.msra.mxu0 0.0
    %3877 = vmatprep.subr.mxu0 0.0
    %3878 = vmatpush1.msra.mxu0 0.0
    %3879 = vmatprep.subr.mxu0 0.0
    %3880 = vmatpush1.msra.mxu0 0.0
    %3881 = vmatprep.subr.mxu0 0.0
    %3882 = vmatpush1.msra.mxu0 0.0
    %3883 = vmatprep.subr.mxu0 0.0
    %3884 = vmatpush1.msra.mxu0 0.0
    %3885 = vmatprep.subr.mxu0 0.0
    %3886 = vmatpush1.msra.mxu0 0.0
    %3887 = vmatprep.subr.mxu0 0.0
    %3888 = vmatpush1.msra.mxu0 0.0
    %3889 = vmatprep.subr.mxu0 0.0
    %3890 = vmatpush1.msra.mxu0 0.0
    %3891 = vmatprep.subr.mxu0 0.0
    %3892 = vmatpush1.msra.mxu0 0.0
    %3893 = vmatprep.subr.mxu0 0.0
    %3894 = vmatpush1.msra.mxu0 0.0
    %3895 = vmatprep.subr.mxu0 0.0
    %3896 = vmatpush1.msra.mxu0 0.0
    %3897 = vmatprep.subr.mxu0 0.0
    %3898 = vmatpush1.msra.mxu0 0.0
    %3899 = vmatprep.subr.mxu0 0.0
    %3900 = vmatpush1.msra.mxu0 0.0
    %3901 = vmatprep.subr.mxu0 0.0
    %3902 = vmatpush1.msra.mxu0 0.0
    %3903 = vmatprep.subr.mxu0 0.0
    %3904 = vmatpush1.msra.mxu0 0.0
    %3905 = vmatprep.subr.mxu0 0.0
    %3906 = vmatpush1.msra.mxu0 0.0
    %3907 = vmatprep.subr.mxu0 0.0
    %3908 = vmatpush1.msra.mxu0 0.0
    %3909 = vmatprep.subr.mxu0 0.0
    %3910 = vmatpush1.msra.mxu0 0.0
    %3911 = vmatprep.subr.mxu0 0.0
    %3912 = vmatpush1.msra.mxu0 0.0
    %3913 = vmatprep.subr.mxu0 0.0
    %3914 = vmatpush1.msra.mxu0 0.0
    %3915 = vmatprep.subr.mxu0 0.0
    %3916 = vmatpush1.msra.mxu0 0.0
    %3917 = vmatprep.subr.mxu0 0.0
    %3918 = vmatpush1.msra.mxu0 0.0
    %3919 = vmatprep.mubr.f32.mxu0 0.0
    %3920 = vmatmul.mubr.f32.gmra.mrb[0].mxu0 %v3677
    %v3921 = vpop.f32.mrb[0].mxu0
    %v3922 = vadd.f32 %v3837, %v3921
    %v3923 = vpop.f32.mrb[0].mxu0
    %3924 = vmatprep.mubr.f32.mxu0 0.0
    %3925 = vmatmul.mubr.f32.gmra.mrb[0].mxu0 %v3679
    %v3926 = vpop.f32.mrb[0].mxu0
    %v3927 = vadd.f32 %v3842, %v3926
    %v3928 = vpop.f32.mrb[0].mxu0
    %3929 = vmatprep.mubr.f32.mxu0 0.0
    %3930 = vmatmul.mubr.f32.gmra.mrb[0].mxu0 %v3681
    %v3931 = vpop.f32.mrb[0].mxu0
    %v3932 = vadd.f32 %v3847, %v3931
    %v3933 = vpop.f32.mrb[0].mxu0
    %3934 = vmatprep.mubr.f32.mxu0 0.0
    %3935 = vmatmul.mubr.f32.gmra.mrb[0].mxu0 %v3683
    %v3936 = vpop.f32.mrb[0].mxu0
    %v3937 = vadd.f32 %v3852, %v3936
    %v3938 = vpop.f32.mrb[0].mxu0
    %3939 = vdwg.mxu0
    %v3940 = vadd.f32 %v3480, %v3922
    %v3941 = vadd.f32 %v3485, %v3927
    %v3942 = vadd.f32 %v3490, %v3932
    %v3943 = vadd.f32 %v3495, %v3937
    %v3944 = vld [vmem:[%s8] sm:$0x1]
    %v3946 = vlaneseq
    %v3947 = vshrl.u32 %v3946, 7
    %v3948 = vsub.s32 0, %v3947
    %v3949 = vrot.slane %v3944, %v3948
    %v3951 = vadd.f32 %v3940, %v3949
    %v3952 = vadd.f32 %v3941, %v3949
    %v3953 = vadd.f32 %v3942, %v3949
    %v3954 = vadd.f32 %v3943, %v3949
    %3955 = vst.msk [vmem:[#allocation9] sm:$0xff] %vm509, %v3951
    %3956 = vst.msk [vmem:[#allocation9 + $0x8] sm:$0xff] %vm509, %v3952
    %3957 = vst.msk [vmem:[#allocation9 + $0x10] sm:$0xff] %vm509, %v3953
    %3958 = vst.msk [vmem:[#allocation9 + $0x18] sm:$0xff] %vm509, %v3954
    // Predicated region
    $region42: #{matrix_transformer_forward.1} parent=1 // pred_check
      _
    $region43: #{matrix_transformer_forward.1} parent=1 // pred_check_branch
      %3960 = sbr.rel (0) target = $region45
    $region44: #{matrix_transformer_forward.1} parent=1 // pred_region
      %s3962 = ssub.s32 512, 512
      %3963 = vsyncadd [#allocation8], %s3962
      %s3964 = sshll.u32 [#allocation9], 4
      %s3965 = int_to_ptr.vmem [resolvable:$true] %s3964
      %3970 = dma.vmem_to_hbm [thread:$0]  %s3965, 512, %s9, [#allocation8], 128, 128, 8
    $region45: #{matrix_transformer_forward.1} parent=1 // pred_fallthru
      _
    // Predicated region
    $region46: #{matrix_transformer_forward.1} parent=1 // pred_check
      _
    $region47: #{matrix_transformer_forward.1} parent=1 // pred_check_branch
      %3972 = sbr.rel (0) target = $region49
    $region48: #{matrix_transformer_forward.1} parent=1 // pred_region
      %3973 = dma.done [#allocation8], 512
    $region49: #{matrix_transformer_forward.1} parent=1 // pred_fallthru
      _
    %3974 = vsyncpa [#allocation7], 1
    %3975 = vsyncpa [#allocation8], 1

</llo_original>
